<compile_context>
chip_gen: v6e
topology: v6e:2x2x1
jax: 0.10.0
libtpu: 0.0.40
codegen_flags: <defaults>
</compile_context>

<pallas_src>
import functools
import math

import jax
import jax.numpy as jnp
from jax.experimental import pallas as pl
from jax.experimental.pallas import tpu as pltpu


# ---------------------------------------------------------------------------
# In-kernel helpers (traced inside the Pallas kernel body)
# ---------------------------------------------------------------------------
def _layernorm(x, gamma, beta, eps=1e-5):
    mu = jnp.mean(x, axis=-1, keepdims=True)
    var = jnp.mean((x - mu) ** 2, axis=-1, keepdims=True)
    return (x - mu) * jax.lax.rsqrt(var + eps) * gamma + beta


def _mha_core(q, k, v, wo_h, bo, num_heads, causal):
    """Batched-head attention + output projection.

    q: (Sq, E) f32, k/v: (Skv, E) f32, wo_h: (H, hd, E) bf16, bo: (1, E) f32.
    """
    S_q, E = q.shape
    hd = E // num_heads
    scale = 1.0 / math.sqrt(hd)

    def to_heads(m):
        # (S, E) -> (H, S, hd): head-major via static slices + stack (copy-only
        # work; all MXU work below stays head-batched / lane-dense).
        return jnp.stack(
            [m[:, h * hd:(h + 1) * hd] for h in range(num_heads)], axis=0)

    qh = to_heads(q).astype(jnp.bfloat16)
    kh = to_heads(k).astype(jnp.bfloat16)
    vh = to_heads(v).astype(jnp.bfloat16)

    # One batched MXU pass for all heads; softmax arithmetic in fp32.
    s = jnp.einsum("hqd,hkd->hqk", qh, kh,
                   preferred_element_type=jnp.float32) * scale
    if causal:
        row = jax.lax.broadcasted_iota(jnp.int32, s.shape, 1)
        col = jax.lax.broadcasted_iota(jnp.int32, s.shape, 2)
        s = jnp.where(col <= row, s, jnp.float32(-1e9))
    m = jnp.max(s, axis=-1, keepdims=True)
    e = jnp.exp(s - m)
    p = e * pl.reciprocal(jnp.sum(e, axis=-1, keepdims=True), approx=True)

    o = jnp.einsum("hqk,hkd->hqd", p.astype(jnp.bfloat16), vh,
                   preferred_element_type=jnp.float32)        # (H, Sq, hd)
    # Per-head output projection summed over heads == concat(heads) @ Wo.
    proj = jnp.einsum("hqd,hde->hqe", o.astype(jnp.bfloat16), wo_h,
                      preferred_element_type=jnp.float32)      # (H, Sq, E)
    return jnp.sum(proj, axis=0) + bo


# ---------------------------------------------------------------------------
# Fused whole-decoder kernel: grid = (batch, layer)
# ---------------------------------------------------------------------------
def _decoder_kernel(num_heads,
                    x_ref, enc_ref,
                    wqkv1, bqkv1, wo1h, bo1,
                    wq2, bq2, wkv2, bkv2, wo2h, bo2,
                    g1, be1, g2, be2, g3, be3,
                    wf1, bf1, wf2, bf2,
                    ng, nb,
                    out_ref, x_scr):
    l = pl.program_id(1)

    # Layer 0: load the embedded input into the resident activation scratch.
    @pl.when(l == 0)
    def _():
        x_scr[...] = x_ref[0]

    x = x_scr[...]        # (S, E) fp32, resident in VMEM across the layer axis
    enc = enc_ref[0]      # (S_enc, E) fp32
    E = x.shape[-1]

    # --- self-attention (causal): fused QKV projection, batched heads ---
    qkv = jnp.dot(x.astype(jnp.bfloat16), wqkv1[0],
                  preferred_element_type=jnp.float32) + bqkv1[0]
    a1 = _mha_core(qkv[:, :E], qkv[:, E:2 * E], qkv[:, 2 * E:],
                   wo1h[0], bo1[0], num_heads, causal=True)
    x1 = _layernorm(x + a1, g1[0], be1[0])

    # --- cross-attention: fused KV projection of the encoder output ---
    q2 = jnp.dot(x1.astype(jnp.bfloat16), wq2[0],
                 preferred_element_type=jnp.float32) + bq2[0]
    kv = jnp.dot(enc.astype(jnp.bfloat16), wkv2[0],
                 preferred_element_type=jnp.float32) + bkv2[0]
    a2 = _mha_core(q2, kv[:, :E], kv[:, E:],
                   wo2h[0], bo2[0], num_heads, causal=False)
    x2 = _layernorm(x1 + a2, g2[0], be2[0])

    # --- feed-forward (Linear -> ReLU -> Linear) ---
    h = jnp.maximum(jnp.dot(x2.astype(jnp.bfloat16), wf1[0],
                            preferred_element_type=jnp.float32) + bf1[0], 0.0)
    ff = jnp.dot(h.astype(jnp.bfloat16), wf2[0],
                 preferred_element_type=jnp.float32) + bf2[0]
    x3 = _layernorm(x2 + ff, g3[0], be3[0])

    x_scr[...] = x3

    # Last layer: fuse the final LayerNorm and emit the output block.
    @pl.when(l == pl.num_programs(1) - 1)
    def _():
        out_ref[0] = _layernorm(x3, ng[...], nb[...])


# ---------------------------------------------------------------------------
# Wrapper: weight packing + single pallas_call for the whole decoder
# ---------------------------------------------------------------------------
def decoder_forward(tokens, enc_output, params, num_heads):
    B, S = tokens.shape
    E = params["emb"].shape[1]
    S_enc = enc_output.shape[1]
    layers = params["layers"]
    L = len(layers)
    H = num_heads
    hd = E // H

    # Embedding lookup stays in plain JAX glue (gather has no cheap Pallas form).
    positions = jnp.arange(S, dtype=jnp.int32)
    x = (jnp.take(params["emb"], tokens, axis=0)
         + jnp.take(params["pos_emb"], positions, axis=0)[None, :, :])
    x = x.astype(jnp.float32)
    enc = enc_output.astype(jnp.float32)

    bf16 = jnp.bfloat16

    def stack(fn):
        return jnp.stack([fn(lp) for lp in layers], axis=0)

    # Fused / head-restructured weight packing (wrapper side, done once).
    wqkv1 = stack(lambda lp: jnp.concatenate(
        [lp["wq1"], lp["wk1"], lp["wv1"]], axis=1).astype(bf16))
    bqkv1 = stack(lambda lp: jnp.concatenate(
        [lp["bq1"], lp["bk1"], lp["bv1"]], axis=1))
    wo1h = stack(lambda lp: lp["wo1"].reshape(H, hd, E).astype(bf16))
    bo1 = stack(lambda lp: lp["bo1"])
    wq2 = stack(lambda lp: lp["wq2"].astype(bf16))
    bq2 = stack(lambda lp: lp["bq2"])
    wkv2 = stack(lambda lp: jnp.concatenate(
        [lp["wk2"], lp["wv2"]], axis=1).astype(bf16))
    bkv2 = stack(lambda lp: jnp.concatenate([lp["bk2"], lp["bv2"]], axis=1))
    wo2h = stack(lambda lp: lp["wo2"].reshape(H, hd, E).astype(bf16))
    bo2 = stack(lambda lp: lp["bo2"])
    g1 = stack(lambda lp: lp["g1"]); be1 = stack(lambda lp: lp["be1"])
    g2 = stack(lambda lp: lp["g2"]); be2 = stack(lambda lp: lp["be2"])
    g3 = stack(lambda lp: lp["g3"]); be3 = stack(lambda lp: lp["be3"])
    wf1 = stack(lambda lp: lp["wf1"].astype(bf16))
    bf1 = stack(lambda lp: lp["bf1"])
    wf2 = stack(lambda lp: lp["wf2"].astype(bf16))
    bf2 = stack(lambda lp: lp["bf2"])

    operands = [x, enc,
                wqkv1, bqkv1, wo1h, bo1,
                wq2, bq2, wkv2, bkv2, wo2h, bo2,
                g1, be1, g2, be2, g3, be3,
                wf1, bf1, wf2, bf2,
                params["norm_g"], params["norm_b"]]

    def seq_spec(s_len):
        return pl.BlockSpec((1, s_len, E), lambda b, l: (b, 0, 0))

    def layer_spec(arr):
        nd = arr.ndim
        return pl.BlockSpec((1,) + arr.shape[1:],
                            lambda b, l, _nd=nd: (l,) + (0,) * (_nd - 1))

    const_spec = pl.BlockSpec((1, E), lambda b, l: (0, 0))

    in_specs = ([seq_spec(S), seq_spec(S_enc)]
                + [layer_spec(a) for a in operands[2:22]]
                + [const_spec, const_spec])

    return pl.pallas_call(
        functools.partial(_decoder_kernel, num_heads),
        out_shape=jax.ShapeDtypeStruct((B, S, E), jnp.float32),
        grid=(B, L),
        in_specs=in_specs,
        out_specs=seq_spec(S),
        scratch_shapes=[pltpu.VMEM((S, E), jnp.float32)],
        compiler_params=pltpu.CompilerParams(
            dimension_semantics=("parallel", "arbitrary"),
            vmem_limit_bytes=32 * 1024 * 1024),
    )(*operands)


# ---------------------------------------------------------------------------
# Deterministic parameter construction (mirrors the PyTorch module layout)
# ---------------------------------------------------------------------------
def make_params(key, vocab_size, max_seq_length, num_layers, n_embd):
    def nxt():
        nonlocal key
        key, sub = jax.random.split(key)
        return sub

    def dense(shape, scale=0.02):
        return (scale * jax.random.normal(nxt(), shape)).astype(jnp.float32)

    params = {
        "emb": dense((vocab_size, n_embd)),
        "pos_emb": dense((max_seq_length, n_embd)),
        "norm_g": jnp.ones((1, n_embd), jnp.float32),
        "norm_b": jnp.zeros((1, n_embd), jnp.float32),
        "layers": [],
    }
    for _ in range(num_layers):
        lp = {}
        for pfx in ("1", "2"):
            for name in ("q", "k", "v", "o"):
                lp[f"w{name}{pfx}"] = dense((n_embd, n_embd))
                lp[f"b{name}{pfx}"] = jnp.zeros((1, n_embd), jnp.float32)
        for i in ("1", "2", "3"):
            lp[f"g{i}"] = jnp.ones((1, n_embd), jnp.float32)
            lp[f"be{i}"] = jnp.zeros((1, n_embd), jnp.float32)
        lp["wf1"] = dense((n_embd, 4 * n_embd))
        lp["bf1"] = jnp.zeros((1, 4 * n_embd), jnp.float32)
        lp["wf2"] = dense((4 * n_embd, n_embd))
        lp["bf2"] = jnp.zeros((1, n_embd), jnp.float32)
        params["layers"].append(lp)
    return params


if __name__ == "__main__":
    vocab_size = 64
    max_seq_length = 8
    num_layers = 2
    num_heads = 4
    n_embd = 32
    batch = 2
    seq = 8

    key = jax.random.PRNGKey(0)
    k_tok, k_enc, k_par = jax.random.split(key, 3)

    tokens = jax.random.randint(k_tok, (batch, seq), 0, vocab_size, dtype=jnp.int32)
    enc_output = jax.random.normal(k_enc, (batch, seq, n_embd), dtype=jnp.float32)
    params = make_params(k_par, vocab_size, max_seq_length, num_layers, n_embd)

    out = decoder_forward(tokens, enc_output, params, num_heads)
    out = jax.block_until_ready(out)
    assert out.shape == (batch, seq, n_embd) and out.dtype == jnp.float32
    assert bool(jnp.all(jnp.isfinite(out)))
    print("KERNEL_OK")
</pallas_src>

<mosaic_0001>
module attributes {stable_mosaic.version = 11 : i64} {
  func.func @_decoder_kernel(%arg0: i32, %arg1: i32, %arg2: memref<1x8x32xf32, #tpu.memory_space<vmem>>, %arg3: memref<1x8x32xf32, #tpu.memory_space<vmem>>, %arg4: memref<1x32x96xbf16, #tpu.memory_space<vmem>>, %arg5: memref<1x1x96xf32, #tpu.memory_space<vmem>>, %arg6: memref<1x4x8x32xbf16, #tpu.memory_space<vmem>>, %arg7: memref<1x1x32xf32, #tpu.memory_space<vmem>>, %arg8: memref<1x32x32xbf16, #tpu.memory_space<vmem>>, %arg9: memref<1x1x32xf32, #tpu.memory_space<vmem>>, %arg10: memref<1x32x64xbf16, #tpu.memory_space<vmem>>, %arg11: memref<1x1x64xf32, #tpu.memory_space<vmem>>, %arg12: memref<1x4x8x32xbf16, #tpu.memory_space<vmem>>, %arg13: memref<1x1x32xf32, #tpu.memory_space<vmem>>, %arg14: memref<1x1x32xf32, #tpu.memory_space<vmem>>, %arg15: memref<1x1x32xf32, #tpu.memory_space<vmem>>, %arg16: memref<1x1x32xf32, #tpu.memory_space<vmem>>, %arg17: memref<1x1x32xf32, #tpu.memory_space<vmem>>, %arg18: memref<1x1x32xf32, #tpu.memory_space<vmem>>, %arg19: memref<1x1x32xf32, #tpu.memory_space<vmem>>, %arg20: memref<1x32x128xbf16, #tpu.memory_space<vmem>>, %arg21: memref<1x1x128xf32, #tpu.memory_space<vmem>>, %arg22: memref<1x128x32xbf16, #tpu.memory_space<vmem>>, %arg23: memref<1x1x32xf32, #tpu.memory_space<vmem>>, %arg24: memref<1x32xf32, #tpu.memory_space<vmem>>, %arg25: memref<1x32xf32, #tpu.memory_space<vmem>>, %arg26: memref<1x8x32xf32, #tpu.memory_space<vmem>>, %arg27: memref<8x32xf32, #tpu.memory_space<vmem>>) attributes {dimension_semantics = [#tpu.dimension_semantics<parallel>, #tpu.dimension_semantics<arbitrary>], iteration_bounds = array<i64: 2, 2>, scalar_prefetch = 0 : i64, scratch_operands = 1 : i64, tpu.core_type = #tpu.core_type<tc>, window_params = [{transform_indices = @transform_0, window_bounds = array<i64: 1, 8, 32>}, {transform_indices = @transform_1, window_bounds = array<i64: 1, 8, 32>}, {transform_indices = @transform_2, window_bounds = array<i64: 1, 32, 96>}, {transform_indices = @transform_3, window_bounds = array<i64: 1, 1, 96>}, {transform_indices = @transform_4, window_bounds = array<i64: 1, 4, 8, 32>}, {transform_indices = @transform_5, window_bounds = array<i64: 1, 1, 32>}, {transform_indices = @transform_6, window_bounds = array<i64: 1, 32, 32>}, {transform_indices = @transform_7, window_bounds = array<i64: 1, 1, 32>}, {transform_indices = @transform_8, window_bounds = array<i64: 1, 32, 64>}, {transform_indices = @transform_9, window_bounds = array<i64: 1, 1, 64>}, {transform_indices = @transform_10, window_bounds = array<i64: 1, 4, 8, 32>}, {transform_indices = @transform_11, window_bounds = array<i64: 1, 1, 32>}, {transform_indices = @transform_12, window_bounds = array<i64: 1, 1, 32>}, {transform_indices = @transform_13, window_bounds = array<i64: 1, 1, 32>}, {transform_indices = @transform_14, window_bounds = array<i64: 1, 1, 32>}, {transform_indices = @transform_15, window_bounds = array<i64: 1, 1, 32>}, {transform_indices = @transform_16, window_bounds = array<i64: 1, 1, 32>}, {transform_indices = @transform_17, window_bounds = array<i64: 1, 1, 32>}, {transform_indices = @transform_18, window_bounds = array<i64: 1, 32, 128>}, {transform_indices = @transform_19, window_bounds = array<i64: 1, 1, 128>}, {transform_indices = @transform_20, window_bounds = array<i64: 1, 128, 32>}, {transform_indices = @transform_21, window_bounds = array<i64: 1, 1, 32>}, {pipeline_mode = #tpu.pipeline_mode<synchronous>, transform_indices = @transform_22, window_bounds = array<i64: 1, 32>}, {pipeline_mode = #tpu.pipeline_mode<synchronous>, transform_indices = @transform_23, window_bounds = array<i64: 1, 32>}, {transform_indices = @transform_24, window_bounds = array<i64: 1, 8, 32>}]} {
    %c0_i32 = arith.constant 0 : i32
    %0 = arith.cmpi eq, %arg1, %c0_i32 : i32
    %1 = arith.extui %0 : i1 to i32
    %c0_i32_0 = arith.constant 0 : i32
    %2 = arith.cmpi ne, %1, %c0_i32_0 : i32
    scf.if %2 {
      %c0_105 = arith.constant 0 : index
      %c0_106 = arith.constant 0 : index
      %c0_107 = arith.constant 0 : index
      %251 = vector.load %arg2[%c0_105, %c0_106, %c0_107] : memref<1x8x32xf32, #tpu.memory_space<vmem>>, vector<1x8x32xf32>
      %252 = vector.shape_cast %251 : vector<1x8x32xf32> to vector<8x32xf32>
      %c0_108 = arith.constant 0 : index
      %c0_109 = arith.constant 0 : index
      %253 = vector.load %arg27[%c0_108, %c0_109] : memref<8x32xf32, #tpu.memory_space<vmem>>, vector<8x32xf32>
      tpu.vector_store %arg27[%c0_108, %c0_109], %252 {strides = array<i32>} : memref<8x32xf32, #tpu.memory_space<vmem>>, vector<8x32xf32>,
    } else {
    }
    %c0 = arith.constant 0 : index
    %c0_1 = arith.constant 0 : index
    %3 = vector.load %arg27[%c0, %c0_1] : memref<8x32xf32, #tpu.memory_space<vmem>>, vector<8x32xf32>
    %c0_2 = arith.constant 0 : index
    %c0_3 = arith.constant 0 : index
    %c0_4 = arith.constant 0 : index
    %4 = vector.load %arg3[%c0_2, %c0_3, %c0_4] : memref<1x8x32xf32, #tpu.memory_space<vmem>>, vector<1x8x32xf32>
    %5 = vector.shape_cast %4 : vector<1x8x32xf32> to vector<8x32xf32>
    %6 = arith.truncf %3 : vector<8x32xf32> to vector<8x32xbf16>
    %c0_5 = arith.constant 0 : index
    %c0_6 = arith.constant 0 : index
    %c0_7 = arith.constant 0 : index
    %7 = vector.load %arg4[%c0_5, %c0_6, %c0_7] : memref<1x32x96xbf16, #tpu.memory_space<vmem>>, vector<1x32x96xbf16>
    %8 = vector.shape_cast %7 : vector<1x32x96xbf16> to vector<32x96xbf16>
    %cst = arith.constant dense<0.000000e+00> : vector<8x96xf32>
    %9 = tpu.matmul %6, %8, %cst {dimension_numbers = #tpu.dot_dimension_numbers<[1], [0], [0], [1], [0, 0, 1, 1], [], []>} : vector<8x32xbf16>, vector<32x96xbf16>, vector<8x96xf32> -> vector<8x96xf32>
    %c0_8 = arith.constant 0 : index
    %c0_9 = arith.constant 0 : index
    %c0_10 = arith.constant 0 : index
    %10 = vector.load %arg5[%c0_8, %c0_9, %c0_10] : memref<1x1x96xf32, #tpu.memory_space<vmem>>, vector<1x1x96xf32>
    %11 = vector.shape_cast %10 : vector<1x1x96xf32> to vector<1x96xf32>
    %12 = vector.broadcast %11 : vector<1x96xf32> to vector<8x96xf32>
    %13 = arith.addf %9, %12 : vector<8x96xf32>
    %14 = vector.extract_strided_slice %13 {offsets = [0, 0], sizes = [8, 32], strides = [1, 1]} : vector<8x96xf32> to vector<8x32xf32>
    %15 = vector.extract_strided_slice %13 {offsets = [0, 32], sizes = [8, 32], strides = [1, 1]} : vector<8x96xf32> to vector<8x32xf32>
    %16 = vector.extract_strided_slice %13 {offsets = [0, 64], sizes = [8, 32], strides = [1, 1]} : vector<8x96xf32> to vector<8x32xf32>
    %c0_11 = arith.constant 0 : index
    %c0_12 = arith.constant 0 : index
    %c0_13 = arith.constant 0 : index
    %c0_14 = arith.constant 0 : index
    %17 = vector.load %arg6[%c0_11, %c0_12, %c0_13, %c0_14] : memref<1x4x8x32xbf16, #tpu.memory_space<vmem>>, vector<1x4x8x32xbf16>
    %18 = vector.shape_cast %17 : vector<1x4x8x32xbf16> to vector<4x8x32xbf16>
    %c0_15 = arith.constant 0 : index
    %c0_16 = arith.constant 0 : index
    %c0_17 = arith.constant 0 : index
    %19 = vector.load %arg7[%c0_15, %c0_16, %c0_17] : memref<1x1x32xf32, #tpu.memory_space<vmem>>, vector<1x1x32xf32>
    %20 = vector.shape_cast %19 : vector<1x1x32xf32> to vector<1x32xf32>
    %21 = vector.extract_strided_slice %14 {offsets = [0, 0], sizes = [8, 8], strides = [1, 1]} : vector<8x32xf32> to vector<8x8xf32>
    %22 = vector.extract_strided_slice %14 {offsets = [0, 8], sizes = [8, 8], strides = [1, 1]} : vector<8x32xf32> to vector<8x8xf32>
    %23 = vector.extract_strided_slice %14 {offsets = [0, 16], sizes = [8, 8], strides = [1, 1]} : vector<8x32xf32> to vector<8x8xf32>
    %24 = vector.extract_strided_slice %14 {offsets = [0, 24], sizes = [8, 8], strides = [1, 1]} : vector<8x32xf32> to vector<8x8xf32>
    %25 = vector.shape_cast %21 : vector<8x8xf32> to vector<1x8x8xf32>
    %26 = vector.shape_cast %22 : vector<8x8xf32> to vector<1x8x8xf32>
    %27 = vector.shape_cast %23 : vector<8x8xf32> to vector<1x8x8xf32>
    %28 = vector.shape_cast %24 : vector<8x8xf32> to vector<1x8x8xf32>
    %29 = tpu.concatenate %25, %26, %27, %28 in 0 : vector<1x8x8xf32>, vector<1x8x8xf32>, vector<1x8x8xf32>, vector<1x8x8xf32> -> vector<4x8x8xf32>
    %30 = arith.truncf %29 : vector<4x8x8xf32> to vector<4x8x8xbf16>
    %31 = vector.extract_strided_slice %15 {offsets = [0, 0], sizes = [8, 8], strides = [1, 1]} : vector<8x32xf32> to vector<8x8xf32>
    %32 = vector.extract_strided_slice %15 {offsets = [0, 8], sizes = [8, 8], strides = [1, 1]} : vector<8x32xf32> to vector<8x8xf32>
    %33 = vector.extract_strided_slice %15 {offsets = [0, 16], sizes = [8, 8], strides = [1, 1]} : vector<8x32xf32> to vector<8x8xf32>
    %34 = vector.extract_strided_slice %15 {offsets = [0, 24], sizes = [8, 8], strides = [1, 1]} : vector<8x32xf32> to vector<8x8xf32>
    %35 = vector.shape_cast %31 : vector<8x8xf32> to vector<1x8x8xf32>
    %36 = vector.shape_cast %32 : vector<8x8xf32> to vector<1x8x8xf32>
    %37 = vector.shape_cast %33 : vector<8x8xf32> to vector<1x8x8xf32>
    %38 = vector.shape_cast %34 : vector<8x8xf32> to vector<1x8x8xf32>
    %39 = tpu.concatenate %35, %36, %37, %38 in 0 : vector<1x8x8xf32>, vector<1x8x8xf32>, vector<1x8x8xf32>, vector<1x8x8xf32> -> vector<4x8x8xf32>
    %40 = arith.truncf %39 : vector<4x8x8xf32> to vector<4x8x8xbf16>
    %41 = vector.extract_strided_slice %16 {offsets = [0, 0], sizes = [8, 8], strides = [1, 1]} : vector<8x32xf32> to vector<8x8xf32>
    %42 = vector.extract_strided_slice %16 {offsets = [0, 8], sizes = [8, 8], strides = [1, 1]} : vector<8x32xf32> to vector<8x8xf32>
    %43 = vector.extract_strided_slice %16 {offsets = [0, 16], sizes = [8, 8], strides = [1, 1]} : vector<8x32xf32> to vector<8x8xf32>
    %44 = vector.extract_strided_slice %16 {offsets = [0, 24], sizes = [8, 8], strides = [1, 1]} : vector<8x32xf32> to vector<8x8xf32>
    %45 = vector.shape_cast %41 : vector<8x8xf32> to vector<1x8x8xf32>
    %46 = vector.shape_cast %42 : vector<8x8xf32> to vector<1x8x8xf32>
    %47 = vector.shape_cast %43 : vector<8x8xf32> to vector<1x8x8xf32>
    %48 = vector.shape_cast %44 : vector<8x8xf32> to vector<1x8x8xf32>
    %49 = tpu.concatenate %45, %46, %47, %48 in 0 : vector<1x8x8xf32>, vector<1x8x8xf32>, vector<1x8x8xf32>, vector<1x8x8xf32> -> vector<4x8x8xf32>
    %50 = arith.truncf %49 : vector<4x8x8xf32> to vector<4x8x8xbf16>
    "tpu.trace_start"() <{level = 10 : i32, message = "hqd,hkd->hqk"}> : () -> ()
    %cst_18 = arith.constant dense<0.000000e+00> : vector<4x8x8xf32>
    %51 = tpu.matmul %30, %40, %cst_18 {dimension_numbers = #tpu.dot_dimension_numbers<[2], [2], [1], [1], [0, 0, 0, 1, 1, 1], [0], [0]>} : vector<4x8x8xbf16>, vector<4x8x8xbf16>, vector<4x8x8xf32> -> vector<4x8x8xf32>
    "tpu.trace_stop"() : () -> ()
    %cst_19 = arith.constant 0.353553385 : f32
    %52 = vector.broadcast %cst_19 : f32 to vector<4x8x8xf32>
    %53 = arith.mulf %51, %52 : vector<4x8x8xf32>
    %54 = tpu.iota {dimensions = array<i32: 1>} : vector<4x8x8xi32>
    %55 = tpu.iota {dimensions = array<i32: 2>} : vector<4x8x8xi32>
    %56 = arith.cmpi sle, %55, %54 : vector<4x8x8xi32>
    %cst_20 = arith.constant -1.000000e+09 : f32
    %57 = vector.broadcast %cst_20 : f32 to vector<4x8x8xf32>
    %58 = arith.select %56, %53, %57 : vector<4x8x8xi1>, vector<4x8x8xf32>
    %cst_21 = arith.constant dense<0xFF800000> : vector<4x8xf32>
    %59 = vector.multi_reduction <maximumf>, %58, %cst_21 [2] : vector<4x8x8xf32> to vector<4x8xf32>
    %60 = vector.shape_cast %59 : vector<4x8xf32> to vector<4x8x1xf32>
    %61 = vector.broadcast %60 : vector<4x8x1xf32> to vector<4x8x8xf32>
    %62 = arith.subf %58, %61 : vector<4x8x8xf32>
    %63 = math.exp %62 : vector<4x8x8xf32>
    %cst_22 = arith.constant dense<0.000000e+00> : vector<4x8xf32>
    %64 = vector.multi_reduction <add>, %63, %cst_22 [2] : vector<4x8x8xf32> to vector<4x8xf32>
    %65 = vector.shape_cast %64 : vector<4x8xf32> to vector<4x8x1xf32>
    %66 = tpu.reciprocal %65 {approx = true} : vector<4x8x1xf32> -> vector<4x8x1xf32>
    %67 = vector.broadcast %66 : vector<4x8x1xf32> to vector<4x8x8xf32>
    %68 = arith.mulf %63, %67 : vector<4x8x8xf32>
    %69 = arith.truncf %68 : vector<4x8x8xf32> to vector<4x8x8xbf16>
    "tpu.trace_start"() <{level = 10 : i32, message = "hqk,hkd->hqd"}> : () -> ()
    %cst_23 = arith.constant dense<0.000000e+00> : vector<4x8x8xf32>
    %70 = tpu.matmul %69, %50, %cst_23 {dimension_numbers = #tpu.dot_dimension_numbers<[2], [1], [1], [2], [0, 0, 0, 1, 1, 2], [0], [0]>} : vector<4x8x8xbf16>, vector<4x8x8xbf16>, vector<4x8x8xf32> -> vector<4x8x8xf32>
    "tpu.trace_stop"() : () -> ()
    %71 = arith.truncf %70 : vector<4x8x8xf32> to vector<4x8x8xbf16>
    "tpu.trace_start"() <{level = 10 : i32, message = "hqd,hde->hqe"}> : () -> ()
    %cst_24 = arith.constant dense<0.000000e+00> : vector<4x8x32xf32>
    %72 = tpu.matmul %71, %18, %cst_24 {dimension_numbers = #tpu.dot_dimension_numbers<[2], [1], [1], [2], [0, 0, 0, 1, 1, 2], [0], [0]>} : vector<4x8x8xbf16>, vector<4x8x32xbf16>, vector<4x8x32xf32> -> vector<4x8x32xf32>
    "tpu.trace_stop"() : () -> ()
    %cst_25 = arith.constant dense<0.000000e+00> : vector<8x32xf32>
    %73 = vector.multi_reduction <add>, %72, %cst_25 [0] : vector<4x8x32xf32> to vector<8x32xf32>
    %74 = vector.broadcast %20 : vector<1x32xf32> to vector<8x32xf32>
    %75 = arith.addf %73, %74 : vector<8x32xf32>
    %76 = arith.addf %3, %75 : vector<8x32xf32>
    %c0_26 = arith.constant 0 : index
    %c0_27 = arith.constant 0 : index
    %c0_28 = arith.constant 0 : index
    %77 = vector.load %arg14[%c0_26, %c0_27, %c0_28] : memref<1x1x32xf32, #tpu.memory_space<vmem>>, vector<1x1x32xf32>
    %78 = vector.shape_cast %77 : vector<1x1x32xf32> to vector<1x32xf32>
    %c0_29 = arith.constant 0 : index
    %c0_30 = arith.constant 0 : index
    %c0_31 = arith.constant 0 : index
    %79 = vector.load %arg15[%c0_29, %c0_30, %c0_31] : memref<1x1x32xf32, #tpu.memory_space<vmem>>, vector<1x1x32xf32>
    %80 = vector.shape_cast %79 : vector<1x1x32xf32> to vector<1x32xf32>
    %cst_32 = arith.constant dense<0.000000e+00> : vector<8xf32>
    %81 = vector.multi_reduction <add>, %76, %cst_32 [1] : vector<8x32xf32> to vector<8xf32>
    %82 = vector.shape_cast %81 : vector<8xf32> to vector<8x1xf32>
    %cst_33 = arith.constant 3.200000e+01 : f32
    %83 = vector.broadcast %cst_33 : f32 to vector<8x1xf32>
    %84 = arith.divf %82, %83 : vector<8x1xf32>
    %85 = vector.broadcast %84 : vector<8x1xf32> to vector<8x32xf32>
    %86 = arith.subf %76, %85 : vector<8x32xf32>
    %87 = arith.mulf %86, %86 : vector<8x32xf32>
    %cst_34 = arith.constant dense<0.000000e+00> : vector<8xf32>
    %88 = vector.multi_reduction <add>, %87, %cst_34 [1] : vector<8x32xf32> to vector<8xf32>
    %89 = vector.shape_cast %88 : vector<8xf32> to vector<8x1xf32>
    %cst_35 = arith.constant 3.200000e+01 : f32
    %90 = vector.broadcast %cst_35 : f32 to vector<8x1xf32>
    %91 = arith.divf %89, %90 : vector<8x1xf32>
    %92 = vector.broadcast %84 : vector<8x1xf32> to vector<8x32xf32>
    %93 = arith.subf %76, %92 : vector<8x32xf32>
    %cst_36 = arith.constant 9.99999974E-6 : f32
    %94 = vector.broadcast %cst_36 : f32 to vector<8x1xf32>
    %95 = arith.addf %91, %94 : vector<8x1xf32>
    %96 = math.rsqrt %95 : vector<8x1xf32>
    %97 = vector.broadcast %96 : vector<8x1xf32> to vector<8x32xf32>
    %98 = arith.mulf %93, %97 : vector<8x32xf32>
    %99 = vector.broadcast %78 : vector<1x32xf32> to vector<8x32xf32>
    %100 = arith.mulf %98, %99 : vector<8x32xf32>
    %101 = vector.broadcast %80 : vector<1x32xf32> to vector<8x32xf32>
    %102 = arith.addf %100, %101 : vector<8x32xf32>
    %103 = arith.truncf %102 : vector<8x32xf32> to vector<8x32xbf16>
    %c0_37 = arith.constant 0 : index
    %c0_38 = arith.constant 0 : index
    %c0_39 = arith.constant 0 : index
    %104 = vector.load %arg8[%c0_37, %c0_38, %c0_39] : memref<1x32x32xbf16, #tpu.memory_space<vmem>>, vector<1x32x32xbf16>
    %105 = vector.shape_cast %104 : vector<1x32x32xbf16> to vector<32x32xbf16>
    %cst_40 = arith.constant dense<0.000000e+00> : vector<8x32xf32>
    %106 = tpu.matmul %103, %105, %cst_40 {dimension_numbers = #tpu.dot_dimension_numbers<[1], [0], [0], [1], [0, 0, 1, 1], [], []>} : vector<8x32xbf16>, vector<32x32xbf16>, vector<8x32xf32> -> vector<8x32xf32>
    %c0_41 = arith.constant 0 : index
    %c0_42 = arith.constant 0 : index
    %c0_43 = arith.constant 0 : index
    %107 = vector.load %arg9[%c0_41, %c0_42, %c0_43] : memref<1x1x32xf32, #tpu.memory_space<vmem>>, vector<1x1x32xf32>
    %108 = vector.shape_cast %107 : vector<1x1x32xf32> to vector<1x32xf32>
    %109 = vector.broadcast %108 : vector<1x32xf32> to vector<8x32xf32>
    %110 = arith.addf %106, %109 : vector<8x32xf32>
    %111 = arith.truncf %5 : vector<8x32xf32> to vector<8x32xbf16>
    %c0_44 = arith.constant 0 : index
    %c0_45 = arith.constant 0 : index
    %c0_46 = arith.constant 0 : index
    %112 = vector.load %arg10[%c0_44, %c0_45, %c0_46] : memref<1x32x64xbf16, #tpu.memory_space<vmem>>, vector<1x32x64xbf16>
    %113 = vector.shape_cast %112 : vector<1x32x64xbf16> to vector<32x64xbf16>
    %cst_47 = arith.constant dense<0.000000e+00> : vector<8x64xf32>
    %114 = tpu.matmul %111, %113, %cst_47 {dimension_numbers = #tpu.dot_dimension_numbers<[1], [0], [0], [1], [0, 0, 1, 1], [], []>} : vector<8x32xbf16>, vector<32x64xbf16>, vector<8x64xf32> -> vector<8x64xf32>
    %c0_48 = arith.constant 0 : index
    %c0_49 = arith.constant 0 : index
    %c0_50 = arith.constant 0 : index
    %115 = vector.load %arg11[%c0_48, %c0_49, %c0_50] : memref<1x1x64xf32, #tpu.memory_space<vmem>>, vector<1x1x64xf32>
    %116 = vector.shape_cast %115 : vector<1x1x64xf32> to vector<1x64xf32>
    %117 = vector.broadcast %116 : vector<1x64xf32> to vector<8x64xf32>
    %118 = arith.addf %114, %117 : vector<8x64xf32>
    %119 = vector.extract_strided_slice %118 {offsets = [0, 0], sizes = [8, 32], strides = [1, 1]} : vector<8x64xf32> to vector<8x32xf32>
    %120 = vector.extract_strided_slice %118 {offsets = [0, 32], sizes = [8, 32], strides = [1, 1]} : vector<8x64xf32> to vector<8x32xf32>
    %c0_51 = arith.constant 0 : index
    %c0_52 = arith.constant 0 : index
    %c0_53 = arith.constant 0 : index
    %c0_54 = arith.constant 0 : index
    %121 = vector.load %arg12[%c0_51, %c0_52, %c0_53, %c0_54] : memref<1x4x8x32xbf16, #tpu.memory_space<vmem>>, vector<1x4x8x32xbf16>
    %122 = vector.shape_cast %121 : vector<1x4x8x32xbf16> to vector<4x8x32xbf16>
    %c0_55 = arith.constant 0 : index
    %c0_56 = arith.constant 0 : index
    %c0_57 = arith.constant 0 : index
    %123 = vector.load %arg13[%c0_55, %c0_56, %c0_57] : memref<1x1x32xf32, #tpu.memory_space<vmem>>, vector<1x1x32xf32>
    %124 = vector.shape_cast %123 : vector<1x1x32xf32> to vector<1x32xf32>
    %125 = vector.extract_strided_slice %110 {offsets = [0, 0], sizes = [8, 8], strides = [1, 1]} : vector<8x32xf32> to vector<8x8xf32>
    %126 = vector.extract_strided_slice %110 {offsets = [0, 8], sizes = [8, 8], strides = [1, 1]} : vector<8x32xf32> to vector<8x8xf32>
    %127 = vector.extract_strided_slice %110 {offsets = [0, 16], sizes = [8, 8], strides = [1, 1]} : vector<8x32xf32> to vector<8x8xf32>
    %128 = vector.extract_strided_slice %110 {offsets = [0, 24], sizes = [8, 8], strides = [1, 1]} : vector<8x32xf32> to vector<8x8xf32>
    %129 = vector.shape_cast %125 : vector<8x8xf32> to vector<1x8x8xf32>
    %130 = vector.shape_cast %126 : vector<8x8xf32> to vector<1x8x8xf32>
    %131 = vector.shape_cast %127 : vector<8x8xf32> to vector<1x8x8xf32>
    %132 = vector.shape_cast %128 : vector<8x8xf32> to vector<1x8x8xf32>
    %133 = tpu.concatenate %129, %130, %131, %132 in 0 : vector<1x8x8xf32>, vector<1x8x8xf32>, vector<1x8x8xf32>, vector<1x8x8xf32> -> vector<4x8x8xf32>
    %134 = arith.truncf %133 : vector<4x8x8xf32> to vector<4x8x8xbf16>
    %135 = vector.extract_strided_slice %119 {offsets = [0, 0], sizes = [8, 8], strides = [1, 1]} : vector<8x32xf32> to vector<8x8xf32>
    %136 = vector.extract_strided_slice %119 {offsets = [0, 8], sizes = [8, 8], strides = [1, 1]} : vector<8x32xf32> to vector<8x8xf32>
    %137 = vector.extract_strided_slice %119 {offsets = [0, 16], sizes = [8, 8], strides = [1, 1]} : vector<8x32xf32> to vector<8x8xf32>
    %138 = vector.extract_strided_slice %119 {offsets = [0, 24], sizes = [8, 8], strides = [1, 1]} : vector<8x32xf32> to vector<8x8xf32>
    %139 = vector.shape_cast %135 : vector<8x8xf32> to vector<1x8x8xf32>
    %140 = vector.shape_cast %136 : vector<8x8xf32> to vector<1x8x8xf32>
    %141 = vector.shape_cast %137 : vector<8x8xf32> to vector<1x8x8xf32>
    %142 = vector.shape_cast %138 : vector<8x8xf32> to vector<1x8x8xf32>
    %143 = tpu.concatenate %139, %140, %141, %142 in 0 : vector<1x8x8xf32>, vector<1x8x8xf32>, vector<1x8x8xf32>, vector<1x8x8xf32> -> vector<4x8x8xf32>
    %144 = arith.truncf %143 : vector<4x8x8xf32> to vector<4x8x8xbf16>
    %145 = vector.extract_strided_slice %120 {offsets = [0, 0], sizes = [8, 8], strides = [1, 1]} : vector<8x32xf32> to vector<8x8xf32>
    %146 = vector.extract_strided_slice %120 {offsets = [0, 8], sizes = [8, 8], strides = [1, 1]} : vector<8x32xf32> to vector<8x8xf32>
    %147 = vector.extract_strided_slice %120 {offsets = [0, 16], sizes = [8, 8], strides = [1, 1]} : vector<8x32xf32> to vector<8x8xf32>
    %148 = vector.extract_strided_slice %120 {offsets = [0, 24], sizes = [8, 8], strides = [1, 1]} : vector<8x32xf32> to vector<8x8xf32>
    %149 = vector.shape_cast %145 : vector<8x8xf32> to vector<1x8x8xf32>
    %150 = vector.shape_cast %146 : vector<8x8xf32> to vector<1x8x8xf32>
    %151 = vector.shape_cast %147 : vector<8x8xf32> to vector<1x8x8xf32>
    %152 = vector.shape_cast %148 : vector<8x8xf32> to vector<1x8x8xf32>
    %153 = tpu.concatenate %149, %150, %151, %152 in 0 : vector<1x8x8xf32>, vector<1x8x8xf32>, vector<1x8x8xf32>, vector<1x8x8xf32> -> vector<4x8x8xf32>
    %154 = arith.truncf %153 : vector<4x8x8xf32> to vector<4x8x8xbf16>
    "tpu.trace_start"() <{level = 10 : i32, message = "hqd,hkd->hqk"}> : () -> ()
    %cst_58 = arith.constant dense<0.000000e+00> : vector<4x8x8xf32>
    %155 = tpu.matmul %134, %144, %cst_58 {dimension_numbers = #tpu.dot_dimension_numbers<[2], [2], [1], [1], [0, 0, 0, 1, 1, 1], [0], [0]>} : vector<4x8x8xbf16>, vector<4x8x8xbf16>, vector<4x8x8xf32> -> vector<4x8x8xf32>
    "tpu.trace_stop"() : () -> ()
    %cst_59 = arith.constant 0.353553385 : f32
    %156 = vector.broadcast %cst_59 : f32 to vector<4x8x8xf32>
    %157 = arith.mulf %155, %156 : vector<4x8x8xf32>
    %cst_60 = arith.constant dense<0xFF800000> : vector<4x8xf32>
    %158 = vector.multi_reduction <maximumf>, %157, %cst_60 [2] : vector<4x8x8xf32> to vector<4x8xf32>
    %159 = vector.shape_cast %158 : vector<4x8xf32> to vector<4x8x1xf32>
    %160 = vector.broadcast %159 : vector<4x8x1xf32> to vector<4x8x8xf32>
    %161 = arith.subf %157, %160 : vector<4x8x8xf32>
    %162 = math.exp %161 : vector<4x8x8xf32>
    %cst_61 = arith.constant dense<0.000000e+00> : vector<4x8xf32>
    %163 = vector.multi_reduction <add>, %162, %cst_61 [2] : vector<4x8x8xf32> to vector<4x8xf32>
    %164 = vector.shape_cast %163 : vector<4x8xf32> to vector<4x8x1xf32>
    %165 = tpu.reciprocal %164 {approx = true} : vector<4x8x1xf32> -> vector<4x8x1xf32>
    %166 = vector.broadcast %165 : vector<4x8x1xf32> to vector<4x8x8xf32>
    %167 = arith.mulf %162, %166 : vector<4x8x8xf32>
    %168 = arith.truncf %167 : vector<4x8x8xf32> to vector<4x8x8xbf16>
    "tpu.trace_start"() <{level = 10 : i32, message = "hqk,hkd->hqd"}> : () -> ()
    %cst_62 = arith.constant dense<0.000000e+00> : vector<4x8x8xf32>
    %169 = tpu.matmul %168, %154, %cst_62 {dimension_numbers = #tpu.dot_dimension_numbers<[2], [1], [1], [2], [0, 0, 0, 1, 1, 2], [0], [0]>} : vector<4x8x8xbf16>, vector<4x8x8xbf16>, vector<4x8x8xf32> -> vector<4x8x8xf32>
    "tpu.trace_stop"() : () -> ()
    %170 = arith.truncf %169 : vector<4x8x8xf32> to vector<4x8x8xbf16>
    "tpu.trace_start"() <{level = 10 : i32, message = "hqd,hde->hqe"}> : () -> ()
    %cst_63 = arith.constant dense<0.000000e+00> : vector<4x8x32xf32>
    %171 = tpu.matmul %170, %122, %cst_63 {dimension_numbers = #tpu.dot_dimension_numbers<[2], [1], [1], [2], [0, 0, 0, 1, 1, 2], [0], [0]>} : vector<4x8x8xbf16>, vector<4x8x32xbf16>, vector<4x8x32xf32> -> vector<4x8x32xf32>
    "tpu.trace_stop"() : () -> ()
    %cst_64 = arith.constant dense<0.000000e+00> : vector<8x32xf32>
    %172 = vector.multi_reduction <add>, %171, %cst_64 [0] : vector<4x8x32xf32> to vector<8x32xf32>
    %173 = vector.broadcast %124 : vector<1x32xf32> to vector<8x32xf32>
    %174 = arith.addf %172, %173 : vector<8x32xf32>
    %175 = arith.addf %102, %174 : vector<8x32xf32>
    %c0_65 = arith.constant 0 : index
    %c0_66 = arith.constant 0 : index
    %c0_67 = arith.constant 0 : index
    %176 = vector.load %arg16[%c0_65, %c0_66, %c0_67] : memref<1x1x32xf32, #tpu.memory_space<vmem>>, vector<1x1x32xf32>
    %177 = vector.shape_cast %176 : vector<1x1x32xf32> to vector<1x32xf32>
    %c0_68 = arith.constant 0 : index
    %c0_69 = arith.constant 0 : index
    %c0_70 = arith.constant 0 : index
    %178 = vector.load %arg17[%c0_68, %c0_69, %c0_70] : memref<1x1x32xf32, #tpu.memory_space<vmem>>, vector<1x1x32xf32>
    %179 = vector.shape_cast %178 : vector<1x1x32xf32> to vector<1x32xf32>
    %cst_71 = arith.constant dense<0.000000e+00> : vector<8xf32>
    %180 = vector.multi_reduction <add>, %175, %cst_71 [1] : vector<8x32xf32> to vector<8xf32>
    %181 = vector.shape_cast %180 : vector<8xf32> to vector<8x1xf32>
    %cst_72 = arith.constant 3.200000e+01 : f32
    %182 = vector.broadcast %cst_72 : f32 to vector<8x1xf32>
    %183 = arith.divf %181, %182 : vector<8x1xf32>
    %184 = vector.broadcast %183 : vector<8x1xf32> to vector<8x32xf32>
    %185 = arith.subf %175, %184 : vector<8x32xf32>
    %186 = arith.mulf %185, %185 : vector<8x32xf32>
    %cst_73 = arith.constant dense<0.000000e+00> : vector<8xf32>
    %187 = vector.multi_reduction <add>, %186, %cst_73 [1] : vector<8x32xf32> to vector<8xf32>
    %188 = vector.shape_cast %187 : vector<8xf32> to vector<8x1xf32>
    %cst_74 = arith.constant 3.200000e+01 : f32
    %189 = vector.broadcast %cst_74 : f32 to vector<8x1xf32>
    %190 = arith.divf %188, %189 : vector<8x1xf32>
    %191 = vector.broadcast %183 : vector<8x1xf32> to vector<8x32xf32>
    %192 = arith.subf %175, %191 : vector<8x32xf32>
    %cst_75 = arith.constant 9.99999974E-6 : f32
    %193 = vector.broadcast %cst_75 : f32 to vector<8x1xf32>
    %194 = arith.addf %190, %193 : vector<8x1xf32>
    %195 = math.rsqrt %194 : vector<8x1xf32>
    %196 = vector.broadcast %195 : vector<8x1xf32> to vector<8x32xf32>
    %197 = arith.mulf %192, %196 : vector<8x32xf32>
    %198 = vector.broadcast %177 : vector<1x32xf32> to vector<8x32xf32>
    %199 = arith.mulf %197, %198 : vector<8x32xf32>
    %200 = vector.broadcast %179 : vector<1x32xf32> to vector<8x32xf32>
    %201 = arith.addf %199, %200 : vector<8x32xf32>
    %202 = arith.truncf %201 : vector<8x32xf32> to vector<8x32xbf16>
    %c0_76 = arith.constant 0 : index
    %c0_77 = arith.constant 0 : index
    %c0_78 = arith.constant 0 : index
    %203 = vector.load %arg20[%c0_76, %c0_77, %c0_78] : memref<1x32x128xbf16, #tpu.memory_space<vmem>>, vector<1x32x128xbf16>
    %204 = vector.shape_cast %203 : vector<1x32x128xbf16> to vector<32x128xbf16>
    %cst_79 = arith.constant dense<0.000000e+00> : vector<8x128xf32>
    %205 = tpu.matmul %202, %204, %cst_79 {dimension_numbers = #tpu.dot_dimension_numbers<[1], [0], [0], [1], [0, 0, 1, 1], [], []>} : vector<8x32xbf16>, vector<32x128xbf16>, vector<8x128xf32> -> vector<8x128xf32>
    %c0_80 = arith.constant 0 : index
    %c0_81 = arith.constant 0 : index
    %c0_82 = arith.constant 0 : index
    %206 = vector.load %arg21[%c0_80, %c0_81, %c0_82] : memref<1x1x128xf32, #tpu.memory_space<vmem>>, vector<1x1x128xf32>
    %207 = vector.shape_cast %206 : vector<1x1x128xf32> to vector<1x128xf32>
    %208 = vector.broadcast %207 : vector<1x128xf32> to vector<8x128xf32>
    %209 = arith.addf %205, %208 : vector<8x128xf32>
    %cst_83 = arith.constant 0.000000e+00 : f32
    %210 = vector.broadcast %cst_83 : f32 to vector<8x128xf32>
    %211 = arith.maximumf %209, %210 : vector<8x128xf32>
    %212 = arith.truncf %211 : vector<8x128xf32> to vector<8x128xbf16>
    %c0_84 = arith.constant 0 : index
    %c0_85 = arith.constant 0 : index
    %c0_86 = arith.constant 0 : index
    %213 = vector.load %arg22[%c0_84, %c0_85, %c0_86] : memref<1x128x32xbf16, #tpu.memory_space<vmem>>, vector<1x128x32xbf16>
    %214 = vector.shape_cast %213 : vector<1x128x32xbf16> to vector<128x32xbf16>
    %cst_87 = arith.constant dense<0.000000e+00> : vector<8x32xf32>
    %215 = tpu.matmul %212, %214, %cst_87 {dimension_numbers = #tpu.dot_dimension_numbers<[1], [0], [0], [1], [0, 0, 1, 1], [], []>} : vector<8x128xbf16>, vector<128x32xbf16>, vector<8x32xf32> -> vector<8x32xf32>
    %c0_88 = arith.constant 0 : index
    %c0_89 = arith.constant 0 : index
    %c0_90 = arith.constant 0 : index
    %216 = vector.load %arg23[%c0_88, %c0_89, %c0_90] : memref<1x1x32xf32, #tpu.memory_space<vmem>>, vector<1x1x32xf32>
    %217 = vector.shape_cast %216 : vector<1x1x32xf32> to vector<1x32xf32>
    %218 = vector.broadcast %217 : vector<1x32xf32> to vector<8x32xf32>
    %219 = arith.addf %215, %218 : vector<8x32xf32>
    %220 = arith.addf %201, %219 : vector<8x32xf32>
    %c0_91 = arith.constant 0 : index
    %c0_92 = arith.constant 0 : index
    %c0_93 = arith.constant 0 : index
    %221 = vector.load %arg18[%c0_91, %c0_92, %c0_93] : memref<1x1x32xf32, #tpu.memory_space<vmem>>, vector<1x1x32xf32>
    %222 = vector.shape_cast %221 : vector<1x1x32xf32> to vector<1x32xf32>
    %c0_94 = arith.constant 0 : index
    %c0_95 = arith.constant 0 : index
    %c0_96 = arith.constant 0 : index
    %223 = vector.load %arg19[%c0_94, %c0_95, %c0_96] : memref<1x1x32xf32, #tpu.memory_space<vmem>>, vector<1x1x32xf32>
    %224 = vector.shape_cast %223 : vector<1x1x32xf32> to vector<1x32xf32>
    %cst_97 = arith.constant dense<0.000000e+00> : vector<8xf32>
    %225 = vector.multi_reduction <add>, %220, %cst_97 [1] : vector<8x32xf32> to vector<8xf32>
    %226 = vector.shape_cast %225 : vector<8xf32> to vector<8x1xf32>
    %cst_98 = arith.constant 3.200000e+01 : f32
    %227 = vector.broadcast %cst_98 : f32 to vector<8x1xf32>
    %228 = arith.divf %226, %227 : vector<8x1xf32>
    %229 = vector.broadcast %228 : vector<8x1xf32> to vector<8x32xf32>
    %230 = arith.subf %220, %229 : vector<8x32xf32>
    %231 = arith.mulf %230, %230 : vector<8x32xf32>
    %cst_99 = arith.constant dense<0.000000e+00> : vector<8xf32>
    %232 = vector.multi_reduction <add>, %231, %cst_99 [1] : vector<8x32xf32> to vector<8xf32>
    %233 = vector.shape_cast %232 : vector<8xf32> to vector<8x1xf32>
    %cst_100 = arith.constant 3.200000e+01 : f32
    %234 = vector.broadcast %cst_100 : f32 to vector<8x1xf32>
    %235 = arith.divf %233, %234 : vector<8x1xf32>
    %236 = vector.broadcast %228 : vector<8x1xf32> to vector<8x32xf32>
    %237 = arith.subf %220, %236 : vector<8x32xf32>
    %cst_101 = arith.constant 9.99999974E-6 : f32
    %238 = vector.broadcast %cst_101 : f32 to vector<8x1xf32>
    %239 = arith.addf %235, %238 : vector<8x1xf32>
    %240 = math.rsqrt %239 : vector<8x1xf32>
    %241 = vector.broadcast %240 : vector<8x1xf32> to vector<8x32xf32>
    %242 = arith.mulf %237, %241 : vector<8x32xf32>
    %243 = vector.broadcast %222 : vector<1x32xf32> to vector<8x32xf32>
    %244 = arith.mulf %242, %243 : vector<8x32xf32>
    %245 = vector.broadcast %224 : vector<1x32xf32> to vector<8x32xf32>
    %246 = arith.addf %244, %245 : vector<8x32xf32>
    %c0_102 = arith.constant 0 : index
    %c0_103 = arith.constant 0 : index
    %247 = vector.load %arg27[%c0_102, %c0_103] : memref<8x32xf32, #tpu.memory_space<vmem>>, vector<8x32xf32>
    tpu.vector_store %arg27[%c0_102, %c0_103], %246 {strides = array<i32>} : memref<8x32xf32, #tpu.memory_space<vmem>>, vector<8x32xf32>,
    %c1_i32 = arith.constant 1 : i32
    %248 = arith.cmpi eq, %arg1, %c1_i32 : i32
    %249 = arith.extui %248 : i1 to i32
    %c0_i32_104 = arith.constant 0 : i32
    %250 = arith.cmpi ne, %249, %c0_i32_104 : i32
    scf.if %250 {
      %c0_105 = arith.constant 0 : index
      %c0_106 = arith.constant 0 : index
      %251 = vector.load %arg24[%c0_105, %c0_106] : memref<1x32xf32, #tpu.memory_space<vmem>>, vector<1x32xf32>
      %c0_107 = arith.constant 0 : index
      %c0_108 = arith.constant 0 : index
      %252 = vector.load %arg25[%c0_107, %c0_108] : memref<1x32xf32, #tpu.memory_space<vmem>>, vector<1x32xf32>
      %cst_109 = arith.constant dense<0.000000e+00> : vector<8xf32>
      %253 = vector.multi_reduction <add>, %246, %cst_109 [1] : vector<8x32xf32> to vector<8xf32>
      %254 = vector.shape_cast %253 : vector<8xf32> to vector<8x1xf32>
      %cst_110 = arith.constant 3.200000e+01 : f32
      %255 = vector.broadcast %cst_110 : f32 to vector<8x1xf32>
      %256 = arith.divf %254, %255 : vector<8x1xf32>
      %257 = vector.broadcast %256 : vector<8x1xf32> to vector<8x32xf32>
      %258 = arith.subf %246, %257 : vector<8x32xf32>
      %259 = arith.mulf %258, %258 : vector<8x32xf32>
      %cst_111 = arith.constant dense<0.000000e+00> : vector<8xf32>
      %260 = vector.multi_reduction <add>, %259, %cst_111 [1] : vector<8x32xf32> to vector<8xf32>
      %261 = vector.shape_cast %260 : vector<8xf32> to vector<8x1xf32>
      %cst_112 = arith.constant 3.200000e+01 : f32
      %262 = vector.broadcast %cst_112 : f32 to vector<8x1xf32>
      %263 = arith.divf %261, %262 : vector<8x1xf32>
      %264 = vector.broadcast %256 : vector<8x1xf32> to vector<8x32xf32>
      %265 = arith.subf %246, %264 : vector<8x32xf32>
      %cst_113 = arith.constant 9.99999974E-6 : f32
      %266 = vector.broadcast %cst_113 : f32 to vector<8x1xf32>
      %267 = arith.addf %263, %266 : vector<8x1xf32>
      %268 = math.rsqrt %267 : vector<8x1xf32>
      %269 = vector.broadcast %268 : vector<8x1xf32> to vector<8x32xf32>
      %270 = arith.mulf %265, %269 : vector<8x32xf32>
      %271 = vector.broadcast %251 : vector<1x32xf32> to vector<8x32xf32>
      %272 = arith.mulf %270, %271 : vector<8x32xf32>
      %273 = vector.broadcast %252 : vector<1x32xf32> to vector<8x32xf32>
      %274 = arith.addf %272, %273 : vector<8x32xf32>
      %c0_114 = arith.constant 0 : index
      %c0_115 = arith.constant 0 : index
      %c0_116 = arith.constant 0 : index
      %275 = vector.load %arg26[%c0_114, %c0_115, %c0_116] : memref<1x8x32xf32, #tpu.memory_space<vmem>>, vector<1x8x32xf32>
      %276 = vector.shape_cast %275 : vector<1x8x32xf32> to vector<8x32xf32>
      %277 = vector.shape_cast %274 : vector<8x32xf32> to vector<1x8x32xf32>
      tpu.vector_store %arg26[%c0_114, %c0_115, %c0_116], %277 {strides = array<i32>} : memref<1x8x32xf32, #tpu.memory_space<vmem>>, vector<1x8x32xf32>,
    } else {
    }
    return
  }
  func.func @transform_0(%arg0: i32, %arg1: i32) -> (i32, i32, i32) {
    %c0_i32 = arith.constant 0 : i32
    %c0_i32_0 = arith.constant 0 : i32
    %c0_i32_1 = arith.constant 0 : i32
    return %arg0, %c0_i32, %c0_i32_0 : i32, i32, i32
  }
  func.func @transform_1(%arg0: i32, %arg1: i32) -> (i32, i32, i32) {
    %c0_i32 = arith.constant 0 : i32
    %c0_i32_0 = arith.constant 0 : i32
    %c0_i32_1 = arith.constant 0 : i32
    return %arg0, %c0_i32, %c0_i32_0 : i32, i32, i32
  }
  func.func @transform_2(%arg0: i32, %arg1: i32) -> (i32, i32, i32) {
    %c0_i32 = arith.constant 0 : i32
    %c0_i32_0 = arith.constant 0 : i32
    %c0_i32_1 = arith.constant 0 : i32
    return %arg1, %c0_i32, %c0_i32_0 : i32, i32, i32
  }
  func.func @transform_3(%arg0: i32, %arg1: i32) -> (i32, i32, i32) {
    %c0_i32 = arith.constant 0 : i32
    %c0_i32_0 = arith.constant 0 : i32
    %c0_i32_1 = arith.constant 0 : i32
    return %arg1, %c0_i32, %c0_i32_0 : i32, i32, i32
  }
  func.func @transform_4(%arg0: i32, %arg1: i32) -> (i32, i32, i32, i32) {
    %c0_i32 = arith.constant 0 : i32
    %c0_i32_0 = arith.constant 0 : i32
    %c0_i32_1 = arith.constant 0 : i32
    %c0_i32_2 = arith.constant 0 : i32
    return %arg1, %c0_i32, %c0_i32_0, %c0_i32_1 : i32, i32, i32, i32
  }
  func.func @transform_5(%arg0: i32, %arg1: i32) -> (i32, i32, i32) {
    %c0_i32 = arith.constant 0 : i32
    %c0_i32_0 = arith.constant 0 : i32
    %c0_i32_1 = arith.constant 0 : i32
    return %arg1, %c0_i32, %c0_i32_0 : i32, i32, i32
  }
  func.func @transform_6(%arg0: i32, %arg1: i32) -> (i32, i32, i32) {
    %c0_i32 = arith.constant 0 : i32
    %c0_i32_0 = arith.constant 0 : i32
    %c0_i32_1 = arith.constant 0 : i32
    return %arg1, %c0_i32, %c0_i32_0 : i32, i32, i32
  }
  func.func @transform_7(%arg0: i32, %arg1: i32) -> (i32, i32, i32) {
    %c0_i32 = arith.constant 0 : i32
    %c0_i32_0 = arith.constant 0 : i32
    %c0_i32_1 = arith.constant 0 : i32
    return %arg1, %c0_i32, %c0_i32_0 : i32, i32, i32
  }
  func.func @transform_8(%arg0: i32, %arg1: i32) -> (i32, i32, i32) {
    %c0_i32 = arith.constant 0 : i32
    %c0_i32_0 = arith.constant 0 : i32
    %c0_i32_1 = arith.constant 0 : i32
    return %arg1, %c0_i32, %c0_i32_0 : i32, i32, i32
  }
  func.func @transform_9(%arg0: i32, %arg1: i32) -> (i32, i32, i32) {
    %c0_i32 = arith.constant 0 : i32
    %c0_i32_0 = arith.constant 0 : i32
    %c0_i32_1 = arith.constant 0 : i32
    return %arg1, %c0_i32, %c0_i32_0 : i32, i32, i32
  }
  func.func @transform_10(%arg0: i32, %arg1: i32) -> (i32, i32, i32, i32) {
    %c0_i32 = arith.constant 0 : i32
    %c0_i32_0 = arith.constant 0 : i32
    %c0_i32_1 = arith.constant 0 : i32
    %c0_i32_2 = arith.constant 0 : i32
    return %arg1, %c0_i32, %c0_i32_0, %c0_i32_1 : i32, i32, i32, i32
  }
  func.func @transform_11(%arg0: i32, %arg1: i32) -> (i32, i32, i32) {
    %c0_i32 = arith.constant 0 : i32
    %c0_i32_0 = arith.constant 0 : i32
    %c0_i32_1 = arith.constant 0 : i32
    return %arg1, %c0_i32, %c0_i32_0 : i32, i32, i32
  }
  func.func @transform_12(%arg0: i32, %arg1: i32) -> (i32, i32, i32) {
    %c0_i32 = arith.constant 0 : i32
    %c0_i32_0 = arith.constant 0 : i32
    %c0_i32_1 = arith.constant 0 : i32
    return %arg1, %c0_i32, %c0_i32_0 : i32, i32, i32
  }
  func.func @transform_13(%arg0: i32, %arg1: i32) -> (i32, i32, i32) {
    %c0_i32 = arith.constant 0 : i32
    %c0_i32_0 = arith.constant 0 : i32
    %c0_i32_1 = arith.constant 0 : i32
    return %arg1, %c0_i32, %c0_i32_0 : i32, i32, i32
  }
  func.func @transform_14(%arg0: i32, %arg1: i32) -> (i32, i32, i32) {
    %c0_i32 = arith.constant 0 : i32
    %c0_i32_0 = arith.constant 0 : i32
    %c0_i32_1 = arith.constant 0 : i32
    return %arg1, %c0_i32, %c0_i32_0 : i32, i32, i32
  }
  func.func @transform_15(%arg0: i32, %arg1: i32) -> (i32, i32, i32) {
    %c0_i32 = arith.constant 0 : i32
    %c0_i32_0 = arith.constant 0 : i32
    %c0_i32_1 = arith.constant 0 : i32
    return %arg1, %c0_i32, %c0_i32_0 : i32, i32, i32
  }
  func.func @transform_16(%arg0: i32, %arg1: i32) -> (i32, i32, i32) {
    %c0_i32 = arith.constant 0 : i32
    %c0_i32_0 = arith.constant 0 : i32
    %c0_i32_1 = arith.constant 0 : i32
    return %arg1, %c0_i32, %c0_i32_0 : i32, i32, i32
  }
  func.func @transform_17(%arg0: i32, %arg1: i32) -> (i32, i32, i32) {
    %c0_i32 = arith.constant 0 : i32
    %c0_i32_0 = arith.constant 0 : i32
    %c0_i32_1 = arith.constant 0 : i32
    return %arg1, %c0_i32, %c0_i32_0 : i32, i32, i32
  }
  func.func @transform_18(%arg0: i32, %arg1: i32) -> (i32, i32, i32) {
    %c0_i32 = arith.constant 0 : i32
    %c0_i32_0 = arith.constant 0 : i32
    %c0_i32_1 = arith.constant 0 : i32
    return %arg1, %c0_i32, %c0_i32_0 : i32, i32, i32
  }
  func.func @transform_19(%arg0: i32, %arg1: i32) -> (i32, i32, i32) {
    %c0_i32 = arith.constant 0 : i32
    %c0_i32_0 = arith.constant 0 : i32
    %c0_i32_1 = arith.constant 0 : i32
    return %arg1, %c0_i32, %c0_i32_0 : i32, i32, i32
  }
  func.func @transform_20(%arg0: i32, %arg1: i32) -> (i32, i32, i32) {
    %c0_i32 = arith.constant 0 : i32
    %c0_i32_0 = arith.constant 0 : i32
    %c0_i32_1 = arith.constant 0 : i32
    return %arg1, %c0_i32, %c0_i32_0 : i32, i32, i32
  }
  func.func @transform_21(%arg0: i32, %arg1: i32) -> (i32, i32, i32) {
    %c0_i32 = arith.constant 0 : i32
    %c0_i32_0 = arith.constant 0 : i32
    %c0_i32_1 = arith.constant 0 : i32
    return %arg1, %c0_i32, %c0_i32_0 : i32, i32, i32
  }
  func.func @transform_22(%arg0: i32, %arg1: i32) -> (i32, i32) {
    %c0_i32 = arith.constant 0 : i32
    %c0_i32_0 = arith.constant 0 : i32
    %c0_i32_1 = arith.constant 0 : i32
    return %c0_i32, %c0_i32_0 : i32, i32
  }
  func.func @transform_23(%arg0: i32, %arg1: i32) -> (i32, i32) {
    %c0_i32 = arith.constant 0 : i32
    %c0_i32_0 = arith.constant 0 : i32
    %c0_i32_1 = arith.constant 0 : i32
    return %c0_i32, %c0_i32_0 : i32, i32
  }
  func.func @transform_24(%arg0: i32, %arg1: i32) -> (i32, i32, i32) {
    %c0_i32 = arith.constant 0 : i32
    %c0_i32_0 = arith.constant 0 : i32
    %c0_i32_1 = arith.constant 0 : i32
    return %arg0, %c0_i32, %c0_i32_0 : i32, i32, i32
  }
}

</mosaic_0001>

<llo_original>
// kernel: tpu_custom_call.1
$region0: #{tpu_custom_call.1}
  #allocation0 [shape = 'u32[]', space=smem, size = 0x4, offset = 0x4, fixed_abs, tag = 'smem constant byte address 0x4 - core index']
  #allocation1 [shape = 'u32[144,128]{1,0:T(1,128)}', space=vmem, size = 0x12000, scoped, tag = 'internal scratch']
  #allocation2 [shape = 'f32[8,32]{1,0:T(8,128)}', space=vmem, size = 0x1000, scoped, tag = 'scratch operand']
  %s0 = inlined_call_operand.hbm [shape: f32[2,8,32], index: 0, kind: input, shape index: {}]
  %s1 = inlined_call_operand.hbm [shape: f32[2,8,32], index: 1, kind: input, shape index: {}]
  %s2 = inlined_call_operand.vmem [shape: bf16[2,32,96], index: 2, kind: input, shape index: {}]
  %s3 = inlined_call_operand.hbm [shape: f32[2,1,96], index: 3, kind: input, shape index: {}]
  %s4 = inlined_call_operand.vmem [shape: bf16[2,4,8,32], index: 4, kind: input, shape index: {}]
  %s5 = inlined_call_operand.hbm [shape: f32[2,1,32], index: 5, kind: input, shape index: {}]
  %s6 = inlined_call_operand.vmem [shape: bf16[2,32,32], index: 6, kind: input, shape index: {}]
  %s7 = inlined_call_operand.hbm [shape: f32[2,1,32], index: 7, kind: input, shape index: {}]
  %s8 = inlined_call_operand.vmem [shape: bf16[2,32,64], index: 8, kind: input, shape index: {}]
  %s9 = inlined_call_operand.hbm [shape: f32[2,1,64], index: 9, kind: input, shape index: {}]
  %s10 = inlined_call_operand.vmem [shape: bf16[2,4,8,32], index: 10, kind: input, shape index: {}]
  %s11 = inlined_call_operand.hbm [shape: f32[2,1,32], index: 11, kind: input, shape index: {}]
  %s12 = inlined_call_operand.hbm [shape: f32[2,1,32], index: 12, kind: input, shape index: {}]
  %s13 = inlined_call_operand.hbm [shape: f32[2,1,32], index: 13, kind: input, shape index: {}]
  %s14 = inlined_call_operand.hbm [shape: f32[2,1,32], index: 14, kind: input, shape index: {}]
  %s15 = inlined_call_operand.hbm [shape: f32[2,1,32], index: 15, kind: input, shape index: {}]
  %s16 = inlined_call_operand.hbm [shape: f32[2,1,32], index: 16, kind: input, shape index: {}]
  %s17 = inlined_call_operand.hbm [shape: f32[2,1,32], index: 17, kind: input, shape index: {}]
  %s18 = inlined_call_operand.vmem [shape: bf16[2,32,128], index: 18, kind: input, shape index: {}]
  %s19 = inlined_call_operand.hbm [shape: f32[2,1,128], index: 19, kind: input, shape index: {}]
  %s20 = inlined_call_operand.vmem [shape: bf16[2,128,32], index: 20, kind: input, shape index: {}]
  %s21 = inlined_call_operand.vmem [shape: f32[2,1,32], index: 21, kind: input, shape index: {}]
  %s22 = inlined_call_operand.vmem [shape: f32[1,32], index: 22, kind: input, shape index: {}]
  %s23 = inlined_call_operand.vmem [shape: f32[1,32], index: 23, kind: input, shape index: {}]
  %s24 = inlined_call_operand.hbm [shape: f32[2,8,32], index: 24, kind: output, shape index: {}]
  %s25 = sld [smem:[#allocation0]]
  $region193: #{tpu_custom_call.1} parent=0
    _
  %s27 = ssub.s32 1, %s25
  %s28 = scalar_select 0, %s27, %s25
  $region1: #{tpu_custom_call.1} parent=0
    #allocation3 [shape = 'u8[8192]{0}', space=vmem, size = 0x2000, scoped, tag = 'input window, operand 0']
    #allocation4 [shape = 's32[2]{0}', space=sflag, size = 0x8, scoped, tag = 'scoped memory for tpu_custom_call.1']
    #allocation5 [shape = 's32[2]{0}', space=sflag, size = 0x8, scoped, tag = 'scoped memory for tpu_custom_call.1']
    #allocation6 [shape = 'u8[8192]{0}', space=vmem, size = 0x2000, scoped, tag = 'input window, operand 1']
    #allocation7 [shape = 's32[2]{0}', space=sflag, size = 0x8, scoped, tag = 'scoped memory for tpu_custom_call.1']
    #allocation8 [shape = 'u8[1024]{0}', space=vmem, size = 0x400, scoped, tag = 'input window, operand 3']
    #allocation9 [shape = 'u8[1024]{0}', space=vmem, size = 0x400, scoped, tag = 'input window, operand 5']
    #allocation10 [shape = 's32[2]{0}', space=sflag, size = 0x8, scoped, tag = 'scoped memory for tpu_custom_call.1']
    #allocation11 [shape = 'u8[1024]{0}', space=vmem, size = 0x400, scoped, tag = 'input window, operand 7']
    #allocation12 [shape = 'u8[1024]{0}', space=vmem, size = 0x400, scoped, tag = 'input window, operand 9']
    #allocation13 [shape = 's32[2]{0}', space=sflag, size = 0x8, scoped, tag = 'scoped memory for tpu_custom_call.1']
    #allocation14 [shape = 'u8[1024]{0}', space=vmem, size = 0x400, scoped, tag = 'input window, operand 11']
    #allocation15 [shape = 'u8[1024]{0}', space=vmem, size = 0x400, scoped, tag = 'input window, operand 12']
    #allocation16 [shape = 's32[2]{0}', space=sflag, size = 0x8, scoped, tag = 'scoped memory for tpu_custom_call.1']
    #allocation17 [shape = 'u8[1024]{0}', space=vmem, size = 0x400, scoped, tag = 'input window, operand 13']
    #allocation18 [shape = 'u8[1024]{0}', space=vmem, size = 0x400, scoped, tag = 'input window, operand 14']
    #allocation19 [shape = 's32[2]{0}', space=sflag, size = 0x8, scoped, tag = 'scoped memory for tpu_custom_call.1']
    #allocation20 [shape = 'u8[1024]{0}', space=vmem, size = 0x400, scoped, tag = 'input window, operand 15']
    #allocation21 [shape = 'u8[1024]{0}', space=vmem, size = 0x400, scoped, tag = 'input window, operand 16']
    #allocation22 [shape = 's32[2]{0}', space=sflag, size = 0x8, scoped, tag = 'scoped memory for tpu_custom_call.1']
    #allocation23 [shape = 'u8[1024]{0}', space=vmem, size = 0x400, scoped, tag = 'input window, operand 17']
    #allocation24 [shape = 'u8[1024]{0}', space=vmem, size = 0x400, scoped, tag = 'input window, operand 19']
    #allocation25 [shape = 's32[2]{0}', space=sflag, size = 0x8, scoped, tag = 'scoped memory for tpu_custom_call.1']
    #allocation26 [shape = 'u8[8192]{0}', space=vmem, size = 0x2000, scoped, tag = 'output window, operand 0']
    %29 = vsyncpa [#allocation4], 0
    %s30 = scalar_lea.sflag [#allocation4], 1
    %31 = vsyncpa %s30, 0
    %32 = vsyncpa [#allocation7], 0
    %s33 = scalar_lea.sflag [#allocation7], 1
    %34 = vsyncpa %s33, 0
    %35 = vsyncpa [#allocation10], 0
    %s36 = scalar_lea.sflag [#allocation10], 1
    %37 = vsyncpa %s36, 0
    %38 = vsyncpa [#allocation13], 0
    %s39 = scalar_lea.sflag [#allocation13], 1
    %40 = vsyncpa %s39, 0
    %41 = vsyncpa [#allocation16], 0
    %s42 = scalar_lea.sflag [#allocation16], 1
    %43 = vsyncpa %s42, 0
    %44 = vsyncpa [#allocation19], 0
    %s45 = scalar_lea.sflag [#allocation19], 1
    %46 = vsyncpa %s45, 0
    %47 = vsyncpa [#allocation22], 0
    %s48 = scalar_lea.sflag [#allocation22], 1
    %49 = vsyncpa %s48, 0
    %50 = vsyncpa [#allocation25], 0
    %s51 = scalar_lea.sflag [#allocation25], 1
    %52 = vsyncpa %s51, 0
    %53 = vsyncpa [#allocation5], 0
    %s54 = scalar_lea.sflag [#allocation5], 1
    %55 = vsyncpa %s54, 0
    loop: start=0, step=1, limit=6
    $region2: #{tpu_custom_call.1} parent=1 // loop_pre_header
      _
    $region3: #{tpu_custom_call.1} parent=1 // loop_header
      %s57 = sphi 0, %s61
      %p58 = scmp.ge.s32.totalorder %s57, 6
      %s64 = sphi 0, %s76
      %s65 = sphi 0, %s72
      %s66 = sphi 0, %s64
      %s67 = sphi 0, %s65
      %s68 = sphi 0, %s66
      %s69 = sphi 0, %s67
      %s79 = sphi 0, %s81
      %s82 = sphi 0, %s79
      %s83 = sphi 0, %s82
      %s99 = sphi 0, %s83
      %s105 = sphi 0, %s107
      %s108 = sphi 0, %s105
      %s109 = sphi 0, %s108
      %s125 = sphi 0, %s109
      %s131 = sphi 0, %s133
      %s134 = sphi 0, %s131
      %s135 = sphi 0, %s134
      %s151 = sphi 0, %s135
      %s157 = sphi 0, %s159
      %s160 = sphi 0, %s157
      %s161 = sphi 0, %s160
      %s177 = sphi 0, %s161
      %s183 = sphi 0, %s185
      %s186 = sphi 0, %s183
      %s187 = sphi 0, %s186
      %s203 = sphi 0, %s187
      %s209 = sphi 0, %s211
      %s212 = sphi 0, %s209
      %s213 = sphi 0, %s212
      %s229 = sphi 0, %s213
      %s235 = sphi 0, %s237
      %s238 = sphi 0, %s235
      %s239 = sphi 0, %s238
      %s255 = sphi 0, %s239
      %s261 = sphi 0, %s263
      %s264 = sphi 0, %s261
      %s265 = sphi 0, %s264
      %s281 = sphi 0, %s265
      %s287 = sphi 0, %s289
      %s290 = sphi 0, %s287
      %s291 = sphi 0, %s290
      %s307 = sphi 0, %s291
      %s313 = sphi 0, %s315
      %s316 = sphi 0, %s313
      %s317 = sphi 0, %s316
      %s333 = sphi 0, %s317
      %s339 = sphi 0, %s341
      %s342 = sphi 0, %s339
      %s343 = sphi 0, %s342
      %s359 = sphi 0, %s343
      %s365 = sphi 0, %s367
      %s368 = sphi 0, %s365
      %s369 = sphi 0, %s368
      %s385 = sphi 0, %s369
      %s391 = sphi 0, %s393
      %s394 = sphi 0, %s391
      %s395 = sphi 0, %s394
      %s411 = sphi 0, %s395
      %s417 = sphi 0, %s419
      %s420 = sphi 0, %s417
      %s421 = sphi 0, %s420
      %s437 = sphi 0, %s421
      %s443 = sphi 0, %s445
      %s446 = sphi 0, %s443
      %s447 = sphi 0, %s446
      %s463 = sphi 0, %s447
      %s469 = sphi 0, %s471
      %s472 = sphi 0, %s469
      %s473 = sphi 0, %s472
      %s489 = sphi 0, %s473
      %s495 = sphi 0, %s497
      %s498 = sphi 0, %s495
      %s499 = sphi 0, %s498
      %s515 = sphi 0, %s499
      %s521 = sphi 0, %s523
      %s524 = sphi 0, %s521
      %s525 = sphi 0, %s524
      %s541 = sphi 0, %s525
      %s547 = sphi 0, %s549
      %s550 = sphi 0, %s547
      %s551 = sphi 0, %s550
      %s567 = sphi 0, %s551
      %s573 = sphi 0, %s575
      %s576 = sphi 0, %s573
      %s577 = sphi 0, %s576
      %s593 = sphi 0, %s577
      %s599 = sphi 0, %s601
      %s602 = sphi 0, %s599
      %s603 = sphi 0, %s602
      %s619 = sphi 0, %s603
      %s625 = sphi 0, %s627
      %s628 = sphi 0, %s625
      %s629 = sphi 0, %s628
      %s645 = sphi 0, %s629
      %s649 = sphi 0, %s649
      %s651 = sphi 0, %s649
      %s652 = sphi 0, %s651
      %s666 = sphi 0, %s652
      %s670 = sphi 0, %s670
      %s672 = sphi 0, %s670
      %s673 = sphi 0, %s672
      %s687 = sphi 0, %s673
      %s693 = sphi 0, %s695
      %s696 = sphi 0, %s693
      %s697 = sphi 0, %s696
      %s713 = sphi 0, %s697
    $region4: #{tpu_custom_call.1} parent=1 // loop_header_branch
      %60 = sbr.rel (%p58) target = $region8
    $region5: #{tpu_custom_call.1} parent=1 // loop_body
      %s62 = ssub.s32 %s57, 1
      %s63 = ssub.s32 %s57, 2
      %s70 = sadd.s32 1, %s65
      %p71 = scmp.ge.s32.totalorder %s70, 2
      %s72 = scalar_select %p71, 0, %s70
      %s73 = sadd.s32 1, %s64
      %s74 = scalar_select %p71, %s73, %s64
      %p75 = scmp.ge.s32.totalorder %s74, 2
      %s76 = scalar_select %p75, 0, %s74
      %s77 = ssub.s32 %s64, %s76
      %p78 = scmp.eq.s32.totalorder %s77, 0
      %s80 = sadd.s32 %s79, 1
      %s81 = scalar_select %p78, %s79, %s80
      %p84 = pneg %p78
      %p85 = scmp.eq.s32.totalorder %s57, 3
      %p86 = por %p84, %p85
      %p87 = scmp.ne.s32.totalorder %s79, %s82
      %p88 = scmp.eq.s32.totalorder %s57, 0
      %p89 = por %p87, %p88
      %p90 = scmp.ne.s32.totalorder %s79, %s82
      %p91 = scmp.eq.s32.totalorder %s62, 3
      %p92 = por %p90, %p91
      %p93 = scmp.ne.s32.totalorder %s82, %s83
      %p94 = scmp.eq.s32.totalorder %s62, 0
      %p95 = por %p93, %p94
      %p96 = scmp.ne.s32.totalorder %s82, %s83
      %p97 = scmp.eq.s32.totalorder %s63, 3
      %p98 = por %p96, %p97
      %p100 = scmp.ne.s32.totalorder %s83, %s99
      %p101 = scmp.eq.s32.totalorder %s63, 0
      %p102 = por %p100, %p101
      %s103 = ssub.s32 %s64, %s76
      %p104 = scmp.eq.s32.totalorder %s103, 0
      %s106 = sadd.s32 %s105, 1
      %s107 = scalar_select %p104, %s105, %s106
      %p110 = pneg %p104
      %p111 = scmp.eq.s32.totalorder %s57, 3
      %p112 = por %p110, %p111
      %p113 = scmp.ne.s32.totalorder %s105, %s108
      %p114 = scmp.eq.s32.totalorder %s57, 0
      %p115 = por %p113, %p114
      %p116 = scmp.ne.s32.totalorder %s105, %s108
      %p117 = scmp.eq.s32.totalorder %s62, 3
      %p118 = por %p116, %p117
      %p119 = scmp.ne.s32.totalorder %s108, %s109
      %p120 = scmp.eq.s32.totalorder %s62, 0
      %p121 = por %p119, %p120
      %p122 = scmp.ne.s32.totalorder %s108, %s109
      %p123 = scmp.eq.s32.totalorder %s63, 3
      %p124 = por %p122, %p123
      %p126 = scmp.ne.s32.totalorder %s109, %s125
      %p127 = scmp.eq.s32.totalorder %s63, 0
      %p128 = por %p126, %p127
      %s129 = ssub.s32 %s65, %s72
      %p130 = scmp.eq.s32.totalorder %s129, 0
      %s132 = sadd.s32 %s131, 1
      %s133 = scalar_select %p130, %s131, %s132
      %p136 = pneg %p130
      %p137 = scmp.eq.s32.totalorder %s57, 3
      %p138 = por %p136, %p137
      %p139 = scmp.ne.s32.totalorder %s131, %s134
      %p140 = scmp.eq.s32.totalorder %s57, 0
      %p141 = por %p139, %p140
      %p142 = scmp.ne.s32.totalorder %s131, %s134
      %p143 = scmp.eq.s32.totalorder %s62, 3
      %p144 = por %p142, %p143
      %p145 = scmp.ne.s32.totalorder %s134, %s135
      %p146 = scmp.eq.s32.totalorder %s62, 0
      %p147 = por %p145, %p146
      %p148 = scmp.ne.s32.totalorder %s134, %s135
      %p149 = scmp.eq.s32.totalorder %s63, 3
      %p150 = por %p148, %p149
      %p152 = scmp.ne.s32.totalorder %s135, %s151
      %p153 = scmp.eq.s32.totalorder %s63, 0
      %p154 = por %p152, %p153
      %s155 = ssub.s32 %s65, %s72
      %p156 = scmp.eq.s32.totalorder %s155, 0
      %s158 = sadd.s32 %s157, 1
      %s159 = scalar_select %p156, %s157, %s158
      %p162 = pneg %p156
      %p163 = scmp.eq.s32.totalorder %s57, 3
      %p164 = por %p162, %p163
      %p165 = scmp.ne.s32.totalorder %s157, %s160
      %p166 = scmp.eq.s32.totalorder %s57, 0
      %p167 = por %p165, %p166
      %p168 = scmp.ne.s32.totalorder %s157, %s160
      %p169 = scmp.eq.s32.totalorder %s62, 3
      %p170 = por %p168, %p169
      %p171 = scmp.ne.s32.totalorder %s160, %s161
      %p172 = scmp.eq.s32.totalorder %s62, 0
      %p173 = por %p171, %p172
      %p174 = scmp.ne.s32.totalorder %s160, %s161
      %p175 = scmp.eq.s32.totalorder %s63, 3
      %p176 = por %p174, %p175
      %p178 = scmp.ne.s32.totalorder %s161, %s177
      %p179 = scmp.eq.s32.totalorder %s63, 0
      %p180 = por %p178, %p179
      %s181 = ssub.s32 %s65, %s72
      %p182 = scmp.eq.s32.totalorder %s181, 0
      %s184 = sadd.s32 %s183, 1
      %s185 = scalar_select %p182, %s183, %s184
      %p188 = pneg %p182
      %p189 = scmp.eq.s32.totalorder %s57, 3
      %p190 = por %p188, %p189
      %p191 = scmp.ne.s32.totalorder %s183, %s186
      %p192 = scmp.eq.s32.totalorder %s57, 0
      %p193 = por %p191, %p192
      %p194 = scmp.ne.s32.totalorder %s183, %s186
      %p195 = scmp.eq.s32.totalorder %s62, 3
      %p196 = por %p194, %p195
      %p197 = scmp.ne.s32.totalorder %s186, %s187
      %p198 = scmp.eq.s32.totalorder %s62, 0
      %p199 = por %p197, %p198
      %p200 = scmp.ne.s32.totalorder %s186, %s187
      %p201 = scmp.eq.s32.totalorder %s63, 3
      %p202 = por %p200, %p201
      %p204 = scmp.ne.s32.totalorder %s187, %s203
      %p205 = scmp.eq.s32.totalorder %s63, 0
      %p206 = por %p204, %p205
      %s207 = ssub.s32 %s65, %s72
      %p208 = scmp.eq.s32.totalorder %s207, 0
      %s210 = sadd.s32 %s209, 1
      %s211 = scalar_select %p208, %s209, %s210
      %p214 = pneg %p208
      %p215 = scmp.eq.s32.totalorder %s57, 3
      %p216 = por %p214, %p215
      %p217 = scmp.ne.s32.totalorder %s209, %s212
      %p218 = scmp.eq.s32.totalorder %s57, 0
      %p219 = por %p217, %p218
      %p220 = scmp.ne.s32.totalorder %s209, %s212
      %p221 = scmp.eq.s32.totalorder %s62, 3
      %p222 = por %p220, %p221
      %p223 = scmp.ne.s32.totalorder %s212, %s213
      %p224 = scmp.eq.s32.totalorder %s62, 0
      %p225 = por %p223, %p224
      %p226 = scmp.ne.s32.totalorder %s212, %s213
      %p227 = scmp.eq.s32.totalorder %s63, 3
      %p228 = por %p226, %p227
      %p230 = scmp.ne.s32.totalorder %s213, %s229
      %p231 = scmp.eq.s32.totalorder %s63, 0
      %p232 = por %p230, %p231
      %s233 = ssub.s32 %s65, %s72
      %p234 = scmp.eq.s32.totalorder %s233, 0
      %s236 = sadd.s32 %s235, 1
      %s237 = scalar_select %p234, %s235, %s236
      %p240 = pneg %p234
      %p241 = scmp.eq.s32.totalorder %s57, 3
      %p242 = por %p240, %p241
      %p243 = scmp.ne.s32.totalorder %s235, %s238
      %p244 = scmp.eq.s32.totalorder %s57, 0
      %p245 = por %p243, %p244
      %p246 = scmp.ne.s32.totalorder %s235, %s238
      %p247 = scmp.eq.s32.totalorder %s62, 3
      %p248 = por %p246, %p247
      %p249 = scmp.ne.s32.totalorder %s238, %s239
      %p250 = scmp.eq.s32.totalorder %s62, 0
      %p251 = por %p249, %p250
      %p252 = scmp.ne.s32.totalorder %s238, %s239
      %p253 = scmp.eq.s32.totalorder %s63, 3
      %p254 = por %p252, %p253
      %p256 = scmp.ne.s32.totalorder %s239, %s255
      %p257 = scmp.eq.s32.totalorder %s63, 0
      %p258 = por %p256, %p257
      %s259 = ssub.s32 %s65, %s72
      %p260 = scmp.eq.s32.totalorder %s259, 0
      %s262 = sadd.s32 %s261, 1
      %s263 = scalar_select %p260, %s261, %s262
      %p266 = pneg %p260
      %p267 = scmp.eq.s32.totalorder %s57, 3
      %p268 = por %p266, %p267
      %p269 = scmp.ne.s32.totalorder %s261, %s264
      %p270 = scmp.eq.s32.totalorder %s57, 0
      %p271 = por %p269, %p270
      %p272 = scmp.ne.s32.totalorder %s261, %s264
      %p273 = scmp.eq.s32.totalorder %s62, 3
      %p274 = por %p272, %p273
      %p275 = scmp.ne.s32.totalorder %s264, %s265
      %p276 = scmp.eq.s32.totalorder %s62, 0
      %p277 = por %p275, %p276
      %p278 = scmp.ne.s32.totalorder %s264, %s265
      %p279 = scmp.eq.s32.totalorder %s63, 3
      %p280 = por %p278, %p279
      %p282 = scmp.ne.s32.totalorder %s265, %s281
      %p283 = scmp.eq.s32.totalorder %s63, 0
      %p284 = por %p282, %p283
      %s285 = ssub.s32 %s65, %s72
      %p286 = scmp.eq.s32.totalorder %s285, 0
      %s288 = sadd.s32 %s287, 1
      %s289 = scalar_select %p286, %s287, %s288
      %p292 = pneg %p286
      %p293 = scmp.eq.s32.totalorder %s57, 3
      %p294 = por %p292, %p293
      %p295 = scmp.ne.s32.totalorder %s287, %s290
      %p296 = scmp.eq.s32.totalorder %s57, 0
      %p297 = por %p295, %p296
      %p298 = scmp.ne.s32.totalorder %s287, %s290
      %p299 = scmp.eq.s32.totalorder %s62, 3
      %p300 = por %p298, %p299
      %p301 = scmp.ne.s32.totalorder %s290, %s291
      %p302 = scmp.eq.s32.totalorder %s62, 0
      %p303 = por %p301, %p302
      %p304 = scmp.ne.s32.totalorder %s290, %s291
      %p305 = scmp.eq.s32.totalorder %s63, 3
      %p306 = por %p304, %p305
      %p308 = scmp.ne.s32.totalorder %s291, %s307
      %p309 = scmp.eq.s32.totalorder %s63, 0
      %p310 = por %p308, %p309
      %s311 = ssub.s32 %s65, %s72
      %p312 = scmp.eq.s32.totalorder %s311, 0
      %s314 = sadd.s32 %s313, 1
      %s315 = scalar_select %p312, %s313, %s314
      %p318 = pneg %p312
      %p319 = scmp.eq.s32.totalorder %s57, 3
      %p320 = por %p318, %p319
      %p321 = scmp.ne.s32.totalorder %s313, %s316
      %p322 = scmp.eq.s32.totalorder %s57, 0
      %p323 = por %p321, %p322
      %p324 = scmp.ne.s32.totalorder %s313, %s316
      %p325 = scmp.eq.s32.totalorder %s62, 3
      %p326 = por %p324, %p325
      %p327 = scmp.ne.s32.totalorder %s316, %s317
      %p328 = scmp.eq.s32.totalorder %s62, 0
      %p329 = por %p327, %p328
      %p330 = scmp.ne.s32.totalorder %s316, %s317
      %p331 = scmp.eq.s32.totalorder %s63, 3
      %p332 = por %p330, %p331
      %p334 = scmp.ne.s32.totalorder %s317, %s333
      %p335 = scmp.eq.s32.totalorder %s63, 0
      %p336 = por %p334, %p335
      %s337 = ssub.s32 %s65, %s72
      %p338 = scmp.eq.s32.totalorder %s337, 0
      %s340 = sadd.s32 %s339, 1
      %s341 = scalar_select %p338, %s339, %s340
      %p344 = pneg %p338
      %p345 = scmp.eq.s32.totalorder %s57, 3
      %p346 = por %p344, %p345
      %p347 = scmp.ne.s32.totalorder %s339, %s342
      %p348 = scmp.eq.s32.totalorder %s57, 0
      %p349 = por %p347, %p348
      %p350 = scmp.ne.s32.totalorder %s339, %s342
      %p351 = scmp.eq.s32.totalorder %s62, 3
      %p352 = por %p350, %p351
      %p353 = scmp.ne.s32.totalorder %s342, %s343
      %p354 = scmp.eq.s32.totalorder %s62, 0
      %p355 = por %p353, %p354
      %p356 = scmp.ne.s32.totalorder %s342, %s343
      %p357 = scmp.eq.s32.totalorder %s63, 3
      %p358 = por %p356, %p357
      %p360 = scmp.ne.s32.totalorder %s343, %s359
      %p361 = scmp.eq.s32.totalorder %s63, 0
      %p362 = por %p360, %p361
      %s363 = ssub.s32 %s65, %s72
      %p364 = scmp.eq.s32.totalorder %s363, 0
      %s366 = sadd.s32 %s365, 1
      %s367 = scalar_select %p364, %s365, %s366
      %p370 = pneg %p364
      %p371 = scmp.eq.s32.totalorder %s57, 3
      %p372 = por %p370, %p371
      %p373 = scmp.ne.s32.totalorder %s365, %s368
      %p374 = scmp.eq.s32.totalorder %s57, 0
      %p375 = por %p373, %p374
      %p376 = scmp.ne.s32.totalorder %s365, %s368
      %p377 = scmp.eq.s32.totalorder %s62, 3
      %p378 = por %p376, %p377
      %p379 = scmp.ne.s32.totalorder %s368, %s369
      %p380 = scmp.eq.s32.totalorder %s62, 0
      %p381 = por %p379, %p380
      %p382 = scmp.ne.s32.totalorder %s368, %s369
      %p383 = scmp.eq.s32.totalorder %s63, 3
      %p384 = por %p382, %p383
      %p386 = scmp.ne.s32.totalorder %s369, %s385
      %p387 = scmp.eq.s32.totalorder %s63, 0
      %p388 = por %p386, %p387
      %s389 = ssub.s32 %s65, %s72
      %p390 = scmp.eq.s32.totalorder %s389, 0
      %s392 = sadd.s32 %s391, 1
      %s393 = scalar_select %p390, %s391, %s392
      %p396 = pneg %p390
      %p397 = scmp.eq.s32.totalorder %s57, 3
      %p398 = por %p396, %p397
      %p399 = scmp.ne.s32.totalorder %s391, %s394
      %p400 = scmp.eq.s32.totalorder %s57, 0
      %p401 = por %p399, %p400
      %p402 = scmp.ne.s32.totalorder %s391, %s394
      %p403 = scmp.eq.s32.totalorder %s62, 3
      %p404 = por %p402, %p403
      %p405 = scmp.ne.s32.totalorder %s394, %s395
      %p406 = scmp.eq.s32.totalorder %s62, 0
      %p407 = por %p405, %p406
      %p408 = scmp.ne.s32.totalorder %s394, %s395
      %p409 = scmp.eq.s32.totalorder %s63, 3
      %p410 = por %p408, %p409
      %p412 = scmp.ne.s32.totalorder %s395, %s411
      %p413 = scmp.eq.s32.totalorder %s63, 0
      %p414 = por %p412, %p413
      %s415 = ssub.s32 %s65, %s72
      %p416 = scmp.eq.s32.totalorder %s415, 0
      %s418 = sadd.s32 %s417, 1
      %s419 = scalar_select %p416, %s417, %s418
      %p422 = pneg %p416
      %p423 = scmp.eq.s32.totalorder %s57, 3
      %p424 = por %p422, %p423
      %p425 = scmp.ne.s32.totalorder %s417, %s420
      %p426 = scmp.eq.s32.totalorder %s57, 0
      %p427 = por %p425, %p426
      %p428 = scmp.ne.s32.totalorder %s417, %s420
      %p429 = scmp.eq.s32.totalorder %s62, 3
      %p430 = por %p428, %p429
      %p431 = scmp.ne.s32.totalorder %s420, %s421
      %p432 = scmp.eq.s32.totalorder %s62, 0
      %p433 = por %p431, %p432
      %p434 = scmp.ne.s32.totalorder %s420, %s421
      %p435 = scmp.eq.s32.totalorder %s63, 3
      %p436 = por %p434, %p435
      %p438 = scmp.ne.s32.totalorder %s421, %s437
      %p439 = scmp.eq.s32.totalorder %s63, 0
      %p440 = por %p438, %p439
      %s441 = ssub.s32 %s65, %s72
      %p442 = scmp.eq.s32.totalorder %s441, 0
      %s444 = sadd.s32 %s443, 1
      %s445 = scalar_select %p442, %s443, %s444
      %p448 = pneg %p442
      %p449 = scmp.eq.s32.totalorder %s57, 3
      %p450 = por %p448, %p449
      %p451 = scmp.ne.s32.totalorder %s443, %s446
      %p452 = scmp.eq.s32.totalorder %s57, 0
      %p453 = por %p451, %p452
      %p454 = scmp.ne.s32.totalorder %s443, %s446
      %p455 = scmp.eq.s32.totalorder %s62, 3
      %p456 = por %p454, %p455
      %p457 = scmp.ne.s32.totalorder %s446, %s447
      %p458 = scmp.eq.s32.totalorder %s62, 0
      %p459 = por %p457, %p458
      %p460 = scmp.ne.s32.totalorder %s446, %s447
      %p461 = scmp.eq.s32.totalorder %s63, 3
      %p462 = por %p460, %p461
      %p464 = scmp.ne.s32.totalorder %s447, %s463
      %p465 = scmp.eq.s32.totalorder %s63, 0
      %p466 = por %p464, %p465
      %s467 = ssub.s32 %s65, %s72
      %p468 = scmp.eq.s32.totalorder %s467, 0
      %s470 = sadd.s32 %s469, 1
      %s471 = scalar_select %p468, %s469, %s470
      %p474 = pneg %p468
      %p475 = scmp.eq.s32.totalorder %s57, 3
      %p476 = por %p474, %p475
      %p477 = scmp.ne.s32.totalorder %s469, %s472
      %p478 = scmp.eq.s32.totalorder %s57, 0
      %p479 = por %p477, %p478
      %p480 = scmp.ne.s32.totalorder %s469, %s472
      %p481 = scmp.eq.s32.totalorder %s62, 3
      %p482 = por %p480, %p481
      %p483 = scmp.ne.s32.totalorder %s472, %s473
      %p484 = scmp.eq.s32.totalorder %s62, 0
      %p485 = por %p483, %p484
      %p486 = scmp.ne.s32.totalorder %s472, %s473
      %p487 = scmp.eq.s32.totalorder %s63, 3
      %p488 = por %p486, %p487
      %p490 = scmp.ne.s32.totalorder %s473, %s489
      %p491 = scmp.eq.s32.totalorder %s63, 0
      %p492 = por %p490, %p491
      %s493 = ssub.s32 %s65, %s72
      %p494 = scmp.eq.s32.totalorder %s493, 0
      %s496 = sadd.s32 %s495, 1
      %s497 = scalar_select %p494, %s495, %s496
      %p500 = pneg %p494
      %p501 = scmp.eq.s32.totalorder %s57, 3
      %p502 = por %p500, %p501
      %p503 = scmp.ne.s32.totalorder %s495, %s498
      %p504 = scmp.eq.s32.totalorder %s57, 0
      %p505 = por %p503, %p504
      %p506 = scmp.ne.s32.totalorder %s495, %s498
      %p507 = scmp.eq.s32.totalorder %s62, 3
      %p508 = por %p506, %p507
      %p509 = scmp.ne.s32.totalorder %s498, %s499
      %p510 = scmp.eq.s32.totalorder %s62, 0
      %p511 = por %p509, %p510
      %p512 = scmp.ne.s32.totalorder %s498, %s499
      %p513 = scmp.eq.s32.totalorder %s63, 3
      %p514 = por %p512, %p513
      %p516 = scmp.ne.s32.totalorder %s499, %s515
      %p517 = scmp.eq.s32.totalorder %s63, 0
      %p518 = por %p516, %p517
      %s519 = ssub.s32 %s65, %s72
      %p520 = scmp.eq.s32.totalorder %s519, 0
      %s522 = sadd.s32 %s521, 1
      %s523 = scalar_select %p520, %s521, %s522
      %p526 = pneg %p520
      %p527 = scmp.eq.s32.totalorder %s57, 3
      %p528 = por %p526, %p527
      %p529 = scmp.ne.s32.totalorder %s521, %s524
      %p530 = scmp.eq.s32.totalorder %s57, 0
      %p531 = por %p529, %p530
      %p532 = scmp.ne.s32.totalorder %s521, %s524
      %p533 = scmp.eq.s32.totalorder %s62, 3
      %p534 = por %p532, %p533
      %p535 = scmp.ne.s32.totalorder %s524, %s525
      %p536 = scmp.eq.s32.totalorder %s62, 0
      %p537 = por %p535, %p536
      %p538 = scmp.ne.s32.totalorder %s524, %s525
      %p539 = scmp.eq.s32.totalorder %s63, 3
      %p540 = por %p538, %p539
      %p542 = scmp.ne.s32.totalorder %s525, %s541
      %p543 = scmp.eq.s32.totalorder %s63, 0
      %p544 = por %p542, %p543
      %s545 = ssub.s32 %s65, %s72
      %p546 = scmp.eq.s32.totalorder %s545, 0
      %s548 = sadd.s32 %s547, 1
      %s549 = scalar_select %p546, %s547, %s548
      %p552 = pneg %p546
      %p553 = scmp.eq.s32.totalorder %s57, 3
      %p554 = por %p552, %p553
      %p555 = scmp.ne.s32.totalorder %s547, %s550
      %p556 = scmp.eq.s32.totalorder %s57, 0
      %p557 = por %p555, %p556
      %p558 = scmp.ne.s32.totalorder %s547, %s550
      %p559 = scmp.eq.s32.totalorder %s62, 3
      %p560 = por %p558, %p559
      %p561 = scmp.ne.s32.totalorder %s550, %s551
      %p562 = scmp.eq.s32.totalorder %s62, 0
      %p563 = por %p561, %p562
      %p564 = scmp.ne.s32.totalorder %s550, %s551
      %p565 = scmp.eq.s32.totalorder %s63, 3
      %p566 = por %p564, %p565
      %p568 = scmp.ne.s32.totalorder %s551, %s567
      %p569 = scmp.eq.s32.totalorder %s63, 0
      %p570 = por %p568, %p569
      %s571 = ssub.s32 %s65, %s72
      %p572 = scmp.eq.s32.totalorder %s571, 0
      %s574 = sadd.s32 %s573, 1
      %s575 = scalar_select %p572, %s573, %s574
      %p578 = pneg %p572
      %p579 = scmp.eq.s32.totalorder %s57, 3
      %p580 = por %p578, %p579
      %p581 = scmp.ne.s32.totalorder %s573, %s576
      %p582 = scmp.eq.s32.totalorder %s57, 0
      %p583 = por %p581, %p582
      %p584 = scmp.ne.s32.totalorder %s573, %s576
      %p585 = scmp.eq.s32.totalorder %s62, 3
      %p586 = por %p584, %p585
      %p587 = scmp.ne.s32.totalorder %s576, %s577
      %p588 = scmp.eq.s32.totalorder %s62, 0
      %p589 = por %p587, %p588
      %p590 = scmp.ne.s32.totalorder %s576, %s577
      %p591 = scmp.eq.s32.totalorder %s63, 3
      %p592 = por %p590, %p591
      %p594 = scmp.ne.s32.totalorder %s577, %s593
      %p595 = scmp.eq.s32.totalorder %s63, 0
      %p596 = por %p594, %p595
      %s597 = ssub.s32 %s65, %s72
      %p598 = scmp.eq.s32.totalorder %s597, 0
      %s600 = sadd.s32 %s599, 1
      %s601 = scalar_select %p598, %s599, %s600
      %p604 = pneg %p598
      %p605 = scmp.eq.s32.totalorder %s57, 3
      %p606 = por %p604, %p605
      %p607 = scmp.ne.s32.totalorder %s599, %s602
      %p608 = scmp.eq.s32.totalorder %s57, 0
      %p609 = por %p607, %p608
      %p610 = scmp.ne.s32.totalorder %s599, %s602
      %p611 = scmp.eq.s32.totalorder %s62, 3
      %p612 = por %p610, %p611
      %p613 = scmp.ne.s32.totalorder %s602, %s603
      %p614 = scmp.eq.s32.totalorder %s62, 0
      %p615 = por %p613, %p614
      %p616 = scmp.ne.s32.totalorder %s602, %s603
      %p617 = scmp.eq.s32.totalorder %s63, 3
      %p618 = por %p616, %p617
      %p620 = scmp.ne.s32.totalorder %s603, %s619
      %p621 = scmp.eq.s32.totalorder %s63, 0
      %p622 = por %p620, %p621
      %s623 = ssub.s32 %s65, %s72
      %p624 = scmp.eq.s32.totalorder %s623, 0
      %s626 = sadd.s32 %s625, 1
      %s627 = scalar_select %p624, %s625, %s626
      %p630 = pneg %p624
      %p631 = scmp.eq.s32.totalorder %s57, 3
      %p632 = por %p630, %p631
      %p633 = scmp.ne.s32.totalorder %s625, %s628
      %p634 = scmp.eq.s32.totalorder %s57, 0
      %p635 = por %p633, %p634
      %p636 = scmp.ne.s32.totalorder %s625, %s628
      %p637 = scmp.eq.s32.totalorder %s62, 3
      %p638 = por %p636, %p637
      %p639 = scmp.ne.s32.totalorder %s628, %s629
      %p640 = scmp.eq.s32.totalorder %s62, 0
      %p641 = por %p639, %p640
      %p642 = scmp.ne.s32.totalorder %s628, %s629
      %p643 = scmp.eq.s32.totalorder %s63, 3
      %p644 = por %p642, %p643
      %p646 = scmp.ne.s32.totalorder %s629, %s645
      %p647 = scmp.eq.s32.totalorder %s63, 0
      %p648 = por %p646, %p647
      %s650 = sadd.s32 %s649, 1
      %p653 = scmp.eq.s32.totalorder %s57, 3
      %p654 = scmp.ne.s32.totalorder %s649, %s651
      %p655 = scmp.eq.s32.totalorder %s57, 0
      %p656 = por %p654, %p655
      %p657 = scmp.ne.s32.totalorder %s649, %s651
      %p658 = scmp.eq.s32.totalorder %s62, 3
      %p659 = por %p657, %p658
      %p660 = scmp.ne.s32.totalorder %s651, %s652
      %p661 = scmp.eq.s32.totalorder %s62, 0
      %p662 = por %p660, %p661
      %p663 = scmp.ne.s32.totalorder %s651, %s652
      %p664 = scmp.eq.s32.totalorder %s63, 3
      %p665 = por %p663, %p664
      %p667 = scmp.ne.s32.totalorder %s652, %s666
      %p668 = scmp.eq.s32.totalorder %s63, 0
      %p669 = por %p667, %p668
      %s671 = sadd.s32 %s670, 1
      %p674 = scmp.eq.s32.totalorder %s57, 3
      %p675 = scmp.ne.s32.totalorder %s670, %s672
      %p676 = scmp.eq.s32.totalorder %s57, 0
      %p677 = por %p675, %p676
      %p678 = scmp.ne.s32.totalorder %s670, %s672
      %p679 = scmp.eq.s32.totalorder %s62, 3
      %p680 = por %p678, %p679
      %p681 = scmp.ne.s32.totalorder %s672, %s673
      %p682 = scmp.eq.s32.totalorder %s62, 0
      %p683 = por %p681, %p682
      %p684 = scmp.ne.s32.totalorder %s672, %s673
      %p685 = scmp.eq.s32.totalorder %s63, 3
      %p686 = por %p684, %p685
      %p688 = scmp.ne.s32.totalorder %s673, %s687
      %p689 = scmp.eq.s32.totalorder %s63, 0
      %p690 = por %p688, %p689
      %s691 = ssub.s32 %s64, %s76
      %p692 = scmp.eq.s32.totalorder %s691, 0
      %s694 = sadd.s32 %s693, 1
      %s695 = scalar_select %p692, %s693, %s694
      %p698 = pneg %p692
      %p699 = scmp.eq.s32.totalorder %s57, 3
      %p700 = por %p698, %p699
      %p701 = scmp.ne.s32.totalorder %s693, %s696
      %p702 = scmp.eq.s32.totalorder %s57, 0
      %p703 = por %p701, %p702
      %p704 = scmp.ne.s32.totalorder %s693, %s696
      %p705 = scmp.eq.s32.totalorder %s62, 3
      %p706 = por %p704, %p705
      %p707 = scmp.ne.s32.totalorder %s696, %s697
      %p708 = scmp.eq.s32.totalorder %s62, 0
      %p709 = por %p707, %p708
      %p710 = scmp.ne.s32.totalorder %s696, %s697
      %p711 = scmp.eq.s32.totalorder %s63, 3
      %p712 = por %p710, %p711
      %p714 = scmp.ne.s32.totalorder %s697, %s713
      %p715 = scmp.eq.s32.totalorder %s63, 0
      %p716 = por %p714, %p715
      %p717 = scmp.le.s32.totalorder 1, %s57
      %p718 = scmp.lt.s32.totalorder %s57, 5
      %p719 = pnand %p717, %p718
      %p720 = pneg %p719
      // Predicated region
      $region9: #{tpu_custom_call.1} parent=5 // pred_check
        _
      $region10: #{tpu_custom_call.1} parent=5 // pred_check_branch
        %722 = sbr.rel (%p719) target = $region12
      $region11: #{tpu_custom_call.1} parent=5 // pred_region
        %s723 = ssub.s32 %s57, 1
        // Predicated region
        $region13: #{tpu_custom_call.1} parent=11 // pred_check
          %p724 = pneg %p662
        $region14: #{tpu_custom_call.1} parent=11 // pred_check_branch
          %726 = sbr.rel (%p724) target = $region16
        $region15: #{tpu_custom_call.1} parent=11 // pred_region
          _
        $region16: #{tpu_custom_call.1} parent=11 // pred_fallthru
          _
        // Predicated region
        $region17: #{tpu_custom_call.1} parent=11 // pred_check
          %p727 = pneg %p683
        $region18: #{tpu_custom_call.1} parent=11 // pred_check_branch
          %729 = sbr.rel (%p727) target = $region20
        $region19: #{tpu_custom_call.1} parent=11 // pred_region
          _
        $region20: #{tpu_custom_call.1} parent=11 // pred_fallthru
          _
      $region12: #{tpu_custom_call.1} parent=5 // pred_fallthru
        _
      %p730 = scmp.lt.s32.totalorder %s57, 4
      // Predicated region
      $region21: #{tpu_custom_call.1} parent=5 // pred_check
        %p731 = pneg %p730
      $region22: #{tpu_custom_call.1} parent=5 // pred_check_branch
        %733 = sbr.rel (%p731) target = $region24
      $region23: #{tpu_custom_call.1} parent=5 // pred_region
        // Predicated region
        $region25: #{tpu_custom_call.1} parent=23 // pred_check
          %p734 = pneg %p89
        $region26: #{tpu_custom_call.1} parent=23 // pred_check_branch
          %736 = sbr.rel (%p734) target = $region28
        $region27: #{tpu_custom_call.1} parent=23 // pred_region
          %s737 = sand.u32 %s79, 1
          %s738 = scalar_lea.sflag [#allocation4], %s737
          %s739 = sand.u32 %s79, 1
          %s740 = smul.addr %s739, 8
          %s741 = scalar_lea.vmem [#allocation3], %s740
          %s743 = ssub.s32 128, 128
          %744 = vsyncadd %s738, %s743
          %s745 = smul.addr %s64, 128
          %s746 = scalar_lea.hbm %s0, %s745
          %s748 = sshll.u32 %s741, 4
          %s749 = int_to_ptr.vmem [resolvable:$true] %s748
          %751 = dma.hbm_to_vmem [thread:$0]  %s746, 128, %s749, %s738
        $region28: #{tpu_custom_call.1} parent=23 // pred_fallthru
          _
        // Predicated region
        $region29: #{tpu_custom_call.1} parent=23 // pred_check
          %p752 = pneg %p115
        $region30: #{tpu_custom_call.1} parent=23 // pred_check_branch
          %754 = sbr.rel (%p752) target = $region32
        $region31: #{tpu_custom_call.1} parent=23 // pred_region
          %s755 = sand.u32 %s57, 1
          %s756 = scalar_lea.sflag [#allocation7], %s755
          %s757 = sand.u32 %s105, 1
          %s758 = smul.addr %s757, 8
          %s759 = scalar_lea.vmem [#allocation6], %s758
          %s761 = ssub.s32 128, 128
          %762 = vsyncadd %s756, %s761
          %s763 = smul.addr %s64, 128
          %s764 = scalar_lea.hbm %s1, %s763
          %s766 = sshll.u32 %s759, 4
          %s767 = int_to_ptr.vmem [resolvable:$true] %s766
          %769 = dma.hbm_to_vmem [thread:$0]  %s764, 128, %s767, %s756
        $region32: #{tpu_custom_call.1} parent=23 // pred_fallthru
          _
        // Predicated region
        $region33: #{tpu_custom_call.1} parent=23 // pred_check
          %p770 = pneg %p141
        $region34: #{tpu_custom_call.1} parent=23 // pred_check_branch
          %772 = sbr.rel (%p770) target = $region36
        $region35: #{tpu_custom_call.1} parent=23 // pred_region
          %p773 = scmp.lt.s32.totalorder %s65, 1
          %s774 = scalar_select %p773, %s65, 1
          %s775 = smul.addr %s774, 4
          %s776 = smul.addr %s775, 4
          %s777 = scalar_lea.vmem %s2, %s776
        $region36: #{tpu_custom_call.1} parent=23 // pred_fallthru
          _
        // Predicated region
        $region37: #{tpu_custom_call.1} parent=23 // pred_check
          %p778 = pneg %p167
        $region38: #{tpu_custom_call.1} parent=23 // pred_check_branch
          %780 = sbr.rel (%p778) target = $region40
        $region39: #{tpu_custom_call.1} parent=23 // pred_region
          %s781 = sand.u32 %s57, 1
          %s782 = scalar_lea.sflag [#allocation7], %s781
          %s783 = sand.u32 %s157, 1
          %s784 = scalar_lea.vmem [#allocation8], %s783
          %s786 = ssub.s32 16, 16
          %787 = vsyncadd %s782, %s786
          %s788 = smul.addr %s65, 16
          %s789 = scalar_lea.hbm %s3, %s788
          %s791 = sshll.u32 %s784, 4
          %s792 = int_to_ptr.vmem [resolvable:$true] %s791
          %794 = dma.hbm_to_vmem [thread:$0]  %s789, 16, %s792, %s782
        $region40: #{tpu_custom_call.1} parent=23 // pred_fallthru
          _
        // Predicated region
        $region41: #{tpu_custom_call.1} parent=23 // pred_check
          %p795 = pneg %p193
        $region42: #{tpu_custom_call.1} parent=23 // pred_check_branch
          %797 = sbr.rel (%p795) target = $region44
        $region43: #{tpu_custom_call.1} parent=23 // pred_region
          %p798 = scmp.lt.s32.totalorder %s65, 1
          %s799 = scalar_select %p798, %s65, 1
          %s800 = smul.addr %s799, 4
          %s801 = smul.addr %s800, 4
          %s802 = scalar_lea.vmem %s4, %s801
        $region44: #{tpu_custom_call.1} parent=23 // pred_fallthru
          _
        // Predicated region
        $region45: #{tpu_custom_call.1} parent=23 // pred_check
          %p803 = pneg %p219
        $region46: #{tpu_custom_call.1} parent=23 // pred_check_branch
          %805 = sbr.rel (%p803) target = $region48
        $region47: #{tpu_custom_call.1} parent=23 // pred_region
          %s806 = sand.u32 %s57, 1
          %s807 = scalar_lea.sflag [#allocation10], %s806
          %s808 = sand.u32 %s209, 1
          %s809 = scalar_lea.vmem [#allocation9], %s808
          %s811 = ssub.s32 16, 16
          %812 = vsyncadd %s807, %s811
          %s813 = smul.addr %s65, 16
          %s814 = scalar_lea.hbm %s5, %s813
          %s816 = sshll.u32 %s809, 4
          %s817 = int_to_ptr.vmem [resolvable:$true] %s816
          %819 = dma.hbm_to_vmem [thread:$0]  %s814, 16, %s817, %s807
        $region48: #{tpu_custom_call.1} parent=23 // pred_fallthru
          _
        // Predicated region
        $region49: #{tpu_custom_call.1} parent=23 // pred_check
          %p820 = pneg %p245
        $region50: #{tpu_custom_call.1} parent=23 // pred_check_branch
          %822 = sbr.rel (%p820) target = $region52
        $region51: #{tpu_custom_call.1} parent=23 // pred_region
          %p823 = scmp.lt.s32.totalorder %s65, 1
          %s824 = scalar_select %p823, %s65, 1
          %s825 = smul.addr %s824, 4
          %s826 = smul.addr %s825, 4
          %s827 = scalar_lea.vmem %s6, %s826
        $region52: #{tpu_custom_call.1} parent=23 // pred_fallthru
          _
        // Predicated region
        $region53: #{tpu_custom_call.1} parent=23 // pred_check
          %p828 = pneg %p271
        $region54: #{tpu_custom_call.1} parent=23 // pred_check_branch
          %830 = sbr.rel (%p828) target = $region56
        $region55: #{tpu_custom_call.1} parent=23 // pred_region
          %s831 = sand.u32 %s57, 1
          %s832 = scalar_lea.sflag [#allocation10], %s831
          %s833 = sand.u32 %s261, 1
          %s834 = scalar_lea.vmem [#allocation11], %s833
          %s836 = ssub.s32 16, 16
          %837 = vsyncadd %s832, %s836
          %s838 = smul.addr %s65, 16
          %s839 = scalar_lea.hbm %s7, %s838
          %s841 = sshll.u32 %s834, 4
          %s842 = int_to_ptr.vmem [resolvable:$true] %s841
          %844 = dma.hbm_to_vmem [thread:$0]  %s839, 16, %s842, %s832
        $region56: #{tpu_custom_call.1} parent=23 // pred_fallthru
          _
        // Predicated region
        $region57: #{tpu_custom_call.1} parent=23 // pred_check
          %p845 = pneg %p297
        $region58: #{tpu_custom_call.1} parent=23 // pred_check_branch
          %847 = sbr.rel (%p845) target = $region60
        $region59: #{tpu_custom_call.1} parent=23 // pred_region
          %p848 = scmp.lt.s32.totalorder %s65, 1
          %s849 = scalar_select %p848, %s65, 1
          %s850 = smul.addr %s849, 4
          %s851 = smul.addr %s850, 4
          %s852 = scalar_lea.vmem %s8, %s851
        $region60: #{tpu_custom_call.1} parent=23 // pred_fallthru
          _
        // Predicated region
        $region61: #{tpu_custom_call.1} parent=23 // pred_check
          %p853 = pneg %p323
        $region62: #{tpu_custom_call.1} parent=23 // pred_check_branch
          %855 = sbr.rel (%p853) target = $region64
        $region63: #{tpu_custom_call.1} parent=23 // pred_region
          %s856 = sand.u32 %s57, 1
          %s857 = scalar_lea.sflag [#allocation13], %s856
          %s858 = sand.u32 %s313, 1
          %s859 = scalar_lea.vmem [#allocation12], %s858
          %s861 = ssub.s32 16, 16
          %862 = vsyncadd %s857, %s861
          %s863 = smul.addr %s65, 16
          %s864 = scalar_lea.hbm %s9, %s863
          %s866 = sshll.u32 %s859, 4
          %s867 = int_to_ptr.vmem [resolvable:$true] %s866
          %869 = dma.hbm_to_vmem [thread:$0]  %s864, 16, %s867, %s857
        $region64: #{tpu_custom_call.1} parent=23 // pred_fallthru
          _
        // Predicated region
        $region65: #{tpu_custom_call.1} parent=23 // pred_check
          %p870 = pneg %p349
        $region66: #{tpu_custom_call.1} parent=23 // pred_check_branch
          %872 = sbr.rel (%p870) target = $region68
        $region67: #{tpu_custom_call.1} parent=23 // pred_region
          %p873 = scmp.lt.s32.totalorder %s65, 1
          %s874 = scalar_select %p873, %s65, 1
          %s875 = smul.addr %s874, 4
          %s876 = smul.addr %s875, 4
          %s877 = scalar_lea.vmem %s10, %s876
        $region68: #{tpu_custom_call.1} parent=23 // pred_fallthru
          _
        // Predicated region
        $region69: #{tpu_custom_call.1} parent=23 // pred_check
          %p878 = pneg %p375
        $region70: #{tpu_custom_call.1} parent=23 // pred_check_branch
          %880 = sbr.rel (%p878) target = $region72
        $region71: #{tpu_custom_call.1} parent=23 // pred_region
          %s881 = sand.u32 %s57, 1
          %s882 = scalar_lea.sflag [#allocation13], %s881
          %s883 = sand.u32 %s365, 1
          %s884 = scalar_lea.vmem [#allocation14], %s883
          %s886 = ssub.s32 16, 16
          %887 = vsyncadd %s882, %s886
          %s888 = smul.addr %s65, 16
          %s889 = scalar_lea.hbm %s11, %s888
          %s891 = sshll.u32 %s884, 4
          %s892 = int_to_ptr.vmem [resolvable:$true] %s891
          %894 = dma.hbm_to_vmem [thread:$0]  %s889, 16, %s892, %s882
        $region72: #{tpu_custom_call.1} parent=23 // pred_fallthru
          _
        // Predicated region
        $region73: #{tpu_custom_call.1} parent=23 // pred_check
          %p895 = pneg %p401
        $region74: #{tpu_custom_call.1} parent=23 // pred_check_branch
          %897 = sbr.rel (%p895) target = $region76
        $region75: #{tpu_custom_call.1} parent=23 // pred_region
          %s898 = sand.u32 %s57, 1
          %s899 = scalar_lea.sflag [#allocation16], %s898
          %s900 = sand.u32 %s391, 1
          %s901 = scalar_lea.vmem [#allocation15], %s900
          %s903 = ssub.s32 16, 16
          %904 = vsyncadd %s899, %s903
          %s905 = smul.addr %s65, 16
          %s906 = scalar_lea.hbm %s12, %s905
          %s908 = sshll.u32 %s901, 4
          %s909 = int_to_ptr.vmem [resolvable:$true] %s908
          %911 = dma.hbm_to_vmem [thread:$0]  %s906, 16, %s909, %s899
        $region76: #{tpu_custom_call.1} parent=23 // pred_fallthru
          _
        // Predicated region
        $region77: #{tpu_custom_call.1} parent=23 // pred_check
          %p912 = pneg %p427
        $region78: #{tpu_custom_call.1} parent=23 // pred_check_branch
          %914 = sbr.rel (%p912) target = $region80
        $region79: #{tpu_custom_call.1} parent=23 // pred_region
          %s915 = sand.u32 %s57, 1
          %s916 = scalar_lea.sflag [#allocation16], %s915
          %s917 = sand.u32 %s417, 1
          %s918 = scalar_lea.vmem [#allocation17], %s917
          %s920 = ssub.s32 16, 16
          %921 = vsyncadd %s916, %s920
          %s922 = smul.addr %s65, 16
          %s923 = scalar_lea.hbm %s13, %s922
          %s925 = sshll.u32 %s918, 4
          %s926 = int_to_ptr.vmem [resolvable:$true] %s925
          %928 = dma.hbm_to_vmem [thread:$0]  %s923, 16, %s926, %s916
        $region80: #{tpu_custom_call.1} parent=23 // pred_fallthru
          _
        // Predicated region
        $region81: #{tpu_custom_call.1} parent=23 // pred_check
          %p929 = pneg %p453
        $region82: #{tpu_custom_call.1} parent=23 // pred_check_branch
          %931 = sbr.rel (%p929) target = $region84
        $region83: #{tpu_custom_call.1} parent=23 // pred_region
          %s932 = sand.u32 %s57, 1
          %s933 = scalar_lea.sflag [#allocation19], %s932
          %s934 = sand.u32 %s443, 1
          %s935 = scalar_lea.vmem [#allocation18], %s934
          %s937 = ssub.s32 16, 16
          %938 = vsyncadd %s933, %s937
          %s939 = smul.addr %s65, 16
          %s940 = scalar_lea.hbm %s14, %s939
          %s942 = sshll.u32 %s935, 4
          %s943 = int_to_ptr.vmem [resolvable:$true] %s942
          %945 = dma.hbm_to_vmem [thread:$0]  %s940, 16, %s943, %s933
        $region84: #{tpu_custom_call.1} parent=23 // pred_fallthru
          _
        // Predicated region
        $region85: #{tpu_custom_call.1} parent=23 // pred_check
          %p946 = pneg %p479
        $region86: #{tpu_custom_call.1} parent=23 // pred_check_branch
          %948 = sbr.rel (%p946) target = $region88
        $region87: #{tpu_custom_call.1} parent=23 // pred_region
          %s949 = sand.u32 %s57, 1
          %s950 = scalar_lea.sflag [#allocation19], %s949
          %s951 = sand.u32 %s469, 1
          %s952 = scalar_lea.vmem [#allocation20], %s951
          %s954 = ssub.s32 16, 16
          %955 = vsyncadd %s950, %s954
          %s956 = smul.addr %s65, 16
          %s957 = scalar_lea.hbm %s15, %s956
          %s959 = sshll.u32 %s952, 4
          %s960 = int_to_ptr.vmem [resolvable:$true] %s959
          %962 = dma.hbm_to_vmem [thread:$0]  %s957, 16, %s960, %s950
        $region88: #{tpu_custom_call.1} parent=23 // pred_fallthru
          _
        // Predicated region
        $region89: #{tpu_custom_call.1} parent=23 // pred_check
          %p963 = pneg %p505
        $region90: #{tpu_custom_call.1} parent=23 // pred_check_branch
          %965 = sbr.rel (%p963) target = $region92
        $region91: #{tpu_custom_call.1} parent=23 // pred_region
          %s966 = sand.u32 %s57, 1
          %s967 = scalar_lea.sflag [#allocation22], %s966
          %s968 = sand.u32 %s495, 1
          %s969 = scalar_lea.vmem [#allocation21], %s968
          %s971 = ssub.s32 16, 16
          %972 = vsyncadd %s967, %s971
          %s973 = smul.addr %s65, 16
          %s974 = scalar_lea.hbm %s16, %s973
          %s976 = sshll.u32 %s969, 4
          %s977 = int_to_ptr.vmem [resolvable:$true] %s976
          %979 = dma.hbm_to_vmem [thread:$0]  %s974, 16, %s977, %s967
        $region92: #{tpu_custom_call.1} parent=23 // pred_fallthru
          _
        // Predicated region
        $region93: #{tpu_custom_call.1} parent=23 // pred_check
          %p980 = pneg %p531
        $region94: #{tpu_custom_call.1} parent=23 // pred_check_branch
          %982 = sbr.rel (%p980) target = $region96
        $region95: #{tpu_custom_call.1} parent=23 // pred_region
          %s983 = sand.u32 %s57, 1
          %s984 = scalar_lea.sflag [#allocation22], %s983
          %s985 = sand.u32 %s521, 1
          %s986 = scalar_lea.vmem [#allocation23], %s985
          %s988 = ssub.s32 16, 16
          %989 = vsyncadd %s984, %s988
          %s990 = smul.addr %s65, 16
          %s991 = scalar_lea.hbm %s17, %s990
          %s993 = sshll.u32 %s986, 4
          %s994 = int_to_ptr.vmem [resolvable:$true] %s993
          %996 = dma.hbm_to_vmem [thread:$0]  %s991, 16, %s994, %s984
        $region96: #{tpu_custom_call.1} parent=23 // pred_fallthru
          _
        // Predicated region
        $region97: #{tpu_custom_call.1} parent=23 // pred_check
          %p997 = pneg %p557
        $region98: #{tpu_custom_call.1} parent=23 // pred_check_branch
          %999 = sbr.rel (%p997) target = $region100
        $region99: #{tpu_custom_call.1} parent=23 // pred_region
          %p1000 = scmp.lt.s32.totalorder %s65, 1
          %s1001 = scalar_select %p1000, %s65, 1
          %s1002 = smul.addr %s1001, 4
          %s1003 = smul.addr %s1002, 4
          %s1004 = scalar_lea.vmem %s18, %s1003
        $region100: #{tpu_custom_call.1} parent=23 // pred_fallthru
          _
        // Predicated region
        $region101: #{tpu_custom_call.1} parent=23 // pred_check
          %p1005 = pneg %p583
        $region102: #{tpu_custom_call.1} parent=23 // pred_check_branch
          %1007 = sbr.rel (%p1005) target = $region104
        $region103: #{tpu_custom_call.1} parent=23 // pred_region
          %s1008 = sand.u32 %s573, 1
          %s1009 = scalar_lea.sflag [#allocation25], %s1008
          %s1010 = sand.u32 %s573, 1
          %s1011 = scalar_lea.vmem [#allocation24], %s1010
          %s1013 = ssub.s32 16, 16
          %1014 = vsyncadd %s1009, %s1013
          %s1015 = smul.addr %s65, 16
          %s1016 = scalar_lea.hbm %s19, %s1015
          %s1018 = sshll.u32 %s1011, 4
          %s1019 = int_to_ptr.vmem [resolvable:$true] %s1018
          %1021 = dma.hbm_to_vmem [thread:$0]  %s1016, 16, %s1019, %s1009
        $region104: #{tpu_custom_call.1} parent=23 // pred_fallthru
          _
        // Predicated region
        $region105: #{tpu_custom_call.1} parent=23 // pred_check
          %p1022 = pneg %p609
        $region106: #{tpu_custom_call.1} parent=23 // pred_check_branch
          %1024 = sbr.rel (%p1022) target = $region108
        $region107: #{tpu_custom_call.1} parent=23 // pred_region
          %p1025 = scmp.lt.s32.totalorder %s65, 1
          %s1026 = scalar_select %p1025, %s65, 1
          %s1027 = smul.addr %s1026, 16
          %s1028 = smul.addr %s1027, 4
          %s1029 = scalar_lea.vmem %s20, %s1028
        $region108: #{tpu_custom_call.1} parent=23 // pred_fallthru
          _
        // Predicated region
        $region109: #{tpu_custom_call.1} parent=23 // pred_check
          %p1030 = pneg %p635
        $region110: #{tpu_custom_call.1} parent=23 // pred_check_branch
          %1032 = sbr.rel (%p1030) target = $region112
        $region111: #{tpu_custom_call.1} parent=23 // pred_region
          %p1033 = scmp.lt.s32.totalorder %s65, 1
          %s1034 = scalar_select %p1033, %s65, 1
          %s1035 = scalar_lea.vmem %s21, %s1034
        $region112: #{tpu_custom_call.1} parent=23 // pred_fallthru
          _
      $region24: #{tpu_custom_call.1} parent=5 // pred_fallthru
        _
      %p1036 = scmp.le.s32.totalorder 1, %s57
      %p1037 = scmp.lt.s32.totalorder %s57, 5
      %p1038 = pnand %p1036, %p1037
      %p1039 = pneg %p1038
      // Predicated region
      $region113: #{tpu_custom_call.1} parent=5 // pred_check
        _
      $region114: #{tpu_custom_call.1} parent=5 // pred_check_branch
        %1041 = sbr.rel (%p1038) target = $region116
      $region115: #{tpu_custom_call.1} parent=5 // pred_region
        %s1042 = ssub.s32 %s57, 1
        %s1043 = sand.u32 %s82, 1
        %s1044 = scalar_lea.sflag [#allocation4], %s1043
        %s1045 = sand.u32 %s82, 1
        %s1046 = smul.addr %s1045, 8
        %s1047 = scalar_lea.vmem [#allocation3], %s1046
        // Predicated region
        $region117: #{tpu_custom_call.1} parent=115 // pred_check
          %p1048 = pneg %p95
        $region118: #{tpu_custom_call.1} parent=115 // pred_check_branch
          %1050 = sbr.rel (%p1048) target = $region120
        $region119: #{tpu_custom_call.1} parent=115 // pred_region
          %1051 = dma.done %s1044, 128
        $region120: #{tpu_custom_call.1} parent=115 // pred_fallthru
          _
        %s1052 = sand.u32 %s62, 1
        %s1053 = scalar_lea.sflag [#allocation7], %s1052
        %s1054 = sand.u32 %s108, 1
        %s1055 = smul.addr %s1054, 8
        %s1056 = scalar_lea.vmem [#allocation6], %s1055
        // Predicated region
        $region121: #{tpu_custom_call.1} parent=115 // pred_check
          %p1057 = pneg %p121
        $region122: #{tpu_custom_call.1} parent=115 // pred_check_branch
          %1059 = sbr.rel (%p1057) target = $region124
        $region123: #{tpu_custom_call.1} parent=115 // pred_region
          %1060 = dma.done %s1053, 128
        $region124: #{tpu_custom_call.1} parent=115 // pred_fallthru
          _
        %s1061 = sand.u32 %s62, 1
        %s1062 = scalar_lea.sflag [#allocation7], %s1061
        %s1063 = sand.u32 %s160, 1
        %s1064 = scalar_lea.vmem [#allocation8], %s1063
        // Predicated region
        $region125: #{tpu_custom_call.1} parent=115 // pred_check
          %p1065 = pneg %p173
        $region126: #{tpu_custom_call.1} parent=115 // pred_check_branch
          %1067 = sbr.rel (%p1065) target = $region128
        $region127: #{tpu_custom_call.1} parent=115 // pred_region
          %1068 = dma.done %s1062, 16
        $region128: #{tpu_custom_call.1} parent=115 // pred_fallthru
          _
        %s1069 = sand.u32 %s62, 1
        %s1070 = scalar_lea.sflag [#allocation10], %s1069
        %s1071 = sand.u32 %s212, 1
        %s1072 = scalar_lea.vmem [#allocation9], %s1071
        // Predicated region
        $region129: #{tpu_custom_call.1} parent=115 // pred_check
          %p1073 = pneg %p225
        $region130: #{tpu_custom_call.1} parent=115 // pred_check_branch
          %1075 = sbr.rel (%p1073) target = $region132
        $region131: #{tpu_custom_call.1} parent=115 // pred_region
          %1076 = dma.done %s1070, 16
        $region132: #{tpu_custom_call.1} parent=115 // pred_fallthru
          _
        %s1077 = sand.u32 %s62, 1
        %s1078 = scalar_lea.sflag [#allocation10], %s1077
        %s1079 = sand.u32 %s264, 1
        %s1080 = scalar_lea.vmem [#allocation11], %s1079
        // Predicated region
        $region133: #{tpu_custom_call.1} parent=115 // pred_check
          %p1081 = pneg %p277
        $region134: #{tpu_custom_call.1} parent=115 // pred_check_branch
          %1083 = sbr.rel (%p1081) target = $region136
        $region135: #{tpu_custom_call.1} parent=115 // pred_region
          %1084 = dma.done %s1078, 16
        $region136: #{tpu_custom_call.1} parent=115 // pred_fallthru
          _
        %s1085 = sand.u32 %s62, 1
        %s1086 = scalar_lea.sflag [#allocation13], %s1085
        %s1087 = sand.u32 %s316, 1
        %s1088 = scalar_lea.vmem [#allocation12], %s1087
        // Predicated region
        $region137: #{tpu_custom_call.1} parent=115 // pred_check
          %p1089 = pneg %p329
        $region138: #{tpu_custom_call.1} parent=115 // pred_check_branch
          %1091 = sbr.rel (%p1089) target = $region140
        $region139: #{tpu_custom_call.1} parent=115 // pred_region
          %1092 = dma.done %s1086, 16
        $region140: #{tpu_custom_call.1} parent=115 // pred_fallthru
          _
        %s1093 = sand.u32 %s62, 1
        %s1094 = scalar_lea.sflag [#allocation13], %s1093
        %s1095 = sand.u32 %s368, 1
        %s1096 = scalar_lea.vmem [#allocation14], %s1095
        // Predicated region
        $region141: #{tpu_custom_call.1} parent=115 // pred_check
          %p1097 = pneg %p381
        $region142: #{tpu_custom_call.1} parent=115 // pred_check_branch
          %1099 = sbr.rel (%p1097) target = $region144
        $region143: #{tpu_custom_call.1} parent=115 // pred_region
          %1100 = dma.done %s1094, 16
        $region144: #{tpu_custom_call.1} parent=115 // pred_fallthru
          _
        %s1101 = sand.u32 %s62, 1
        %s1102 = scalar_lea.sflag [#allocation16], %s1101
        %s1103 = sand.u32 %s394, 1
        %s1104 = scalar_lea.vmem [#allocation15], %s1103
        // Predicated region
        $region145: #{tpu_custom_call.1} parent=115 // pred_check
          %p1105 = pneg %p407
        $region146: #{tpu_custom_call.1} parent=115 // pred_check_branch
          %1107 = sbr.rel (%p1105) target = $region148
        $region147: #{tpu_custom_call.1} parent=115 // pred_region
          %1108 = dma.done %s1102, 16
        $region148: #{tpu_custom_call.1} parent=115 // pred_fallthru
          _
        %s1109 = sand.u32 %s62, 1
        %s1110 = scalar_lea.sflag [#allocation16], %s1109
        %s1111 = sand.u32 %s420, 1
        %s1112 = scalar_lea.vmem [#allocation17], %s1111
        // Predicated region
        $region149: #{tpu_custom_call.1} parent=115 // pred_check
          %p1113 = pneg %p433
        $region150: #{tpu_custom_call.1} parent=115 // pred_check_branch
          %1115 = sbr.rel (%p1113) target = $region152
        $region151: #{tpu_custom_call.1} parent=115 // pred_region
          %1116 = dma.done %s1110, 16
        $region152: #{tpu_custom_call.1} parent=115 // pred_fallthru
          _
        %s1117 = sand.u32 %s62, 1
        %s1118 = scalar_lea.sflag [#allocation19], %s1117
        %s1119 = sand.u32 %s446, 1
        %s1120 = scalar_lea.vmem [#allocation18], %s1119
        // Predicated region
        $region153: #{tpu_custom_call.1} parent=115 // pred_check
          %p1121 = pneg %p459
        $region154: #{tpu_custom_call.1} parent=115 // pred_check_branch
          %1123 = sbr.rel (%p1121) target = $region156
        $region155: #{tpu_custom_call.1} parent=115 // pred_region
          %1124 = dma.done %s1118, 16
        $region156: #{tpu_custom_call.1} parent=115 // pred_fallthru
          _
        %s1125 = sand.u32 %s62, 1
        %s1126 = scalar_lea.sflag [#allocation19], %s1125
        %s1127 = sand.u32 %s472, 1
        %s1128 = scalar_lea.vmem [#allocation20], %s1127
        // Predicated region
        $region157: #{tpu_custom_call.1} parent=115 // pred_check
          %p1129 = pneg %p485
        $region158: #{tpu_custom_call.1} parent=115 // pred_check_branch
          %1131 = sbr.rel (%p1129) target = $region160
        $region159: #{tpu_custom_call.1} parent=115 // pred_region
          %1132 = dma.done %s1126, 16
        $region160: #{tpu_custom_call.1} parent=115 // pred_fallthru
          _
        %s1133 = sand.u32 %s62, 1
        %s1134 = scalar_lea.sflag [#allocation22], %s1133
        %s1135 = sand.u32 %s498, 1
        %s1136 = scalar_lea.vmem [#allocation21], %s1135
        // Predicated region
        $region161: #{tpu_custom_call.1} parent=115 // pred_check
          %p1137 = pneg %p511
        $region162: #{tpu_custom_call.1} parent=115 // pred_check_branch
          %1139 = sbr.rel (%p1137) target = $region164
        $region163: #{tpu_custom_call.1} parent=115 // pred_region
          %1140 = dma.done %s1134, 16
        $region164: #{tpu_custom_call.1} parent=115 // pred_fallthru
          _
        %s1141 = sand.u32 %s62, 1
        %s1142 = scalar_lea.sflag [#allocation22], %s1141
        %s1143 = sand.u32 %s524, 1
        %s1144 = scalar_lea.vmem [#allocation23], %s1143
        // Predicated region
        $region165: #{tpu_custom_call.1} parent=115 // pred_check
          %p1145 = pneg %p537
        $region166: #{tpu_custom_call.1} parent=115 // pred_check_branch
          %1147 = sbr.rel (%p1145) target = $region168
        $region167: #{tpu_custom_call.1} parent=115 // pred_region
          %1148 = dma.done %s1142, 16
        $region168: #{tpu_custom_call.1} parent=115 // pred_fallthru
          _
        %s1149 = sand.u32 %s576, 1
        %s1150 = scalar_lea.sflag [#allocation25], %s1149
        %s1151 = sand.u32 %s576, 1
        %s1152 = scalar_lea.vmem [#allocation24], %s1151
        // Predicated region
        $region169: #{tpu_custom_call.1} parent=115 // pred_check
          %p1153 = pneg %p589
        $region170: #{tpu_custom_call.1} parent=115 // pred_check_branch
          %1155 = sbr.rel (%p1153) target = $region172
        $region171: #{tpu_custom_call.1} parent=115 // pred_region
          %1156 = dma.done %s1150, 16
        $region172: #{tpu_custom_call.1} parent=115 // pred_fallthru
          _
        %s1157 = sand.u32 %s82, 1
        %s1158 = scalar_lea.sflag [#allocation4], %s1157
        %s1159 = sand.u32 %s82, 1
        %s1160 = smul.addr %s1159, 8
        %s1161 = scalar_lea.vmem [#allocation3], %s1160
        %p1162 = pneg %p95
        %p1163 = pneg %p92
        %s1164 = sand.u32 %s62, 1
        %s1165 = scalar_lea.sflag [#allocation7], %s1164
        %s1166 = sand.u32 %s108, 1
        %s1167 = smul.addr %s1166, 8
        %s1168 = scalar_lea.vmem [#allocation6], %s1167
        %p1169 = pneg %p121
        %p1170 = pneg %p118
        %p1171 = scmp.lt.s32.totalorder %s67, 1
        %s1172 = scalar_select %p1171, %s67, 1
        %s1173 = smul.addr %s1172, 4
        %s1174 = smul.addr %s1173, 4
        %s1175 = scalar_lea.vmem %s2, %s1174
        %p1176 = pneg %p147
        %p1177 = pneg %p144
        %s1178 = sand.u32 %s62, 1
        %s1179 = scalar_lea.sflag [#allocation7], %s1178
        %s1180 = sand.u32 %s160, 1
        %s1181 = scalar_lea.vmem [#allocation8], %s1180
        %p1182 = pneg %p173
        %p1183 = pneg %p170
        %p1184 = scmp.lt.s32.totalorder %s67, 1
        %s1185 = scalar_select %p1184, %s67, 1
        %s1186 = smul.addr %s1185, 4
        %s1187 = smul.addr %s1186, 4
        %s1188 = scalar_lea.vmem %s4, %s1187
        %p1189 = pneg %p199
        %p1190 = pneg %p196
        %s1191 = sand.u32 %s62, 1
        %s1192 = scalar_lea.sflag [#allocation10], %s1191
        %s1193 = sand.u32 %s212, 1
        %s1194 = scalar_lea.vmem [#allocation9], %s1193
        %p1195 = pneg %p225
        %p1196 = pneg %p222
        %p1197 = scmp.lt.s32.totalorder %s67, 1
        %s1198 = scalar_select %p1197, %s67, 1
        %s1199 = smul.addr %s1198, 4
        %s1200 = smul.addr %s1199, 4
        %s1201 = scalar_lea.vmem %s6, %s1200
        %p1202 = pneg %p251
        %p1203 = pneg %p248
        %s1204 = sand.u32 %s62, 1
        %s1205 = scalar_lea.sflag [#allocation10], %s1204
        %s1206 = sand.u32 %s264, 1
        %s1207 = scalar_lea.vmem [#allocation11], %s1206
        %p1208 = pneg %p277
        %p1209 = pneg %p274
        %p1210 = scmp.lt.s32.totalorder %s67, 1
        %s1211 = scalar_select %p1210, %s67, 1
        %s1212 = smul.addr %s1211, 4
        %s1213 = smul.addr %s1212, 4
        %s1214 = scalar_lea.vmem %s8, %s1213
        %p1215 = pneg %p303
        %p1216 = pneg %p300
        %s1217 = sand.u32 %s62, 1
        %s1218 = scalar_lea.sflag [#allocation13], %s1217
        %s1219 = sand.u32 %s316, 1
        %s1220 = scalar_lea.vmem [#allocation12], %s1219
        %p1221 = pneg %p329
        %p1222 = pneg %p326
        %p1223 = scmp.lt.s32.totalorder %s67, 1
        %s1224 = scalar_select %p1223, %s67, 1
        %s1225 = smul.addr %s1224, 4
        %s1226 = smul.addr %s1225, 4
        %s1227 = scalar_lea.vmem %s10, %s1226
        %p1228 = pneg %p355
        %p1229 = pneg %p352
        %s1230 = sand.u32 %s62, 1
        %s1231 = scalar_lea.sflag [#allocation13], %s1230
        %s1232 = sand.u32 %s368, 1
        %s1233 = scalar_lea.vmem [#allocation14], %s1232
        %p1234 = pneg %p381
        %p1235 = pneg %p378
        %s1236 = sand.u32 %s62, 1
        %s1237 = scalar_lea.sflag [#allocation16], %s1236
        %s1238 = sand.u32 %s394, 1
        %s1239 = scalar_lea.vmem [#allocation15], %s1238
        %p1240 = pneg %p407
        %p1241 = pneg %p404
        %s1242 = sand.u32 %s62, 1
        %s1243 = scalar_lea.sflag [#allocation16], %s1242
        %s1244 = sand.u32 %s420, 1
        %s1245 = scalar_lea.vmem [#allocation17], %s1244
        %p1246 = pneg %p433
        %p1247 = pneg %p430
        %s1248 = sand.u32 %s62, 1
        %s1249 = scalar_lea.sflag [#allocation19], %s1248
        %s1250 = sand.u32 %s446, 1
        %s1251 = scalar_lea.vmem [#allocation18], %s1250
        %p1252 = pneg %p459
        %p1253 = pneg %p456
        %s1254 = sand.u32 %s62, 1
        %s1255 = scalar_lea.sflag [#allocation19], %s1254
        %s1256 = sand.u32 %s472, 1
        %s1257 = scalar_lea.vmem [#allocation20], %s1256
        %p1258 = pneg %p485
        %p1259 = pneg %p482
        %s1260 = sand.u32 %s62, 1
        %s1261 = scalar_lea.sflag [#allocation22], %s1260
        %s1262 = sand.u32 %s498, 1
        %s1263 = scalar_lea.vmem [#allocation21], %s1262
        %p1264 = pneg %p511
        %p1265 = pneg %p508
        %s1266 = sand.u32 %s62, 1
        %s1267 = scalar_lea.sflag [#allocation22], %s1266
        %s1268 = sand.u32 %s524, 1
        %s1269 = scalar_lea.vmem [#allocation23], %s1268
        %p1270 = pneg %p537
        %p1271 = pneg %p534
        %p1272 = scmp.lt.s32.totalorder %s67, 1
        %s1273 = scalar_select %p1272, %s67, 1
        %s1274 = smul.addr %s1273, 4
        %s1275 = smul.addr %s1274, 4
        %s1276 = scalar_lea.vmem %s18, %s1275
        %p1277 = pneg %p563
        %p1278 = pneg %p560
        %s1279 = sand.u32 %s576, 1
        %s1280 = scalar_lea.sflag [#allocation25], %s1279
        %s1281 = sand.u32 %s576, 1
        %s1282 = scalar_lea.vmem [#allocation24], %s1281
        %p1283 = pneg %p589
        %p1284 = pneg %p586
        %p1285 = scmp.lt.s32.totalorder %s67, 1
        %s1286 = scalar_select %p1285, %s67, 1
        %s1287 = smul.addr %s1286, 16
        %s1288 = smul.addr %s1287, 4
        %s1289 = scalar_lea.vmem %s20, %s1288
        %p1290 = pneg %p615
        %p1291 = pneg %p612
        %p1292 = scmp.lt.s32.totalorder %s67, 1
        %s1293 = scalar_select %p1292, %s67, 1
        %s1294 = scalar_lea.vmem %s21, %s1293
        %p1295 = pneg %p641
        %p1296 = pneg %p638
        %p1297 = pneg %p662
        %p1298 = pneg %p659
        %p1299 = pneg %p683
        %p1300 = pneg %p680
        %p1301 = pneg %p709
        %p1302 = pneg %p706
        %s1303 = sand.u32 %s696, 1
        %s1304 = scalar_lea.sflag [#allocation5], %s1303
        %s1305 = sand.u32 %s696, 1
        %s1306 = smul.addr %s1305, 8
        %s1307 = scalar_lea.vmem [#allocation26], %s1306
        %p1308 = scmp.lt.s32.totalorder %s67, 1
        %s1309 = scalar_select %p1308, %s67, 1
        %s1310 = smul.addr %s1309, 4
        %s1311 = smul.addr %s1310, 4
        %s1312 = scalar_lea.vmem %s2, %s1311
        %p1313 = scmp.lt.s32.totalorder %s67, 1
        %s1314 = scalar_select %p1313, %s67, 1
        %s1315 = smul.addr %s1314, 4
        %s1316 = smul.addr %s1315, 4
        %s1317 = scalar_lea.vmem %s4, %s1316
        %p1318 = scmp.lt.s32.totalorder %s67, 1
        %s1319 = scalar_select %p1318, %s67, 1
        %s1320 = smul.addr %s1319, 4
        %s1321 = smul.addr %s1320, 4
        %s1322 = scalar_lea.vmem %s6, %s1321
        %p1323 = scmp.lt.s32.totalorder %s67, 1
        %s1324 = scalar_select %p1323, %s67, 1
        %s1325 = smul.addr %s1324, 4
        %s1326 = smul.addr %s1325, 4
        %s1327 = scalar_lea.vmem %s8, %s1326
        %p1328 = scmp.lt.s32.totalorder %s67, 1
        %s1329 = scalar_select %p1328, %s67, 1
        %s1330 = smul.addr %s1329, 4
        %s1331 = smul.addr %s1330, 4
        %s1332 = scalar_lea.vmem %s10, %s1331
        %p1333 = scmp.lt.s32.totalorder %s67, 1
        %s1334 = scalar_select %p1333, %s67, 1
        %s1335 = smul.addr %s1334, 4
        %s1336 = smul.addr %s1335, 4
        %s1337 = scalar_lea.vmem %s18, %s1336
        %p1338 = scmp.lt.s32.totalorder %s67, 1
        %s1339 = scalar_select %p1338, %s67, 1
        %s1340 = smul.addr %s1339, 16
        %s1341 = smul.addr %s1340, 4
        %s1342 = scalar_lea.vmem %s20, %s1341
        %p1343 = scmp.lt.s32.totalorder %s67, 1
        %s1344 = scalar_select %p1343, %s67, 1
        %s1345 = scalar_lea.vmem %s21, %s1344
        %p1347 = scmp.eq.s32.totalorder %s67, 0
        // Predicated region
        $region173: #{tpu_custom_call.1} parent=115 // pred_check
          %p1348 = pneg %p1347
        $region174: #{tpu_custom_call.1} parent=115 // pred_check_branch
          %1350 = sbr.rel (%p1348) target = $region176
        $region175: #{tpu_custom_call.1} parent=115 // pred_region
          %v1351 = vld [vmem:[%s1047] sm:$0xff]
          %vm1352 = vcmask 261120
          %1353 = vst.msk [vmem:[#allocation2] sm:$0xff] %vm1352, %v1351
        $region176: #{tpu_custom_call.1} parent=115 // pred_fallthru
          _
        %v1354 = vld [vmem:[#allocation2] sm:$0xff]
        %v1355 = vld [vmem:[%s1056] sm:$0xff]
        %v1356 = vpack.c.bf16 %v1354, %v1354
        %v1357 = vld [vmem:[%s1312] sm:$0xf]
        %v1358 = vld [vmem:[%s1312 + $0x4] sm:$0xf]
        %v1359 = vld [vmem:[%s1312 + $0x8] sm:$0xf]
        %v1360 = vld [vmem:[%s1312 + $0xc] sm:$0xf]
        %v1361 = vld [vmem:[%s1064] sm:$0x1]
        %v1363 = vlaneseq
        %v1364 = vshrl.u32 %v1363, 7
        %v1365 = vsub.s32 0, %v1364
        %v1366 = vrot.slane %v1361, %v1365
        %v1372 = vunpack.c.l.b16 %v1357
        %v1373 = vunpack.c.l.b16 %v1358
        %v1374 = vunpack.c.l.b16 %v1359
        %v1375 = vunpack.c.l.b16 %v1360
        %v1376 = vpack.c.b16 %v1373, %v1372
        %v1377 = vpack.c.b16 %v1375, %v1374
        %vm1380 = vcmask 261120
        %v1382 = vsel %vm1380, %v1356, 0
        %1384 = vmatprep.subr.bf16.mxu0 0
        %1385 = vmatpush1.bf16.msra.mxu0 0
        %1386 = vmatprep.subr.bf16.mxu0 0
        %1387 = vmatpush1.bf16.msra.mxu0 0
        %1388 = vmatprep.subr.bf16.mxu0 0
        %1389 = vmatpush1.bf16.msra.mxu0 0
        %1390 = vmatprep.subr.bf16.mxu0 0
        %1391 = vmatpush1.bf16.msra.mxu0 0
        %1392 = vmatprep.subr.bf16.mxu0 0
        %1393 = vmatpush1.bf16.msra.mxu0 0
        %1394 = vmatprep.subr.bf16.mxu0 0
        %1395 = vmatpush1.bf16.msra.mxu0 0
        %1396 = vmatprep.subr.bf16.mxu0 0
        %1397 = vmatpush1.bf16.msra.mxu0 %v1377
        %1398 = vmatprep.subr.bf16.mxu0 0
        %1399 = vmatpush1.bf16.msra.mxu0 %v1376
        %1400 = vmatprep.subr.bf16.mxu0 0
        %1401 = vmatpush2.bf16.msra.mxu0 0
        %1402 = vmatprep.subr.bf16.mxu0 0
        %1403 = vmatpush2.bf16.msra.mxu0 0
        %1404 = vmatprep.subr.bf16.mxu0 0
        %1405 = vmatpush2.bf16.msra.mxu0 0
        %1406 = vmatprep.subr.bf16.mxu0 0
        %1407 = vmatpush2.bf16.msra.mxu0 0
        %1408 = vmatprep.subr.bf16.mxu0 0
        %1409 = vmatpush2.bf16.msra.mxu0 0
        %1410 = vmatprep.subr.bf16.mxu0 0
        %1411 = vmatpush2.bf16.msra.mxu0 0
        %1412 = vmatprep.subr.bf16.mxu0 0
        %1413 = vmatpush2.bf16.msra.mxu0 0
        %1414 = vmatprep.subr.bf16.mxu0 0
        %1415 = vmatpush2.bf16.msra.mxu0 0
        %1416 = vmatprep.mubr.bf16.mxu0 0
        %1417 = vmatmul.mubr.bf16.gmra.mxu0 %v1382
        %v1418 = vpop.f32.mrf.mxu0
        %v1419 = vadd.f32 %v1366, %v1418
        %v1420 = vpop.f32.mrf.mxu0
        %v1421 = vpop.f32.mrf.mxu0
        %v1422 = vpop.f32.mrf.mxu0
        %1423 = vdwg.mxu0
        %v1424 = vld [vmem:[%s1317] sm:$0xf]
        %v1425 = vld [vmem:[%s1317 + $0x4] sm:$0xf]
        %v1426 = vld [vmem:[%s1317 + $0x8] sm:$0xf]
        %v1427 = vld [vmem:[%s1317 + $0xc] sm:$0xf]
        %v1428 = vld [vmem:[%s1072] sm:$0x1]
        %1430 = vrot.lane.b32.xlu0 %v1419, 120
        %v1431 = vpop.permute.xlu0 %1430
        %1433 = vrot.lane.b32.xlu0 %v1419, 112
        %v1434 = vpop.permute.xlu0 %1433
        %1436 = vrot.lane.b32.xlu0 %v1419, 104
        %v1437 = vpop.permute.xlu0 %1436
        %v1439 = vpack.c.bf16 %v1419, %v1419
        %v1440 = vpack.c.bf16 %v1431, %v1431
        %v1441 = vpack.c.bf16 %v1434, %v1434
        %v1442 = vpack.c.bf16 %v1437, %v1437
        %1444 = vrot.lane.b32.xlu0 %v1439, 96
        %v1445 = vpop.permute.xlu0 %1444
        %vm1446 = vcmask 64512
        %v1448 = vsel %vm1446, %v1439, 0
        %v1451 = vsel %vm1446, %v1445, 0
        %1453 = vmatprep.subr.bf16.mxu0 0
        %1454 = vmatpush1.bf16.xpose.msra.mxu0 0
        %1455 = vmatprep.subr.bf16.mxu0 0
        %1456 = vmatpush1.bf16.xpose.msra.mxu0 0
        %1457 = vmatprep.subr.bf16.mxu0 0
        %1458 = vmatpush1.bf16.xpose.msra.mxu0 0
        %1459 = vmatprep.subr.bf16.mxu0 0
        %1460 = vmatpush1.bf16.xpose.msra.mxu0 0
        %1461 = vmatprep.subr.bf16.mxu0 0
        %1462 = vmatpush1.bf16.xpose.msra.mxu0 0
        %1463 = vmatprep.subr.bf16.mxu0 0
        %1464 = vmatpush1.bf16.xpose.msra.mxu0 0
        %1465 = vmatprep.subr.bf16.mxu0 0
        %1466 = vmatpush1.bf16.xpose.msra.mxu0 0
        %1467 = vmatprep.subr.bf16.mxu0 0
        %1468 = vmatpush1.bf16.xpose.msra.mxu0 %v1451
        %1469 = vmatprep.subr.bf16.mxu0 0
        %1470 = vmatpush2.bf16.xpose.msra.mxu0 0
        %1471 = vmatprep.subr.bf16.mxu0 0
        %1472 = vmatpush2.bf16.xpose.msra.mxu0 0
        %1473 = vmatprep.subr.bf16.mxu0 0
        %1474 = vmatpush2.bf16.xpose.msra.mxu0 0
        %1475 = vmatprep.subr.bf16.mxu0 0
        %1476 = vmatpush2.bf16.xpose.msra.mxu0 0
        %1477 = vmatprep.subr.bf16.mxu0 0
        %1478 = vmatpush2.bf16.xpose.msra.mxu0 0
        %1479 = vmatprep.subr.bf16.mxu0 0
        %1480 = vmatpush2.bf16.xpose.msra.mxu0 0
        %1481 = vmatprep.subr.bf16.mxu0 0
        %1482 = vmatpush2.bf16.xpose.msra.mxu0 0
        %1483 = vmatprep.subr.bf16.mxu0 0
        %1484 = vmatpush2.bf16.xpose.msra.mxu0 0
        %1485 = vmatprep.mubr.bf16.mxu0 0
        %1486 = vmatmul.mubr.bf16.gmra.mxu0 %v1448
        %v1487 = vpop.f32.mrf.mxu0
        %v1488 = vadd.f32 0.0, %v1487
        %v1489 = vpop.f32.mrf.mxu0
        %v1490 = vpop.f32.mrf.mxu0
        %v1491 = vpop.f32.mrf.mxu0
        %1492 = vdwg.mxu0
        %1494 = vrot.lane.b32.xlu0 %v1440, 96
        %v1495 = vpop.permute.xlu0 %1494
        %v1497 = vsel %vm1446, %v1440, 0
        %v1500 = vsel %vm1446, %v1495, 0
        %1502 = vmatprep.subr.bf16.mxu0 0
        %1503 = vmatpush1.bf16.xpose.msra.mxu0 0
        %1504 = vmatprep.subr.bf16.mxu0 0
        %1505 = vmatpush1.bf16.xpose.msra.mxu0 0
        %1506 = vmatprep.subr.bf16.mxu0 0
        %1507 = vmatpush1.bf16.xpose.msra.mxu0 0
        %1508 = vmatprep.subr.bf16.mxu0 0
        %1509 = vmatpush1.bf16.xpose.msra.mxu0 0
        %1510 = vmatprep.subr.bf16.mxu0 0
        %1511 = vmatpush1.bf16.xpose.msra.mxu0 0
        %1512 = vmatprep.subr.bf16.mxu0 0
        %1513 = vmatpush1.bf16.xpose.msra.mxu0 0
        %1514 = vmatprep.subr.bf16.mxu0 0
        %1515 = vmatpush1.bf16.xpose.msra.mxu0 0
        %1516 = vmatprep.subr.bf16.mxu0 0
        %1517 = vmatpush1.bf16.xpose.msra.mxu0 %v1500
        %1518 = vmatprep.subr.bf16.mxu0 0
        %1519 = vmatpush2.bf16.xpose.msra.mxu0 0
        %1520 = vmatprep.subr.bf16.mxu0 0
        %1521 = vmatpush2.bf16.xpose.msra.mxu0 0
        %1522 = vmatprep.subr.bf16.mxu0 0
        %1523 = vmatpush2.bf16.xpose.msra.mxu0 0
        %1524 = vmatprep.subr.bf16.mxu0 0
        %1525 = vmatpush2.bf16.xpose.msra.mxu0 0
        %1526 = vmatprep.subr.bf16.mxu0 0
        %1527 = vmatpush2.bf16.xpose.msra.mxu0 0
        %1528 = vmatprep.subr.bf16.mxu0 0
        %1529 = vmatpush2.bf16.xpose.msra.mxu0 0
        %1530 = vmatprep.subr.bf16.mxu0 0
        %1531 = vmatpush2.bf16.xpose.msra.mxu0 0
        %1532 = vmatprep.subr.bf16.mxu0 0
        %1533 = vmatpush2.bf16.xpose.msra.mxu0 0
        %1534 = vmatprep.mubr.bf16.mxu0 0
        %1535 = vmatmul.mubr.bf16.gmra.mxu0 %v1497
        %v1536 = vpop.f32.mrf.mxu0
        %v1537 = vadd.f32 0.0, %v1536
        %v1538 = vpop.f32.mrf.mxu0
        %v1539 = vpop.f32.mrf.mxu0
        %v1540 = vpop.f32.mrf.mxu0
        %1541 = vdwg.mxu0
        %1543 = vrot.lane.b32.xlu0 %v1441, 96
        %v1544 = vpop.permute.xlu0 %1543
        %v1546 = vsel %vm1446, %v1441, 0
        %v1549 = vsel %vm1446, %v1544, 0
        %1551 = vmatprep.subr.bf16.mxu0 0
        %1552 = vmatpush1.bf16.xpose.msra.mxu0 0
        %1553 = vmatprep.subr.bf16.mxu0 0
        %1554 = vmatpush1.bf16.xpose.msra.mxu0 0
        %1555 = vmatprep.subr.bf16.mxu0 0
        %1556 = vmatpush1.bf16.xpose.msra.mxu0 0
        %1557 = vmatprep.subr.bf16.mxu0 0
        %1558 = vmatpush1.bf16.xpose.msra.mxu0 0
        %1559 = vmatprep.subr.bf16.mxu0 0
        %1560 = vmatpush1.bf16.xpose.msra.mxu0 0
        %1561 = vmatprep.subr.bf16.mxu0 0
        %1562 = vmatpush1.bf16.xpose.msra.mxu0 0
        %1563 = vmatprep.subr.bf16.mxu0 0
        %1564 = vmatpush1.bf16.xpose.msra.mxu0 0
        %1565 = vmatprep.subr.bf16.mxu0 0
        %1566 = vmatpush1.bf16.xpose.msra.mxu0 %v1549
        %1567 = vmatprep.subr.bf16.mxu0 0
        %1568 = vmatpush2.bf16.xpose.msra.mxu0 0
        %1569 = vmatprep.subr.bf16.mxu0 0
        %1570 = vmatpush2.bf16.xpose.msra.mxu0 0
        %1571 = vmatprep.subr.bf16.mxu0 0
        %1572 = vmatpush2.bf16.xpose.msra.mxu0 0
        %1573 = vmatprep.subr.bf16.mxu0 0
        %1574 = vmatpush2.bf16.xpose.msra.mxu0 0
        %1575 = vmatprep.subr.bf16.mxu0 0
        %1576 = vmatpush2.bf16.xpose.msra.mxu0 0
        %1577 = vmatprep.subr.bf16.mxu0 0
        %1578 = vmatpush2.bf16.xpose.msra.mxu0 0
        %1579 = vmatprep.subr.bf16.mxu0 0
        %1580 = vmatpush2.bf16.xpose.msra.mxu0 0
        %1581 = vmatprep.subr.bf16.mxu0 0
        %1582 = vmatpush2.bf16.xpose.msra.mxu0 0
        %1583 = vmatprep.mubr.bf16.mxu0 0
        %1584 = vmatmul.mubr.bf16.gmra.mxu0 %v1546
        %v1585 = vpop.f32.mrf.mxu0
        %v1586 = vadd.f32 0.0, %v1585
        %v1587 = vpop.f32.mrf.mxu0
        %v1588 = vpop.f32.mrf.mxu0
        %v1589 = vpop.f32.mrf.mxu0
        %1590 = vdwg.mxu0
        %1592 = vrot.lane.b32.xlu0 %v1442, 96
        %v1593 = vpop.permute.xlu0 %1592
        %v1595 = vsel %vm1446, %v1442, 0
        %v1598 = vsel %vm1446, %v1593, 0
        %1600 = vmatprep.subr.bf16.mxu0 0
        %1601 = vmatpush1.bf16.xpose.msra.mxu0 0
        %1602 = vmatprep.subr.bf16.mxu0 0
        %1603 = vmatpush1.bf16.xpose.msra.mxu0 0
        %1604 = vmatprep.subr.bf16.mxu0 0
        %1605 = vmatpush1.bf16.xpose.msra.mxu0 0
        %1606 = vmatprep.subr.bf16.mxu0 0
        %1607 = vmatpush1.bf16.xpose.msra.mxu0 0
        %1608 = vmatprep.subr.bf16.mxu0 0
        %1609 = vmatpush1.bf16.xpose.msra.mxu0 0
        %1610 = vmatprep.subr.bf16.mxu0 0
        %1611 = vmatpush1.bf16.xpose.msra.mxu0 0
        %1612 = vmatprep.subr.bf16.mxu0 0
        %1613 = vmatpush1.bf16.xpose.msra.mxu0 0
        %1614 = vmatprep.subr.bf16.mxu0 0
        %1615 = vmatpush1.bf16.xpose.msra.mxu0 %v1598
        %1616 = vmatprep.subr.bf16.mxu0 0
        %1617 = vmatpush2.bf16.xpose.msra.mxu0 0
        %1618 = vmatprep.subr.bf16.mxu0 0
        %1619 = vmatpush2.bf16.xpose.msra.mxu0 0
        %1620 = vmatprep.subr.bf16.mxu0 0
        %1621 = vmatpush2.bf16.xpose.msra.mxu0 0
        %1622 = vmatprep.subr.bf16.mxu0 0
        %1623 = vmatpush2.bf16.xpose.msra.mxu0 0
        %1624 = vmatprep.subr.bf16.mxu0 0
        %1625 = vmatpush2.bf16.xpose.msra.mxu0 0
        %1626 = vmatprep.subr.bf16.mxu0 0
        %1627 = vmatpush2.bf16.xpose.msra.mxu0 0
        %1628 = vmatprep.subr.bf16.mxu0 0
        %1629 = vmatpush2.bf16.xpose.msra.mxu0 0
        %1630 = vmatprep.subr.bf16.mxu0 0
        %1631 = vmatpush2.bf16.xpose.msra.mxu0 0
        %1632 = vmatprep.mubr.bf16.mxu0 0
        %1633 = vmatmul.mubr.bf16.gmra.mxu0 %v1595
        %v1634 = vpop.f32.mrf.mxu0
        %v1635 = vadd.f32 0.0, %v1634
        %v1636 = vpop.f32.mrf.mxu0
        %v1637 = vpop.f32.mrf.mxu0
        %v1638 = vpop.f32.mrf.mxu0
        %1639 = vdwg.mxu0
        %v1640 = vmul.f32 %v1488, 0.35355338
        %v1641 = vmul.f32 %v1537, 0.35355338
        %v1642 = vmul.f32 %v1586, 0.35355338
        %v1643 = vmul.f32 %v1635, 0.35355338
        %v1644 = vlaneseq
        %v1645 = vshrl.u32 %v1644, 7
        %v1646 = vlaneseq
        %v1647 = vand.u32 %v1646, 127
        %vm1648 = vcmp.le.s32.totalorder %v1647, %v1645
        %v1649 = vsel %vm1648, %v1640, -1e+09
        %v1650 = vsel %vm1648, %v1641, -1e+09
        %v1651 = vsel %vm1648, %v1642, -1e+09
        %v1652 = vsel %vm1648, %v1643, -1e+09
        %v1653 = vsel %vm1446, %v1649, -inf
        %1654 = vmax.xlane.f32.xlu0 %v1653
        %v1655 = vpop.xlane.xlu0 %1654
        %v1656 = vsel %vm1446, %v1650, -inf
        %1657 = vmax.xlane.f32.xlu0 %v1656
        %v1658 = vpop.xlane.xlu0 %1657
        %v1659 = vsel %vm1446, %v1651, -inf
        %1660 = vmax.xlane.f32.xlu0 %v1659
        %v1661 = vpop.xlane.xlu0 %1660
        %v1662 = vsel %vm1446, %v1652, -inf
        %1663 = vmax.xlane.f32.xlu0 %v1662
        %v1664 = vpop.xlane.xlu0 %1663
        %v1665 = vsub.f32 %v1649, %v1655
        %v1666 = vsub.f32 %v1650, %v1658
        %v1667 = vsub.f32 %v1651, %v1661
        %v1668 = vsub.f32 %v1652, %v1664
        %v1669 = vmul.f32 %v1665, 1.442695
        %v1670 = vpow.pop %v1669
        %v1671 = vmul.f32 %v1666, 1.442695
        %v1672 = vpow.pop %v1671
        %v1673 = vmul.f32 %v1667, 1.442695
        %v1674 = vpow.pop %v1673
        %v1675 = vmul.f32 %v1668, 1.442695
        %v1676 = vpow.pop %v1675
        %v1677 = vsel %vm1446, %v1670, 0.0
        %1678 = vadd.xlane.f32.xlu0 %v1677
        %v1679 = vpop.xlane.xlu0 %1678
        %v1680 = vsel %vm1446, %v1672, 0.0
        %1681 = vadd.xlane.f32.xlu0 %v1680
        %v1682 = vpop.xlane.xlu0 %1681
        %v1683 = vsel %vm1446, %v1674, 0.0
        %1684 = vadd.xlane.f32.xlu0 %v1683
        %v1685 = vpop.xlane.xlu0 %1684
        %v1686 = vsel %vm1446, %v1676, 0.0
        %1687 = vadd.xlane.f32.xlu0 %v1686
        %v1688 = vpop.xlane.xlu0 %1687
        %v1689 = vrcp.pop %v1679
        %v1690 = vrcp.pop %v1682
        %v1691 = vrcp.pop %v1685
        %v1692 = vrcp.pop %v1688
        %v1693 = vmul.f32 %v1670, %v1689
        %v1694 = vmul.f32 %v1672, %v1690
        %v1695 = vmul.f32 %v1674, %v1691
        %v1696 = vmul.f32 %v1676, %v1692
        %v1697 = vpack.c.bf16 %v1693, %v1693
        %v1698 = vpack.c.bf16 %v1694, %v1694
        %v1699 = vpack.c.bf16 %v1695, %v1695
        %v1700 = vpack.c.bf16 %v1696, %v1696
        %1701 = vrot.lane.b32.xlu0 %v1439, 64
        %v1702 = vpop.permute.xlu0 %1701
        %v1704 = vsel %vm1446, %v1697, 0
        %vm1706 = vcmask 1043456
        %v1708 = vsel %vm1706, %v1702, 0
        %1710 = vmatprep.subr.bf16.mxu0 0
        %1711 = vmatpush1.bf16.msra.mxu0 0
        %1712 = vmatprep.subr.bf16.mxu0 0
        %1713 = vmatpush1.bf16.msra.mxu0 0
        %1714 = vmatprep.subr.bf16.mxu0 0
        %1715 = vmatpush1.bf16.msra.mxu0 0
        %1716 = vmatprep.subr.bf16.mxu0 0
        %1717 = vmatpush1.bf16.msra.mxu0 0
        %1718 = vmatprep.subr.bf16.mxu0 0
        %1719 = vmatpush1.bf16.msra.mxu0 0
        %1720 = vmatprep.subr.bf16.mxu0 0
        %1721 = vmatpush1.bf16.msra.mxu0 0
        %1722 = vmatprep.subr.bf16.mxu0 0
        %1723 = vmatpush1.bf16.msra.mxu0 0
        %1724 = vmatprep.subr.bf16.mxu0 0
        %1725 = vmatpush1.bf16.msra.mxu0 %v1708
        %1726 = vmatprep.subr.bf16.mxu0 0
        %1727 = vmatpush2.bf16.msra.mxu0 0
        %1728 = vmatprep.subr.bf16.mxu0 0
        %1729 = vmatpush2.bf16.msra.mxu0 0
        %1730 = vmatprep.subr.bf16.mxu0 0
        %1731 = vmatpush2.bf16.msra.mxu0 0
        %1732 = vmatprep.subr.bf16.mxu0 0
        %1733 = vmatpush2.bf16.msra.mxu0 0
        %1734 = vmatprep.subr.bf16.mxu0 0
        %1735 = vmatpush2.bf16.msra.mxu0 0
        %1736 = vmatprep.subr.bf16.mxu0 0
        %1737 = vmatpush2.bf16.msra.mxu0 0
        %1738 = vmatprep.subr.bf16.mxu0 0
        %1739 = vmatpush2.bf16.msra.mxu0 0
        %1740 = vmatprep.subr.bf16.mxu0 0
        %1741 = vmatpush2.bf16.msra.mxu0 0
        %1742 = vmatprep.mubr.bf16.mxu0 0
        %1743 = vmatmul.mubr.bf16.gmra.mxu0 %v1704
        %v1744 = vpop.f32.mrf.mxu0
        %v1745 = vadd.f32 0.0, %v1744
        %v1746 = vpop.f32.mrf.mxu0
        %v1747 = vpop.f32.mrf.mxu0
        %v1748 = vpop.f32.mrf.mxu0
        %1749 = vdwg.mxu0
        %1750 = vrot.lane.b32.xlu0 %v1440, 64
        %v1751 = vpop.permute.xlu0 %1750
        %v1753 = vsel %vm1446, %v1698, 0
        %v1756 = vsel %vm1706, %v1751, 0
        %1758 = vmatprep.subr.bf16.mxu0 0
        %1759 = vmatpush1.bf16.msra.mxu0 0
        %1760 = vmatprep.subr.bf16.mxu0 0
        %1761 = vmatpush1.bf16.msra.mxu0 0
        %1762 = vmatprep.subr.bf16.mxu0 0
        %1763 = vmatpush1.bf16.msra.mxu0 0
        %1764 = vmatprep.subr.bf16.mxu0 0
        %1765 = vmatpush1.bf16.msra.mxu0 0
        %1766 = vmatprep.subr.bf16.mxu0 0
        %1767 = vmatpush1.bf16.msra.mxu0 0
        %1768 = vmatprep.subr.bf16.mxu0 0
        %1769 = vmatpush1.bf16.msra.mxu0 0
        %1770 = vmatprep.subr.bf16.mxu0 0
        %1771 = vmatpush1.bf16.msra.mxu0 0
        %1772 = vmatprep.subr.bf16.mxu0 0
        %1773 = vmatpush1.bf16.msra.mxu0 %v1756
        %1774 = vmatprep.subr.bf16.mxu0 0
        %1775 = vmatpush2.bf16.msra.mxu0 0
        %1776 = vmatprep.subr.bf16.mxu0 0
        %1777 = vmatpush2.bf16.msra.mxu0 0
        %1778 = vmatprep.subr.bf16.mxu0 0
        %1779 = vmatpush2.bf16.msra.mxu0 0
        %1780 = vmatprep.subr.bf16.mxu0 0
        %1781 = vmatpush2.bf16.msra.mxu0 0
        %1782 = vmatprep.subr.bf16.mxu0 0
        %1783 = vmatpush2.bf16.msra.mxu0 0
        %1784 = vmatprep.subr.bf16.mxu0 0
        %1785 = vmatpush2.bf16.msra.mxu0 0
        %1786 = vmatprep.subr.bf16.mxu0 0
        %1787 = vmatpush2.bf16.msra.mxu0 0
        %1788 = vmatprep.subr.bf16.mxu0 0
        %1789 = vmatpush2.bf16.msra.mxu0 0
        %1790 = vmatprep.mubr.bf16.mxu0 0
        %1791 = vmatmul.mubr.bf16.gmra.mxu0 %v1753
        %v1792 = vpop.f32.mrf.mxu0
        %v1793 = vadd.f32 0.0, %v1792
        %v1794 = vpop.f32.mrf.mxu0
        %v1795 = vpop.f32.mrf.mxu0
        %v1796 = vpop.f32.mrf.mxu0
        %1797 = vdwg.mxu0
        %1798 = vrot.lane.b32.xlu0 %v1441, 64
        %v1799 = vpop.permute.xlu0 %1798
        %v1801 = vsel %vm1446, %v1699, 0
        %v1804 = vsel %vm1706, %v1799, 0
        %1806 = vmatprep.subr.bf16.mxu0 0
        %1807 = vmatpush1.bf16.msra.mxu0 0
        %1808 = vmatprep.subr.bf16.mxu0 0
        %1809 = vmatpush1.bf16.msra.mxu0 0
        %1810 = vmatprep.subr.bf16.mxu0 0
        %1811 = vmatpush1.bf16.msra.mxu0 0
        %1812 = vmatprep.subr.bf16.mxu0 0
        %1813 = vmatpush1.bf16.msra.mxu0 0
        %1814 = vmatprep.subr.bf16.mxu0 0
        %1815 = vmatpush1.bf16.msra.mxu0 0
        %1816 = vmatprep.subr.bf16.mxu0 0
        %1817 = vmatpush1.bf16.msra.mxu0 0
        %1818 = vmatprep.subr.bf16.mxu0 0
        %1819 = vmatpush1.bf16.msra.mxu0 0
        %1820 = vmatprep.subr.bf16.mxu0 0
        %1821 = vmatpush1.bf16.msra.mxu0 %v1804
        %1822 = vmatprep.subr.bf16.mxu0 0
        %1823 = vmatpush2.bf16.msra.mxu0 0
        %1824 = vmatprep.subr.bf16.mxu0 0
        %1825 = vmatpush2.bf16.msra.mxu0 0
        %1826 = vmatprep.subr.bf16.mxu0 0
        %1827 = vmatpush2.bf16.msra.mxu0 0
        %1828 = vmatprep.subr.bf16.mxu0 0
        %1829 = vmatpush2.bf16.msra.mxu0 0
        %1830 = vmatprep.subr.bf16.mxu0 0
        %1831 = vmatpush2.bf16.msra.mxu0 0
        %1832 = vmatprep.subr.bf16.mxu0 0
        %1833 = vmatpush2.bf16.msra.mxu0 0
        %1834 = vmatprep.subr.bf16.mxu0 0
        %1835 = vmatpush2.bf16.msra.mxu0 0
        %1836 = vmatprep.subr.bf16.mxu0 0
        %1837 = vmatpush2.bf16.msra.mxu0 0
        %1838 = vmatprep.mubr.bf16.mxu0 0
        %1839 = vmatmul.mubr.bf16.gmra.mxu0 %v1801
        %v1840 = vpop.f32.mrf.mxu0
        %v1841 = vadd.f32 0.0, %v1840
        %v1842 = vpop.f32.mrf.mxu0
        %v1843 = vpop.f32.mrf.mxu0
        %v1844 = vpop.f32.mrf.mxu0
        %1845 = vdwg.mxu0
        %1846 = vrot.lane.b32.xlu0 %v1442, 64
        %v1847 = vpop.permute.xlu0 %1846
        %v1849 = vsel %vm1446, %v1700, 0
        %v1852 = vsel %vm1706, %v1847, 0
        %1854 = vmatprep.subr.bf16.mxu0 0
        %1855 = vmatpush1.bf16.msra.mxu0 0
        %1856 = vmatprep.subr.bf16.mxu0 0
        %1857 = vmatpush1.bf16.msra.mxu0 0
        %1858 = vmatprep.subr.bf16.mxu0 0
        %1859 = vmatpush1.bf16.msra.mxu0 0
        %1860 = vmatprep.subr.bf16.mxu0 0
        %1861 = vmatpush1.bf16.msra.mxu0 0
        %1862 = vmatprep.subr.bf16.mxu0 0
        %1863 = vmatpush1.bf16.msra.mxu0 0
        %1864 = vmatprep.subr.bf16.mxu0 0
        %1865 = vmatpush1.bf16.msra.mxu0 0
        %1866 = vmatprep.subr.bf16.mxu0 0
        %1867 = vmatpush1.bf16.msra.mxu0 0
        %1868 = vmatprep.subr.bf16.mxu0 0
        %1869 = vmatpush1.bf16.msra.mxu0 %v1852
        %1870 = vmatprep.subr.bf16.mxu0 0
        %1871 = vmatpush2.bf16.msra.mxu0 0
        %1872 = vmatprep.subr.bf16.mxu0 0
        %1873 = vmatpush2.bf16.msra.mxu0 0
        %1874 = vmatprep.subr.bf16.mxu0 0
        %1875 = vmatpush2.bf16.msra.mxu0 0
        %1876 = vmatprep.subr.bf16.mxu0 0
        %1877 = vmatpush2.bf16.msra.mxu0 0
        %1878 = vmatprep.subr.bf16.mxu0 0
        %1879 = vmatpush2.bf16.msra.mxu0 0
        %1880 = vmatprep.subr.bf16.mxu0 0
        %1881 = vmatpush2.bf16.msra.mxu0 0
        %1882 = vmatprep.subr.bf16.mxu0 0
        %1883 = vmatpush2.bf16.msra.mxu0 0
        %1884 = vmatprep.subr.bf16.mxu0 0
        %1885 = vmatpush2.bf16.msra.mxu0 0
        %1886 = vmatprep.mubr.bf16.mxu0 0
        %1887 = vmatmul.mubr.bf16.gmra.mxu0 %v1849
        %v1888 = vpop.f32.mrf.mxu0
        %v1889 = vadd.f32 0.0, %v1888
        %v1890 = vpop.f32.mrf.mxu0
        %v1891 = vpop.f32.mrf.mxu0
        %v1892 = vpop.f32.mrf.mxu0
        %1893 = vdwg.mxu0
        %v1894 = vpack.c.bf16 %v1745, %v1745
        %v1895 = vpack.c.bf16 %v1793, %v1793
        %v1896 = vpack.c.bf16 %v1841, %v1841
        %v1897 = vpack.c.bf16 %v1889, %v1889
        %v1899 = vsel %vm1446, %v1894, 0
        %v1902 = vsel %vm1706, %v1424, 0
        %1904 = vmatprep.subr.bf16.mxu0 0
        %1905 = vmatpush1.bf16.msra.mxu0 0
        %1906 = vmatprep.subr.bf16.mxu0 0
        %1907 = vmatpush1.bf16.msra.mxu0 0
        %1908 = vmatprep.subr.bf16.mxu0 0
        %1909 = vmatpush1.bf16.msra.mxu0 0
        %1910 = vmatprep.subr.bf16.mxu0 0
        %1911 = vmatpush1.bf16.msra.mxu0 0
        %1912 = vmatprep.subr.bf16.mxu0 0
        %1913 = vmatpush1.bf16.msra.mxu0 0
        %1914 = vmatprep.subr.bf16.mxu0 0
        %1915 = vmatpush1.bf16.msra.mxu0 0
        %1916 = vmatprep.subr.bf16.mxu0 0
        %1917 = vmatpush1.bf16.msra.mxu0 0
        %1918 = vmatprep.subr.bf16.mxu0 0
        %1919 = vmatpush1.bf16.msra.mxu0 %v1902
        %1920 = vmatprep.subr.bf16.mxu0 0
        %1921 = vmatpush2.bf16.msra.mxu0 0
        %1922 = vmatprep.subr.bf16.mxu0 0
        %1923 = vmatpush2.bf16.msra.mxu0 0
        %1924 = vmatprep.subr.bf16.mxu0 0
        %1925 = vmatpush2.bf16.msra.mxu0 0
        %1926 = vmatprep.subr.bf16.mxu0 0
        %1927 = vmatpush2.bf16.msra.mxu0 0
        %1928 = vmatprep.subr.bf16.mxu0 0
        %1929 = vmatpush2.bf16.msra.mxu0 0
        %1930 = vmatprep.subr.bf16.mxu0 0
        %1931 = vmatpush2.bf16.msra.mxu0 0
        %1932 = vmatprep.subr.bf16.mxu0 0
        %1933 = vmatpush2.bf16.msra.mxu0 0
        %1934 = vmatprep.subr.bf16.mxu0 0
        %1935 = vmatpush2.bf16.msra.mxu0 0
        %1936 = vmatprep.mubr.bf16.mxu0 0
        %1937 = vmatmul.mubr.bf16.gmra.mxu0 %v1899
        %v1938 = vpop.f32.mrf.mxu0
        %v1939 = vadd.f32 0.0, %v1938
        %v1940 = vpop.f32.mrf.mxu0
        %v1941 = vpop.f32.mrf.mxu0
        %v1942 = vpop.f32.mrf.mxu0
        %1943 = vdwg.mxu0
        %v1945 = vsel %vm1446, %v1895, 0
        %v1948 = vsel %vm1706, %v1425, 0
        %1950 = vmatprep.subr.bf16.mxu0 0
        %1951 = vmatpush1.bf16.msra.mxu0 0
        %1952 = vmatprep.subr.bf16.mxu0 0
        %1953 = vmatpush1.bf16.msra.mxu0 0
        %1954 = vmatprep.subr.bf16.mxu0 0
        %1955 = vmatpush1.bf16.msra.mxu0 0
        %1956 = vmatprep.subr.bf16.mxu0 0
        %1957 = vmatpush1.bf16.msra.mxu0 0
        %1958 = vmatprep.subr.bf16.mxu0 0
        %1959 = vmatpush1.bf16.msra.mxu0 0
        %1960 = vmatprep.subr.bf16.mxu0 0
        %1961 = vmatpush1.bf16.msra.mxu0 0
        %1962 = vmatprep.subr.bf16.mxu0 0
        %1963 = vmatpush1.bf16.msra.mxu0 0
        %1964 = vmatprep.subr.bf16.mxu0 0
        %1965 = vmatpush1.bf16.msra.mxu0 %v1948
        %1966 = vmatprep.subr.bf16.mxu0 0
        %1967 = vmatpush2.bf16.msra.mxu0 0
        %1968 = vmatprep.subr.bf16.mxu0 0
        %1969 = vmatpush2.bf16.msra.mxu0 0
        %1970 = vmatprep.subr.bf16.mxu0 0
        %1971 = vmatpush2.bf16.msra.mxu0 0
        %1972 = vmatprep.subr.bf16.mxu0 0
        %1973 = vmatpush2.bf16.msra.mxu0 0
        %1974 = vmatprep.subr.bf16.mxu0 0
        %1975 = vmatpush2.bf16.msra.mxu0 0
        %1976 = vmatprep.subr.bf16.mxu0 0
        %1977 = vmatpush2.bf16.msra.mxu0 0
        %1978 = vmatprep.subr.bf16.mxu0 0
        %1979 = vmatpush2.bf16.msra.mxu0 0
        %1980 = vmatprep.subr.bf16.mxu0 0
        %1981 = vmatpush2.bf16.msra.mxu0 0
        %1982 = vmatprep.mubr.bf16.mxu0 0
        %1983 = vmatmul.mubr.bf16.gmra.mxu0 %v1945
        %v1984 = vpop.f32.mrf.mxu0
        %v1985 = vadd.f32 0.0, %v1984
        %v1986 = vpop.f32.mrf.mxu0
        %v1987 = vpop.f32.mrf.mxu0
        %v1988 = vpop.f32.mrf.mxu0
        %1989 = vdwg.mxu0
        %v1991 = vsel %vm1446, %v1896, 0
        %v1994 = vsel %vm1706, %v1426, 0
        %1996 = vmatprep.subr.bf16.mxu0 0
        %1997 = vmatpush1.bf16.msra.mxu0 0
        %1998 = vmatprep.subr.bf16.mxu0 0
        %1999 = vmatpush1.bf16.msra.mxu0 0
        %2000 = vmatprep.subr.bf16.mxu0 0
        %2001 = vmatpush1.bf16.msra.mxu0 0
        %2002 = vmatprep.subr.bf16.mxu0 0
        %2003 = vmatpush1.bf16.msra.mxu0 0
        %2004 = vmatprep.subr.bf16.mxu0 0
        %2005 = vmatpush1.bf16.msra.mxu0 0
        %2006 = vmatprep.subr.bf16.mxu0 0
        %2007 = vmatpush1.bf16.msra.mxu0 0
        %2008 = vmatprep.subr.bf16.mxu0 0
        %2009 = vmatpush1.bf16.msra.mxu0 0
        %2010 = vmatprep.subr.bf16.mxu0 0
        %2011 = vmatpush1.bf16.msra.mxu0 %v1994
        %2012 = vmatprep.subr.bf16.mxu0 0
        %2013 = vmatpush2.bf16.msra.mxu0 0
        %2014 = vmatprep.subr.bf16.mxu0 0
        %2015 = vmatpush2.bf16.msra.mxu0 0
        %2016 = vmatprep.subr.bf16.mxu0 0
        %2017 = vmatpush2.bf16.msra.mxu0 0
        %2018 = vmatprep.subr.bf16.mxu0 0
        %2019 = vmatpush2.bf16.msra.mxu0 0
        %2020 = vmatprep.subr.bf16.mxu0 0
        %2021 = vmatpush2.bf16.msra.mxu0 0
        %2022 = vmatprep.subr.bf16.mxu0 0
        %2023 = vmatpush2.bf16.msra.mxu0 0
        %2024 = vmatprep.subr.bf16.mxu0 0
        %2025 = vmatpush2.bf16.msra.mxu0 0
        %2026 = vmatprep.subr.bf16.mxu0 0
        %2027 = vmatpush2.bf16.msra.mxu0 0
        %2028 = vmatprep.mubr.bf16.mxu0 0
        %2029 = vmatmul.mubr.bf16.gmra.mxu0 %v1991
        %v2030 = vpop.f32.mrf.mxu0
        %v2031 = vadd.f32 0.0, %v2030
        %v2032 = vpop.f32.mrf.mxu0
        %v2033 = vpop.f32.mrf.mxu0
        %v2034 = vpop.f32.mrf.mxu0
        %2035 = vdwg.mxu0
        %v2037 = vsel %vm1446, %v1897, 0
        %v2040 = vsel %vm1706, %v1427, 0
        %2042 = vmatprep.subr.bf16.mxu0 0
        %2043 = vmatpush1.bf16.msra.mxu0 0
        %2044 = vmatprep.subr.bf16.mxu0 0
        %2045 = vmatpush1.bf16.msra.mxu0 0
        %2046 = vmatprep.subr.bf16.mxu0 0
        %2047 = vmatpush1.bf16.msra.mxu0 0
        %2048 = vmatprep.subr.bf16.mxu0 0
        %2049 = vmatpush1.bf16.msra.mxu0 0
        %2050 = vmatprep.subr.bf16.mxu0 0
        %2051 = vmatpush1.bf16.msra.mxu0 0
        %2052 = vmatprep.subr.bf16.mxu0 0
        %2053 = vmatpush1.bf16.msra.mxu0 0
        %2054 = vmatprep.subr.bf16.mxu0 0
        %2055 = vmatpush1.bf16.msra.mxu0 0
        %2056 = vmatprep.subr.bf16.mxu0 0
        %2057 = vmatpush1.bf16.msra.mxu0 %v2040
        %2058 = vmatprep.subr.bf16.mxu0 0
        %2059 = vmatpush2.bf16.msra.mxu0 0
        %2060 = vmatprep.subr.bf16.mxu0 0
        %2061 = vmatpush2.bf16.msra.mxu0 0
        %2062 = vmatprep.subr.bf16.mxu0 0
        %2063 = vmatpush2.bf16.msra.mxu0 0
        %2064 = vmatprep.subr.bf16.mxu0 0
        %2065 = vmatpush2.bf16.msra.mxu0 0
        %2066 = vmatprep.subr.bf16.mxu0 0
        %2067 = vmatpush2.bf16.msra.mxu0 0
        %2068 = vmatprep.subr.bf16.mxu0 0
        %2069 = vmatpush2.bf16.msra.mxu0 0
        %2070 = vmatprep.subr.bf16.mxu0 0
        %2071 = vmatpush2.bf16.msra.mxu0 0
        %2072 = vmatprep.subr.bf16.mxu0 0
        %2073 = vmatpush2.bf16.msra.mxu0 0
        %2074 = vmatprep.mubr.bf16.mxu0 0
        %2075 = vmatmul.mubr.bf16.gmra.mxu0 %v2037
        %v2076 = vpop.f32.mrf.mxu0
        %v2077 = vadd.f32 0.0, %v2076
        %v2078 = vpop.f32.mrf.mxu0
        %v2079 = vpop.f32.mrf.mxu0
        %v2080 = vpop.f32.mrf.mxu0
        %2081 = vdwg.mxu0
        %v2082 = vsel %vm1380, %v1939, 0.0
        %v2083 = vsel %vm1380, %v1985, 0.0
        %v2084 = vadd.f32 %v2082, %v2083
        %v2085 = vsel %vm1380, %v2031, 0.0
        %v2086 = vadd.f32 %v2084, %v2085
        %v2087 = vsel %vm1380, %v2077, 0.0
        %v2088 = vadd.f32 %v2086, %v2087
        %v2090 = vlaneseq
        %v2091 = vshrl.u32 %v2090, 7
        %v2092 = vsub.s32 0, %v2091
        %v2093 = vrot.slane %v1428, %v2092
        %v2095 = vadd.f32 %v2088, %v2093
        %v2096 = vadd.f32 %v1354, %v2095
        %v2097 = vld [vmem:[%s1104] sm:$0x1]
        %v2098 = vld [vmem:[%s1112] sm:$0x1]
        %v2099 = vsel %vm1380, %v2096, 0.0
        %2100 = vadd.xlane.f32.xlu0 %v2099
        %v2101 = vpop.xlane.xlu0 %2100
        %v2102 = vrcp.pop 32.0
        %v2103 = vmul.f32 %v2101, %v2102
        %v2104 = vsub.f32 %v2096, %v2103
        %v2105 = vmul.f32 %v2104, %v2104
        %v2106 = vsel %vm1380, %v2105, 0.0
        %2107 = vadd.xlane.f32.xlu0 %v2106
        %v2108 = vpop.xlane.xlu0 %2107
        %v2109 = vmul.f32 %v2108, %v2102
        %v2110 = vadd.f32 %v2109, 1e-05
        %v2111 = vrsqrt.pop %v2110
        %v2112 = vmul.f32 %v2104, %v2111
        %v2114 = vlaneseq
        %v2115 = vshrl.u32 %v2114, 7
        %v2116 = vsub.s32 0, %v2115
        %v2117 = vrot.slane %v2097, %v2116
        %v2119 = vmul.f32 %v2112, %v2117
        %v2121 = vlaneseq
        %v2122 = vshrl.u32 %v2121, 7
        %v2123 = vsub.s32 0, %v2122
        %v2124 = vrot.slane %v2098, %v2123
        %v2126 = vadd.f32 %v2119, %v2124
        %v2127 = vpack.c.bf16 %v2126, %v2126
        %v2128 = vld [vmem:[%s1322] sm:$0xf]
        %v2129 = vld [vmem:[%s1322 + $0x4] sm:$0xf]
        %v2130 = vld [vmem:[%s1322 + $0x8] sm:$0xf]
        %v2131 = vld [vmem:[%s1322 + $0xc] sm:$0xf]
        %v2132 = vld [vmem:[%s1080] sm:$0x1]
        %v2134 = vlaneseq
        %v2135 = vshrl.u32 %v2134, 7
        %v2136 = vsub.s32 0, %v2135
        %v2137 = vrot.slane %v2132, %v2136
        %v2143 = vunpack.c.l.b16 %v2128
        %v2144 = vunpack.c.l.b16 %v2129
        %v2145 = vunpack.c.l.b16 %v2130
        %v2146 = vunpack.c.l.b16 %v2131
        %v2147 = vpack.c.b16 %v2144, %v2143
        %v2148 = vpack.c.b16 %v2146, %v2145
        %v2152 = vsel %vm1380, %v2127, 0
        %2154 = vmatprep.subr.bf16.mxu0 0
        %2155 = vmatpush1.bf16.msra.mxu0 0
        %2156 = vmatprep.subr.bf16.mxu0 0
        %2157 = vmatpush1.bf16.msra.mxu0 0
        %2158 = vmatprep.subr.bf16.mxu0 0
        %2159 = vmatpush1.bf16.msra.mxu0 0
        %2160 = vmatprep.subr.bf16.mxu0 0
        %2161 = vmatpush1.bf16.msra.mxu0 0
        %2162 = vmatprep.subr.bf16.mxu0 0
        %2163 = vmatpush1.bf16.msra.mxu0 0
        %2164 = vmatprep.subr.bf16.mxu0 0
        %2165 = vmatpush1.bf16.msra.mxu0 0
        %2166 = vmatprep.subr.bf16.mxu0 0
        %2167 = vmatpush1.bf16.msra.mxu0 %v2148
        %2168 = vmatprep.subr.bf16.mxu0 0
        %2169 = vmatpush1.bf16.msra.mxu0 %v2147
        %2170 = vmatprep.subr.bf16.mxu0 0
        %2171 = vmatpush2.bf16.msra.mxu0 0
        %2172 = vmatprep.subr.bf16.mxu0 0
        %2173 = vmatpush2.bf16.msra.mxu0 0
        %2174 = vmatprep.subr.bf16.mxu0 0
        %2175 = vmatpush2.bf16.msra.mxu0 0
        %2176 = vmatprep.subr.bf16.mxu0 0
        %2177 = vmatpush2.bf16.msra.mxu0 0
        %2178 = vmatprep.subr.bf16.mxu0 0
        %2179 = vmatpush2.bf16.msra.mxu0 0
        %2180 = vmatprep.subr.bf16.mxu0 0
        %2181 = vmatpush2.bf16.msra.mxu0 0
        %2182 = vmatprep.subr.bf16.mxu0 0
        %2183 = vmatpush2.bf16.msra.mxu0 0
        %2184 = vmatprep.subr.bf16.mxu0 0
        %2185 = vmatpush2.bf16.msra.mxu0 0
        %2186 = vmatprep.mubr.bf16.mxu0 0
        %2187 = vmatmul.mubr.bf16.gmra.mxu0 %v2152
        %v2188 = vpop.f32.mrf.mxu0
        %v2189 = vadd.f32 %v2137, %v2188
        %v2190 = vpop.f32.mrf.mxu0
        %v2191 = vpop.f32.mrf.mxu0
        %v2192 = vpop.f32.mrf.mxu0
        %2193 = vdwg.mxu0
        %v2194 = vpack.c.bf16 %v1355, %v1355
        %v2195 = vld [vmem:[%s1327] sm:$0xf]
        %v2196 = vld [vmem:[%s1327 + $0x4] sm:$0xf]
        %v2197 = vld [vmem:[%s1327 + $0x8] sm:$0xf]
        %v2198 = vld [vmem:[%s1327 + $0xc] sm:$0xf]
        %v2199 = vld [vmem:[%s1088] sm:$0x1]
        %v2201 = vlaneseq
        %v2202 = vshrl.u32 %v2201, 7
        %v2203 = vsub.s32 0, %v2202
        %v2204 = vrot.slane %v2199, %v2203
        %v2210 = vunpack.c.l.b16 %v2195
        %v2211 = vunpack.c.l.b16 %v2196
        %v2212 = vunpack.c.l.b16 %v2197
        %v2213 = vunpack.c.l.b16 %v2198
        %v2214 = vpack.c.b16 %v2211, %v2210
        %v2215 = vpack.c.b16 %v2213, %v2212
        %v2219 = vsel %vm1380, %v2194, 0
        %2221 = vmatprep.subr.bf16.mxu0 0
        %2222 = vmatpush1.bf16.msra.mxu0 0
        %2223 = vmatprep.subr.bf16.mxu0 0
        %2224 = vmatpush1.bf16.msra.mxu0 0
        %2225 = vmatprep.subr.bf16.mxu0 0
        %2226 = vmatpush1.bf16.msra.mxu0 0
        %2227 = vmatprep.subr.bf16.mxu0 0
        %2228 = vmatpush1.bf16.msra.mxu0 0
        %2229 = vmatprep.subr.bf16.mxu0 0
        %2230 = vmatpush1.bf16.msra.mxu0 0
        %2231 = vmatprep.subr.bf16.mxu0 0
        %2232 = vmatpush1.bf16.msra.mxu0 0
        %2233 = vmatprep.subr.bf16.mxu0 0
        %2234 = vmatpush1.bf16.msra.mxu0 %v2215
        %2235 = vmatprep.subr.bf16.mxu0 0
        %2236 = vmatpush1.bf16.msra.mxu0 %v2214
        %2237 = vmatprep.subr.bf16.mxu0 0
        %2238 = vmatpush2.bf16.msra.mxu0 0
        %2239 = vmatprep.subr.bf16.mxu0 0
        %2240 = vmatpush2.bf16.msra.mxu0 0
        %2241 = vmatprep.subr.bf16.mxu0 0
        %2242 = vmatpush2.bf16.msra.mxu0 0
        %2243 = vmatprep.subr.bf16.mxu0 0
        %2244 = vmatpush2.bf16.msra.mxu0 0
        %2245 = vmatprep.subr.bf16.mxu0 0
        %2246 = vmatpush2.bf16.msra.mxu0 0
        %2247 = vmatprep.subr.bf16.mxu0 0
        %2248 = vmatpush2.bf16.msra.mxu0 0
        %2249 = vmatprep.subr.bf16.mxu0 0
        %2250 = vmatpush2.bf16.msra.mxu0 0
        %2251 = vmatprep.subr.bf16.mxu0 0
        %2252 = vmatpush2.bf16.msra.mxu0 0
        %2253 = vmatprep.mubr.bf16.mxu0 0
        %2254 = vmatmul.mubr.bf16.gmra.mxu0 %v2219
        %v2255 = vpop.f32.mrf.mxu0
        %v2256 = vadd.f32 %v2204, %v2255
        %v2257 = vpop.f32.mrf.mxu0
        %v2258 = vpop.f32.mrf.mxu0
        %v2259 = vpop.f32.mrf.mxu0
        %2260 = vdwg.mxu0
        %v2261 = vld [vmem:[%s1332] sm:$0xf]
        %v2262 = vld [vmem:[%s1332 + $0x4] sm:$0xf]
        %v2263 = vld [vmem:[%s1332 + $0x8] sm:$0xf]
        %v2264 = vld [vmem:[%s1332 + $0xc] sm:$0xf]
        %v2265 = vld [vmem:[%s1096] sm:$0x1]
        %2267 = vrot.lane.b32.xlu0 %v2189, 120
        %v2268 = vpop.permute.xlu0 %2267
        %2270 = vrot.lane.b32.xlu0 %v2189, 112
        %v2271 = vpop.permute.xlu0 %2270
        %2273 = vrot.lane.b32.xlu0 %v2189, 104
        %v2274 = vpop.permute.xlu0 %2273
        %v2276 = vpack.c.bf16 %v2189, %v2189
        %v2277 = vpack.c.bf16 %v2268, %v2268
        %v2278 = vpack.c.bf16 %v2271, %v2271
        %v2279 = vpack.c.bf16 %v2274, %v2274
        %2281 = vrot.lane.b32.xlu0 %v2256, 120
        %v2282 = vpop.permute.xlu0 %2281
        %2284 = vrot.lane.b32.xlu0 %v2256, 112
        %v2285 = vpop.permute.xlu0 %2284
        %2287 = vrot.lane.b32.xlu0 %v2256, 104
        %v2288 = vpop.permute.xlu0 %2287
        %v2290 = vpack.c.bf16 %v2256, %v2256
        %v2291 = vpack.c.bf16 %v2282, %v2282
        %v2292 = vpack.c.bf16 %v2285, %v2285
        %v2293 = vpack.c.bf16 %v2288, %v2288
        %v2295 = vsel %vm1446, %v2276, 0
        %v2298 = vsel %vm1446, %v2290, 0
        %2300 = vmatprep.subr.bf16.mxu0 0
        %2301 = vmatpush1.bf16.xpose.msra.mxu0 0
        %2302 = vmatprep.subr.bf16.mxu0 0
        %2303 = vmatpush1.bf16.xpose.msra.mxu0 0
        %2304 = vmatprep.subr.bf16.mxu0 0
        %2305 = vmatpush1.bf16.xpose.msra.mxu0 0
        %2306 = vmatprep.subr.bf16.mxu0 0
        %2307 = vmatpush1.bf16.xpose.msra.mxu0 0
        %2308 = vmatprep.subr.bf16.mxu0 0
        %2309 = vmatpush1.bf16.xpose.msra.mxu0 0
        %2310 = vmatprep.subr.bf16.mxu0 0
        %2311 = vmatpush1.bf16.xpose.msra.mxu0 0
        %2312 = vmatprep.subr.bf16.mxu0 0
        %2313 = vmatpush1.bf16.xpose.msra.mxu0 0
        %2314 = vmatprep.subr.bf16.mxu0 0
        %2315 = vmatpush1.bf16.xpose.msra.mxu0 %v2298
        %2316 = vmatprep.subr.bf16.mxu0 0
        %2317 = vmatpush2.bf16.xpose.msra.mxu0 0
        %2318 = vmatprep.subr.bf16.mxu0 0
        %2319 = vmatpush2.bf16.xpose.msra.mxu0 0
        %2320 = vmatprep.subr.bf16.mxu0 0
        %2321 = vmatpush2.bf16.xpose.msra.mxu0 0
        %2322 = vmatprep.subr.bf16.mxu0 0
        %2323 = vmatpush2.bf16.xpose.msra.mxu0 0
        %2324 = vmatprep.subr.bf16.mxu0 0
        %2325 = vmatpush2.bf16.xpose.msra.mxu0 0
        %2326 = vmatprep.subr.bf16.mxu0 0
        %2327 = vmatpush2.bf16.xpose.msra.mxu0 0
        %2328 = vmatprep.subr.bf16.mxu0 0
        %2329 = vmatpush2.bf16.xpose.msra.mxu0 0
        %2330 = vmatprep.subr.bf16.mxu0 0
        %2331 = vmatpush2.bf16.xpose.msra.mxu0 0
        %2332 = vmatprep.mubr.bf16.mxu0 0
        %2333 = vmatmul.mubr.bf16.gmra.mxu0 %v2295
        %v2334 = vpop.f32.mrf.mxu0
        %v2335 = vadd.f32 0.0, %v2334
        %v2336 = vpop.f32.mrf.mxu0
        %v2337 = vpop.f32.mrf.mxu0
        %v2338 = vpop.f32.mrf.mxu0
        %2339 = vdwg.mxu0
        %v2341 = vsel %vm1446, %v2277, 0
        %v2344 = vsel %vm1446, %v2291, 0
        %2346 = vmatprep.subr.bf16.mxu0 0
        %2347 = vmatpush1.bf16.xpose.msra.mxu0 0
        %2348 = vmatprep.subr.bf16.mxu0 0
        %2349 = vmatpush1.bf16.xpose.msra.mxu0 0
        %2350 = vmatprep.subr.bf16.mxu0 0
        %2351 = vmatpush1.bf16.xpose.msra.mxu0 0
        %2352 = vmatprep.subr.bf16.mxu0 0
        %2353 = vmatpush1.bf16.xpose.msra.mxu0 0
        %2354 = vmatprep.subr.bf16.mxu0 0
        %2355 = vmatpush1.bf16.xpose.msra.mxu0 0
        %2356 = vmatprep.subr.bf16.mxu0 0
        %2357 = vmatpush1.bf16.xpose.msra.mxu0 0
        %2358 = vmatprep.subr.bf16.mxu0 0
        %2359 = vmatpush1.bf16.xpose.msra.mxu0 0
        %2360 = vmatprep.subr.bf16.mxu0 0
        %2361 = vmatpush1.bf16.xpose.msra.mxu0 %v2344
        %2362 = vmatprep.subr.bf16.mxu0 0
        %2363 = vmatpush2.bf16.xpose.msra.mxu0 0
        %2364 = vmatprep.subr.bf16.mxu0 0
        %2365 = vmatpush2.bf16.xpose.msra.mxu0 0
        %2366 = vmatprep.subr.bf16.mxu0 0
        %2367 = vmatpush2.bf16.xpose.msra.mxu0 0
        %2368 = vmatprep.subr.bf16.mxu0 0
        %2369 = vmatpush2.bf16.xpose.msra.mxu0 0
        %2370 = vmatprep.subr.bf16.mxu0 0
        %2371 = vmatpush2.bf16.xpose.msra.mxu0 0
        %2372 = vmatprep.subr.bf16.mxu0 0
        %2373 = vmatpush2.bf16.xpose.msra.mxu0 0
        %2374 = vmatprep.subr.bf16.mxu0 0
        %2375 = vmatpush2.bf16.xpose.msra.mxu0 0
        %2376 = vmatprep.subr.bf16.mxu0 0
        %2377 = vmatpush2.bf16.xpose.msra.mxu0 0
        %2378 = vmatprep.mubr.bf16.mxu0 0
        %2379 = vmatmul.mubr.bf16.gmra.mxu0 %v2341
        %v2380 = vpop.f32.mrf.mxu0
        %v2381 = vadd.f32 0.0, %v2380
        %v2382 = vpop.f32.mrf.mxu0
        %v2383 = vpop.f32.mrf.mxu0
        %v2384 = vpop.f32.mrf.mxu0
        %2385 = vdwg.mxu0
        %v2387 = vsel %vm1446, %v2278, 0
        %v2390 = vsel %vm1446, %v2292, 0
        %2392 = vmatprep.subr.bf16.mxu0 0
        %2393 = vmatpush1.bf16.xpose.msra.mxu0 0
        %2394 = vmatprep.subr.bf16.mxu0 0
        %2395 = vmatpush1.bf16.xpose.msra.mxu0 0
        %2396 = vmatprep.subr.bf16.mxu0 0
        %2397 = vmatpush1.bf16.xpose.msra.mxu0 0
        %2398 = vmatprep.subr.bf16.mxu0 0
        %2399 = vmatpush1.bf16.xpose.msra.mxu0 0
        %2400 = vmatprep.subr.bf16.mxu0 0
        %2401 = vmatpush1.bf16.xpose.msra.mxu0 0
        %2402 = vmatprep.subr.bf16.mxu0 0
        %2403 = vmatpush1.bf16.xpose.msra.mxu0 0
        %2404 = vmatprep.subr.bf16.mxu0 0
        %2405 = vmatpush1.bf16.xpose.msra.mxu0 0
        %2406 = vmatprep.subr.bf16.mxu0 0
        %2407 = vmatpush1.bf16.xpose.msra.mxu0 %v2390
        %2408 = vmatprep.subr.bf16.mxu0 0
        %2409 = vmatpush2.bf16.xpose.msra.mxu0 0
        %2410 = vmatprep.subr.bf16.mxu0 0
        %2411 = vmatpush2.bf16.xpose.msra.mxu0 0
        %2412 = vmatprep.subr.bf16.mxu0 0
        %2413 = vmatpush2.bf16.xpose.msra.mxu0 0
        %2414 = vmatprep.subr.bf16.mxu0 0
        %2415 = vmatpush2.bf16.xpose.msra.mxu0 0
        %2416 = vmatprep.subr.bf16.mxu0 0
        %2417 = vmatpush2.bf16.xpose.msra.mxu0 0
        %2418 = vmatprep.subr.bf16.mxu0 0
        %2419 = vmatpush2.bf16.xpose.msra.mxu0 0
        %2420 = vmatprep.subr.bf16.mxu0 0
        %2421 = vmatpush2.bf16.xpose.msra.mxu0 0
        %2422 = vmatprep.subr.bf16.mxu0 0
        %2423 = vmatpush2.bf16.xpose.msra.mxu0 0
        %2424 = vmatprep.mubr.bf16.mxu0 0
        %2425 = vmatmul.mubr.bf16.gmra.mxu0 %v2387
        %v2426 = vpop.f32.mrf.mxu0
        %v2427 = vadd.f32 0.0, %v2426
        %v2428 = vpop.f32.mrf.mxu0
        %v2429 = vpop.f32.mrf.mxu0
        %v2430 = vpop.f32.mrf.mxu0
        %2431 = vdwg.mxu0
        %v2433 = vsel %vm1446, %v2279, 0
        %v2436 = vsel %vm1446, %v2293, 0
        %2438 = vmatprep.subr.bf16.mxu0 0
        %2439 = vmatpush1.bf16.xpose.msra.mxu0 0
        %2440 = vmatprep.subr.bf16.mxu0 0
        %2441 = vmatpush1.bf16.xpose.msra.mxu0 0
        %2442 = vmatprep.subr.bf16.mxu0 0
        %2443 = vmatpush1.bf16.xpose.msra.mxu0 0
        %2444 = vmatprep.subr.bf16.mxu0 0
        %2445 = vmatpush1.bf16.xpose.msra.mxu0 0
        %2446 = vmatprep.subr.bf16.mxu0 0
        %2447 = vmatpush1.bf16.xpose.msra.mxu0 0
        %2448 = vmatprep.subr.bf16.mxu0 0
        %2449 = vmatpush1.bf16.xpose.msra.mxu0 0
        %2450 = vmatprep.subr.bf16.mxu0 0
        %2451 = vmatpush1.bf16.xpose.msra.mxu0 0
        %2452 = vmatprep.subr.bf16.mxu0 0
        %2453 = vmatpush1.bf16.xpose.msra.mxu0 %v2436
        %2454 = vmatprep.subr.bf16.mxu0 0
        %2455 = vmatpush2.bf16.xpose.msra.mxu0 0
        %2456 = vmatprep.subr.bf16.mxu0 0
        %2457 = vmatpush2.bf16.xpose.msra.mxu0 0
        %2458 = vmatprep.subr.bf16.mxu0 0
        %2459 = vmatpush2.bf16.xpose.msra.mxu0 0
        %2460 = vmatprep.subr.bf16.mxu0 0
        %2461 = vmatpush2.bf16.xpose.msra.mxu0 0
        %2462 = vmatprep.subr.bf16.mxu0 0
        %2463 = vmatpush2.bf16.xpose.msra.mxu0 0
        %2464 = vmatprep.subr.bf16.mxu0 0
        %2465 = vmatpush2.bf16.xpose.msra.mxu0 0
        %2466 = vmatprep.subr.bf16.mxu0 0
        %2467 = vmatpush2.bf16.xpose.msra.mxu0 0
        %2468 = vmatprep.subr.bf16.mxu0 0
        %2469 = vmatpush2.bf16.xpose.msra.mxu0 0
        %2470 = vmatprep.mubr.bf16.mxu0 0
        %2471 = vmatmul.mubr.bf16.gmra.mxu0 %v2433
        %v2472 = vpop.f32.mrf.mxu0
        %v2473 = vadd.f32 0.0, %v2472
        %v2474 = vpop.f32.mrf.mxu0
        %v2475 = vpop.f32.mrf.mxu0
        %v2476 = vpop.f32.mrf.mxu0
        %2477 = vdwg.mxu0
        %v2478 = vmul.f32 %v2335, 0.35355338
        %v2479 = vmul.f32 %v2381, 0.35355338
        %v2480 = vmul.f32 %v2427, 0.35355338
        %v2481 = vmul.f32 %v2473, 0.35355338
        %v2482 = vsel %vm1446, %v2478, -inf
        %2483 = vmax.xlane.f32.xlu0 %v2482
        %v2484 = vpop.xlane.xlu0 %2483
        %v2485 = vsel %vm1446, %v2479, -inf
        %2486 = vmax.xlane.f32.xlu0 %v2485
        %v2487 = vpop.xlane.xlu0 %2486
        %v2488 = vsel %vm1446, %v2480, -inf
        %2489 = vmax.xlane.f32.xlu0 %v2488
        %v2490 = vpop.xlane.xlu0 %2489
        %v2491 = vsel %vm1446, %v2481, -inf
        %2492 = vmax.xlane.f32.xlu0 %v2491
        %v2493 = vpop.xlane.xlu0 %2492
        %v2494 = vsub.f32 %v2478, %v2484
        %v2495 = vsub.f32 %v2479, %v2487
        %v2496 = vsub.f32 %v2480, %v2490
        %v2497 = vsub.f32 %v2481, %v2493
        %v2498 = vmul.f32 %v2494, 1.442695
        %v2499 = vpow.pop %v2498
        %v2500 = vmul.f32 %v2495, 1.442695
        %v2501 = vpow.pop %v2500
        %v2502 = vmul.f32 %v2496, 1.442695
        %v2503 = vpow.pop %v2502
        %v2504 = vmul.f32 %v2497, 1.442695
        %v2505 = vpow.pop %v2504
        %v2506 = vsel %vm1446, %v2499, 0.0
        %2507 = vadd.xlane.f32.xlu0 %v2506
        %v2508 = vpop.xlane.xlu0 %2507
        %v2509 = vsel %vm1446, %v2501, 0.0
        %2510 = vadd.xlane.f32.xlu0 %v2509
        %v2511 = vpop.xlane.xlu0 %2510
        %v2512 = vsel %vm1446, %v2503, 0.0
        %2513 = vadd.xlane.f32.xlu0 %v2512
        %v2514 = vpop.xlane.xlu0 %2513
        %v2515 = vsel %vm1446, %v2505, 0.0
        %2516 = vadd.xlane.f32.xlu0 %v2515
        %v2517 = vpop.xlane.xlu0 %2516
        %v2518 = vrcp.pop %v2508
        %v2519 = vrcp.pop %v2511
        %v2520 = vrcp.pop %v2514
        %v2521 = vrcp.pop %v2517
        %v2522 = vmul.f32 %v2499, %v2518
        %v2523 = vmul.f32 %v2501, %v2519
        %v2524 = vmul.f32 %v2503, %v2520
        %v2525 = vmul.f32 %v2505, %v2521
        %v2526 = vpack.c.bf16 %v2522, %v2522
        %v2527 = vpack.c.bf16 %v2523, %v2523
        %v2528 = vpack.c.bf16 %v2524, %v2524
        %v2529 = vpack.c.bf16 %v2525, %v2525
        %2531 = vrot.lane.b32.xlu0 %v2290, 96
        %v2532 = vpop.permute.xlu0 %2531
        %v2534 = vsel %vm1446, %v2526, 0
        %v2537 = vsel %vm1706, %v2532, 0
        %2539 = vmatprep.subr.bf16.mxu0 0
        %2540 = vmatpush1.bf16.msra.mxu0 0
        %2541 = vmatprep.subr.bf16.mxu0 0
        %2542 = vmatpush1.bf16.msra.mxu0 0
        %2543 = vmatprep.subr.bf16.mxu0 0
        %2544 = vmatpush1.bf16.msra.mxu0 0
        %2545 = vmatprep.subr.bf16.mxu0 0
        %2546 = vmatpush1.bf16.msra.mxu0 0
        %2547 = vmatprep.subr.bf16.mxu0 0
        %2548 = vmatpush1.bf16.msra.mxu0 0
        %2549 = vmatprep.subr.bf16.mxu0 0
        %2550 = vmatpush1.bf16.msra.mxu0 0
        %2551 = vmatprep.subr.bf16.mxu0 0
        %2552 = vmatpush1.bf16.msra.mxu0 0
        %2553 = vmatprep.subr.bf16.mxu0 0
        %2554 = vmatpush1.bf16.msra.mxu0 %v2537
        %2555 = vmatprep.subr.bf16.mxu0 0
        %2556 = vmatpush2.bf16.msra.mxu0 0
        %2557 = vmatprep.subr.bf16.mxu0 0
        %2558 = vmatpush2.bf16.msra.mxu0 0
        %2559 = vmatprep.subr.bf16.mxu0 0
        %2560 = vmatpush2.bf16.msra.mxu0 0
        %2561 = vmatprep.subr.bf16.mxu0 0
        %2562 = vmatpush2.bf16.msra.mxu0 0
        %2563 = vmatprep.subr.bf16.mxu0 0
        %2564 = vmatpush2.bf16.msra.mxu0 0
        %2565 = vmatprep.subr.bf16.mxu0 0
        %2566 = vmatpush2.bf16.msra.mxu0 0
        %2567 = vmatprep.subr.bf16.mxu0 0
        %2568 = vmatpush2.bf16.msra.mxu0 0
        %2569 = vmatprep.subr.bf16.mxu0 0
        %2570 = vmatpush2.bf16.msra.mxu0 0
        %2571 = vmatprep.mubr.bf16.mxu0 0
        %2572 = vmatmul.mubr.bf16.gmra.mxu0 %v2534
        %v2573 = vpop.f32.mrf.mxu0
        %v2574 = vadd.f32 0.0, %v2573
        %v2575 = vpop.f32.mrf.mxu0
        %v2576 = vpop.f32.mrf.mxu0
        %v2577 = vpop.f32.mrf.mxu0
        %2578 = vdwg.mxu0
        %2580 = vrot.lane.b32.xlu0 %v2291, 96
        %v2581 = vpop.permute.xlu0 %2580
        %v2583 = vsel %vm1446, %v2527, 0
        %v2586 = vsel %vm1706, %v2581, 0
        %2588 = vmatprep.subr.bf16.mxu0 0
        %2589 = vmatpush1.bf16.msra.mxu0 0
        %2590 = vmatprep.subr.bf16.mxu0 0
        %2591 = vmatpush1.bf16.msra.mxu0 0
        %2592 = vmatprep.subr.bf16.mxu0 0
        %2593 = vmatpush1.bf16.msra.mxu0 0
        %2594 = vmatprep.subr.bf16.mxu0 0
        %2595 = vmatpush1.bf16.msra.mxu0 0
        %2596 = vmatprep.subr.bf16.mxu0 0
        %2597 = vmatpush1.bf16.msra.mxu0 0
        %2598 = vmatprep.subr.bf16.mxu0 0
        %2599 = vmatpush1.bf16.msra.mxu0 0
        %2600 = vmatprep.subr.bf16.mxu0 0
        %2601 = vmatpush1.bf16.msra.mxu0 0
        %2602 = vmatprep.subr.bf16.mxu0 0
        %2603 = vmatpush1.bf16.msra.mxu0 %v2586
        %2604 = vmatprep.subr.bf16.mxu0 0
        %2605 = vmatpush2.bf16.msra.mxu0 0
        %2606 = vmatprep.subr.bf16.mxu0 0
        %2607 = vmatpush2.bf16.msra.mxu0 0
        %2608 = vmatprep.subr.bf16.mxu0 0
        %2609 = vmatpush2.bf16.msra.mxu0 0
        %2610 = vmatprep.subr.bf16.mxu0 0
        %2611 = vmatpush2.bf16.msra.mxu0 0
        %2612 = vmatprep.subr.bf16.mxu0 0
        %2613 = vmatpush2.bf16.msra.mxu0 0
        %2614 = vmatprep.subr.bf16.mxu0 0
        %2615 = vmatpush2.bf16.msra.mxu0 0
        %2616 = vmatprep.subr.bf16.mxu0 0
        %2617 = vmatpush2.bf16.msra.mxu0 0
        %2618 = vmatprep.subr.bf16.mxu0 0
        %2619 = vmatpush2.bf16.msra.mxu0 0
        %2620 = vmatprep.mubr.bf16.mxu0 0
        %2621 = vmatmul.mubr.bf16.gmra.mxu0 %v2583
        %v2622 = vpop.f32.mrf.mxu0
        %v2623 = vadd.f32 0.0, %v2622
        %v2624 = vpop.f32.mrf.mxu0
        %v2625 = vpop.f32.mrf.mxu0
        %v2626 = vpop.f32.mrf.mxu0
        %2627 = vdwg.mxu0
        %2629 = vrot.lane.b32.xlu0 %v2292, 96
        %v2630 = vpop.permute.xlu0 %2629
        %v2632 = vsel %vm1446, %v2528, 0
        %v2635 = vsel %vm1706, %v2630, 0
        %2637 = vmatprep.subr.bf16.mxu0 0
        %2638 = vmatpush1.bf16.msra.mxu0 0
        %2639 = vmatprep.subr.bf16.mxu0 0
        %2640 = vmatpush1.bf16.msra.mxu0 0
        %2641 = vmatprep.subr.bf16.mxu0 0
        %2642 = vmatpush1.bf16.msra.mxu0 0
        %2643 = vmatprep.subr.bf16.mxu0 0
        %2644 = vmatpush1.bf16.msra.mxu0 0
        %2645 = vmatprep.subr.bf16.mxu0 0
        %2646 = vmatpush1.bf16.msra.mxu0 0
        %2647 = vmatprep.subr.bf16.mxu0 0
        %2648 = vmatpush1.bf16.msra.mxu0 0
        %2649 = vmatprep.subr.bf16.mxu0 0
        %2650 = vmatpush1.bf16.msra.mxu0 0
        %2651 = vmatprep.subr.bf16.mxu0 0
        %2652 = vmatpush1.bf16.msra.mxu0 %v2635
        %2653 = vmatprep.subr.bf16.mxu0 0
        %2654 = vmatpush2.bf16.msra.mxu0 0
        %2655 = vmatprep.subr.bf16.mxu0 0
        %2656 = vmatpush2.bf16.msra.mxu0 0
        %2657 = vmatprep.subr.bf16.mxu0 0
        %2658 = vmatpush2.bf16.msra.mxu0 0
        %2659 = vmatprep.subr.bf16.mxu0 0
        %2660 = vmatpush2.bf16.msra.mxu0 0
        %2661 = vmatprep.subr.bf16.mxu0 0
        %2662 = vmatpush2.bf16.msra.mxu0 0
        %2663 = vmatprep.subr.bf16.mxu0 0
        %2664 = vmatpush2.bf16.msra.mxu0 0
        %2665 = vmatprep.subr.bf16.mxu0 0
        %2666 = vmatpush2.bf16.msra.mxu0 0
        %2667 = vmatprep.subr.bf16.mxu0 0
        %2668 = vmatpush2.bf16.msra.mxu0 0
        %2669 = vmatprep.mubr.bf16.mxu0 0
        %2670 = vmatmul.mubr.bf16.gmra.mxu0 %v2632
        %v2671 = vpop.f32.mrf.mxu0
        %v2672 = vadd.f32 0.0, %v2671
        %v2673 = vpop.f32.mrf.mxu0
        %v2674 = vpop.f32.mrf.mxu0
        %v2675 = vpop.f32.mrf.mxu0
        %2676 = vdwg.mxu0
        %2678 = vrot.lane.b32.xlu0 %v2293, 96
        %v2679 = vpop.permute.xlu0 %2678
        %v2681 = vsel %vm1446, %v2529, 0
        %v2684 = vsel %vm1706, %v2679, 0
        %2686 = vmatprep.subr.bf16.mxu0 0
        %2687 = vmatpush1.bf16.msra.mxu0 0
        %2688 = vmatprep.subr.bf16.mxu0 0
        %2689 = vmatpush1.bf16.msra.mxu0 0
        %2690 = vmatprep.subr.bf16.mxu0 0
        %2691 = vmatpush1.bf16.msra.mxu0 0
        %2692 = vmatprep.subr.bf16.mxu0 0
        %2693 = vmatpush1.bf16.msra.mxu0 0
        %2694 = vmatprep.subr.bf16.mxu0 0
        %2695 = vmatpush1.bf16.msra.mxu0 0
        %2696 = vmatprep.subr.bf16.mxu0 0
        %2697 = vmatpush1.bf16.msra.mxu0 0
        %2698 = vmatprep.subr.bf16.mxu0 0
        %2699 = vmatpush1.bf16.msra.mxu0 0
        %2700 = vmatprep.subr.bf16.mxu0 0
        %2701 = vmatpush1.bf16.msra.mxu0 %v2684
        %2702 = vmatprep.subr.bf16.mxu0 0
        %2703 = vmatpush2.bf16.msra.mxu0 0
        %2704 = vmatprep.subr.bf16.mxu0 0
        %2705 = vmatpush2.bf16.msra.mxu0 0
        %2706 = vmatprep.subr.bf16.mxu0 0
        %2707 = vmatpush2.bf16.msra.mxu0 0
        %2708 = vmatprep.subr.bf16.mxu0 0
        %2709 = vmatpush2.bf16.msra.mxu0 0
        %2710 = vmatprep.subr.bf16.mxu0 0
        %2711 = vmatpush2.bf16.msra.mxu0 0
        %2712 = vmatprep.subr.bf16.mxu0 0
        %2713 = vmatpush2.bf16.msra.mxu0 0
        %2714 = vmatprep.subr.bf16.mxu0 0
        %2715 = vmatpush2.bf16.msra.mxu0 0
        %2716 = vmatprep.subr.bf16.mxu0 0
        %2717 = vmatpush2.bf16.msra.mxu0 0
        %2718 = vmatprep.mubr.bf16.mxu0 0
        %2719 = vmatmul.mubr.bf16.gmra.mxu0 %v2681
        %v2720 = vpop.f32.mrf.mxu0
        %v2721 = vadd.f32 0.0, %v2720
        %v2722 = vpop.f32.mrf.mxu0
        %v2723 = vpop.f32.mrf.mxu0
        %v2724 = vpop.f32.mrf.mxu0
        %2725 = vdwg.mxu0
        %v2726 = vpack.c.bf16 %v2574, %v2574
        %v2727 = vpack.c.bf16 %v2623, %v2623
        %v2728 = vpack.c.bf16 %v2672, %v2672
        %v2729 = vpack.c.bf16 %v2721, %v2721
        %v2731 = vsel %vm1446, %v2726, 0
        %v2734 = vsel %vm1706, %v2261, 0
        %2736 = vmatprep.subr.bf16.mxu0 0
        %2737 = vmatpush1.bf16.msra.mxu0 0
        %2738 = vmatprep.subr.bf16.mxu0 0
        %2739 = vmatpush1.bf16.msra.mxu0 0
        %2740 = vmatprep.subr.bf16.mxu0 0
        %2741 = vmatpush1.bf16.msra.mxu0 0
        %2742 = vmatprep.subr.bf16.mxu0 0
        %2743 = vmatpush1.bf16.msra.mxu0 0
        %2744 = vmatprep.subr.bf16.mxu0 0
        %2745 = vmatpush1.bf16.msra.mxu0 0
        %2746 = vmatprep.subr.bf16.mxu0 0
        %2747 = vmatpush1.bf16.msra.mxu0 0
        %2748 = vmatprep.subr.bf16.mxu0 0
        %2749 = vmatpush1.bf16.msra.mxu0 0
        %2750 = vmatprep.subr.bf16.mxu0 0
        %2751 = vmatpush1.bf16.msra.mxu0 %v2734
        %2752 = vmatprep.subr.bf16.mxu0 0
        %2753 = vmatpush2.bf16.msra.mxu0 0
        %2754 = vmatprep.subr.bf16.mxu0 0
        %2755 = vmatpush2.bf16.msra.mxu0 0
        %2756 = vmatprep.subr.bf16.mxu0 0
        %2757 = vmatpush2.bf16.msra.mxu0 0
        %2758 = vmatprep.subr.bf16.mxu0 0
        %2759 = vmatpush2.bf16.msra.mxu0 0
        %2760 = vmatprep.subr.bf16.mxu0 0
        %2761 = vmatpush2.bf16.msra.mxu0 0
        %2762 = vmatprep.subr.bf16.mxu0 0
        %2763 = vmatpush2.bf16.msra.mxu0 0
        %2764 = vmatprep.subr.bf16.mxu0 0
        %2765 = vmatpush2.bf16.msra.mxu0 0
        %2766 = vmatprep.subr.bf16.mxu0 0
        %2767 = vmatpush2.bf16.msra.mxu0 0
        %2768 = vmatprep.mubr.bf16.mxu0 0
        %2769 = vmatmul.mubr.bf16.gmra.mxu0 %v2731
        %v2770 = vpop.f32.mrf.mxu0
        %v2771 = vadd.f32 0.0, %v2770
        %v2772 = vpop.f32.mrf.mxu0
        %v2773 = vpop.f32.mrf.mxu0
        %v2774 = vpop.f32.mrf.mxu0
        %2775 = vdwg.mxu0
        %v2777 = vsel %vm1446, %v2727, 0
        %v2780 = vsel %vm1706, %v2262, 0
        %2782 = vmatprep.subr.bf16.mxu0 0
        %2783 = vmatpush1.bf16.msra.mxu0 0
        %2784 = vmatprep.subr.bf16.mxu0 0
        %2785 = vmatpush1.bf16.msra.mxu0 0
        %2786 = vmatprep.subr.bf16.mxu0 0
        %2787 = vmatpush1.bf16.msra.mxu0 0
        %2788 = vmatprep.subr.bf16.mxu0 0
        %2789 = vmatpush1.bf16.msra.mxu0 0
        %2790 = vmatprep.subr.bf16.mxu0 0
        %2791 = vmatpush1.bf16.msra.mxu0 0
        %2792 = vmatprep.subr.bf16.mxu0 0
        %2793 = vmatpush1.bf16.msra.mxu0 0
        %2794 = vmatprep.subr.bf16.mxu0 0
        %2795 = vmatpush1.bf16.msra.mxu0 0
        %2796 = vmatprep.subr.bf16.mxu0 0
        %2797 = vmatpush1.bf16.msra.mxu0 %v2780
        %2798 = vmatprep.subr.bf16.mxu0 0
        %2799 = vmatpush2.bf16.msra.mxu0 0
        %2800 = vmatprep.subr.bf16.mxu0 0
        %2801 = vmatpush2.bf16.msra.mxu0 0
        %2802 = vmatprep.subr.bf16.mxu0 0
        %2803 = vmatpush2.bf16.msra.mxu0 0
        %2804 = vmatprep.subr.bf16.mxu0 0
        %2805 = vmatpush2.bf16.msra.mxu0 0
        %2806 = vmatprep.subr.bf16.mxu0 0
        %2807 = vmatpush2.bf16.msra.mxu0 0
        %2808 = vmatprep.subr.bf16.mxu0 0
        %2809 = vmatpush2.bf16.msra.mxu0 0
        %2810 = vmatprep.subr.bf16.mxu0 0
        %2811 = vmatpush2.bf16.msra.mxu0 0
        %2812 = vmatprep.subr.bf16.mxu0 0
        %2813 = vmatpush2.bf16.msra.mxu0 0
        %2814 = vmatprep.mubr.bf16.mxu0 0
        %2815 = vmatmul.mubr.bf16.gmra.mxu0 %v2777
        %v2816 = vpop.f32.mrf.mxu0
        %v2817 = vadd.f32 0.0, %v2816
        %v2818 = vpop.f32.mrf.mxu0
        %v2819 = vpop.f32.mrf.mxu0
        %v2820 = vpop.f32.mrf.mxu0
        %2821 = vdwg.mxu0
        %v2823 = vsel %vm1446, %v2728, 0
        %v2826 = vsel %vm1706, %v2263, 0
        %2828 = vmatprep.subr.bf16.mxu0 0
        %2829 = vmatpush1.bf16.msra.mxu0 0
        %2830 = vmatprep.subr.bf16.mxu0 0
        %2831 = vmatpush1.bf16.msra.mxu0 0
        %2832 = vmatprep.subr.bf16.mxu0 0
        %2833 = vmatpush1.bf16.msra.mxu0 0
        %2834 = vmatprep.subr.bf16.mxu0 0
        %2835 = vmatpush1.bf16.msra.mxu0 0
        %2836 = vmatprep.subr.bf16.mxu0 0
        %2837 = vmatpush1.bf16.msra.mxu0 0
        %2838 = vmatprep.subr.bf16.mxu0 0
        %2839 = vmatpush1.bf16.msra.mxu0 0
        %2840 = vmatprep.subr.bf16.mxu0 0
        %2841 = vmatpush1.bf16.msra.mxu0 0
        %2842 = vmatprep.subr.bf16.mxu0 0
        %2843 = vmatpush1.bf16.msra.mxu0 %v2826
        %2844 = vmatprep.subr.bf16.mxu0 0
        %2845 = vmatpush2.bf16.msra.mxu0 0
        %2846 = vmatprep.subr.bf16.mxu0 0
        %2847 = vmatpush2.bf16.msra.mxu0 0
        %2848 = vmatprep.subr.bf16.mxu0 0
        %2849 = vmatpush2.bf16.msra.mxu0 0
        %2850 = vmatprep.subr.bf16.mxu0 0
        %2851 = vmatpush2.bf16.msra.mxu0 0
        %2852 = vmatprep.subr.bf16.mxu0 0
        %2853 = vmatpush2.bf16.msra.mxu0 0
        %2854 = vmatprep.subr.bf16.mxu0 0
        %2855 = vmatpush2.bf16.msra.mxu0 0
        %2856 = vmatprep.subr.bf16.mxu0 0
        %2857 = vmatpush2.bf16.msra.mxu0 0
        %2858 = vmatprep.subr.bf16.mxu0 0
        %2859 = vmatpush2.bf16.msra.mxu0 0
        %2860 = vmatprep.mubr.bf16.mxu0 0
        %2861 = vmatmul.mubr.bf16.gmra.mxu0 %v2823
        %v2862 = vpop.f32.mrf.mxu0
        %v2863 = vadd.f32 0.0, %v2862
        %v2864 = vpop.f32.mrf.mxu0
        %v2865 = vpop.f32.mrf.mxu0
        %v2866 = vpop.f32.mrf.mxu0
        %2867 = vdwg.mxu0
        %v2869 = vsel %vm1446, %v2729, 0
        %v2872 = vsel %vm1706, %v2264, 0
        %2874 = vmatprep.subr.bf16.mxu0 0
        %2875 = vmatpush1.bf16.msra.mxu0 0
        %2876 = vmatprep.subr.bf16.mxu0 0
        %2877 = vmatpush1.bf16.msra.mxu0 0
        %2878 = vmatprep.subr.bf16.mxu0 0
        %2879 = vmatpush1.bf16.msra.mxu0 0
        %2880 = vmatprep.subr.bf16.mxu0 0
        %2881 = vmatpush1.bf16.msra.mxu0 0
        %2882 = vmatprep.subr.bf16.mxu0 0
        %2883 = vmatpush1.bf16.msra.mxu0 0
        %2884 = vmatprep.subr.bf16.mxu0 0
        %2885 = vmatpush1.bf16.msra.mxu0 0
        %2886 = vmatprep.subr.bf16.mxu0 0
        %2887 = vmatpush1.bf16.msra.mxu0 0
        %2888 = vmatprep.subr.bf16.mxu0 0
        %2889 = vmatpush1.bf16.msra.mxu0 %v2872
        %2890 = vmatprep.subr.bf16.mxu0 0
        %2891 = vmatpush2.bf16.msra.mxu0 0
        %2892 = vmatprep.subr.bf16.mxu0 0
        %2893 = vmatpush2.bf16.msra.mxu0 0
        %2894 = vmatprep.subr.bf16.mxu0 0
        %2895 = vmatpush2.bf16.msra.mxu0 0
        %2896 = vmatprep.subr.bf16.mxu0 0
        %2897 = vmatpush2.bf16.msra.mxu0 0
        %2898 = vmatprep.subr.bf16.mxu0 0
        %2899 = vmatpush2.bf16.msra.mxu0 0
        %2900 = vmatprep.subr.bf16.mxu0 0
        %2901 = vmatpush2.bf16.msra.mxu0 0
        %2902 = vmatprep.subr.bf16.mxu0 0
        %2903 = vmatpush2.bf16.msra.mxu0 0
        %2904 = vmatprep.subr.bf16.mxu0 0
        %2905 = vmatpush2.bf16.msra.mxu0 0
        %2906 = vmatprep.mubr.bf16.mxu0 0
        %2907 = vmatmul.mubr.bf16.gmra.mxu0 %v2869
        %v2908 = vpop.f32.mrf.mxu0
        %v2909 = vadd.f32 0.0, %v2908
        %v2910 = vpop.f32.mrf.mxu0
        %v2911 = vpop.f32.mrf.mxu0
        %v2912 = vpop.f32.mrf.mxu0
        %2913 = vdwg.mxu0
        %v2914 = vsel %vm1380, %v2771, 0.0
        %v2915 = vsel %vm1380, %v2817, 0.0
        %v2916 = vadd.f32 %v2914, %v2915
        %v2917 = vsel %vm1380, %v2863, 0.0
        %v2918 = vadd.f32 %v2916, %v2917
        %v2919 = vsel %vm1380, %v2909, 0.0
        %v2920 = vadd.f32 %v2918, %v2919
        %v2922 = vlaneseq
        %v2923 = vshrl.u32 %v2922, 7
        %v2924 = vsub.s32 0, %v2923
        %v2925 = vrot.slane %v2265, %v2924
        %v2927 = vadd.f32 %v2920, %v2925
        %v2928 = vadd.f32 %v2126, %v2927
        %v2929 = vld [vmem:[%s1120] sm:$0x1]
        %v2930 = vld [vmem:[%s1128] sm:$0x1]
        %v2931 = vsel %vm1380, %v2928, 0.0
        %2932 = vadd.xlane.f32.xlu0 %v2931
        %v2933 = vpop.xlane.xlu0 %2932
        %v2934 = vmul.f32 %v2933, %v2102
        %v2935 = vsub.f32 %v2928, %v2934
        %v2936 = vmul.f32 %v2935, %v2935
        %v2937 = vsel %vm1380, %v2936, 0.0
        %2938 = vadd.xlane.f32.xlu0 %v2937
        %v2939 = vpop.xlane.xlu0 %2938
        %v2940 = vmul.f32 %v2939, %v2102
        %v2941 = vadd.f32 %v2940, 1e-05
        %v2942 = vrsqrt.pop %v2941
        %v2943 = vmul.f32 %v2935, %v2942
        %v2945 = vlaneseq
        %v2946 = vshrl.u32 %v2945, 7
        %v2947 = vsub.s32 0, %v2946
        %v2948 = vrot.slane %v2929, %v2947
        %v2950 = vmul.f32 %v2943, %v2948
        %v2952 = vlaneseq
        %v2953 = vshrl.u32 %v2952, 7
        %v2954 = vsub.s32 0, %v2953
        %v2955 = vrot.slane %v2930, %v2954
        %v2957 = vadd.f32 %v2950, %v2955
        %v2958 = vpack.c.bf16 %v2957, %v2957
        %v2959 = vld [vmem:[%s1337] sm:$0xf]
        %v2960 = vld [vmem:[%s1337 + $0x4] sm:$0xf]
        %v2961 = vld [vmem:[%s1337 + $0x8] sm:$0xf]
        %v2962 = vld [vmem:[%s1337 + $0xc] sm:$0xf]
        %v2963 = vld [vmem:[%s1152] sm:$0x1]
        %v2965 = vlaneseq
        %v2966 = vshrl.u32 %v2965, 7
        %v2967 = vsub.s32 0, %v2966
        %v2968 = vrot.slane %v2963, %v2967
        %v2974 = vunpack.c.l.b16 %v2959
        %v2975 = vunpack.c.l.b16 %v2960
        %v2976 = vunpack.c.l.b16 %v2961
        %v2977 = vunpack.c.l.b16 %v2962
        %v2978 = vpack.c.b16 %v2975, %v2974
        %v2979 = vpack.c.b16 %v2977, %v2976
        %v2983 = vsel %vm1380, %v2958, 0
        %2985 = vmatprep.subr.bf16.mxu0 0
        %2986 = vmatpush1.bf16.msra.mxu0 0
        %2987 = vmatprep.subr.bf16.mxu0 0
        %2988 = vmatpush1.bf16.msra.mxu0 0
        %2989 = vmatprep.subr.bf16.mxu0 0
        %2990 = vmatpush1.bf16.msra.mxu0 0
        %2991 = vmatprep.subr.bf16.mxu0 0
        %2992 = vmatpush1.bf16.msra.mxu0 0
        %2993 = vmatprep.subr.bf16.mxu0 0
        %2994 = vmatpush1.bf16.msra.mxu0 0
        %2995 = vmatprep.subr.bf16.mxu0 0
        %2996 = vmatpush1.bf16.msra.mxu0 0
        %2997 = vmatprep.subr.bf16.mxu0 0
        %2998 = vmatpush1.bf16.msra.mxu0 %v2979
        %2999 = vmatprep.subr.bf16.mxu0 0
        %3000 = vmatpush1.bf16.msra.mxu0 %v2978
        %3001 = vmatprep.subr.bf16.mxu0 0
        %3002 = vmatpush2.bf16.msra.mxu0 0
        %3003 = vmatprep.subr.bf16.mxu0 0
        %3004 = vmatpush2.bf16.msra.mxu0 0
        %3005 = vmatprep.subr.bf16.mxu0 0
        %3006 = vmatpush2.bf16.msra.mxu0 0
        %3007 = vmatprep.subr.bf16.mxu0 0
        %3008 = vmatpush2.bf16.msra.mxu0 0
        %3009 = vmatprep.subr.bf16.mxu0 0
        %3010 = vmatpush2.bf16.msra.mxu0 0
        %3011 = vmatprep.subr.bf16.mxu0 0
        %3012 = vmatpush2.bf16.msra.mxu0 0
        %3013 = vmatprep.subr.bf16.mxu0 0
        %3014 = vmatpush2.bf16.msra.mxu0 0
        %3015 = vmatprep.subr.bf16.mxu0 0
        %3016 = vmatpush2.bf16.msra.mxu0 0
        %3017 = vmatprep.mubr.bf16.mxu0 0
        %3018 = vmatmul.mubr.bf16.gmra.mxu0 %v2983
        %v3019 = vpop.f32.mrf.mxu0
        %v3020 = vadd.f32 %v2968, %v3019
        %v3021 = vpop.f32.mrf.mxu0
        %v3022 = vpop.f32.mrf.mxu0
        %v3023 = vpop.f32.mrf.mxu0
        %3024 = vdwg.mxu0
        %v3025 = vmax.f32 %v3020, 0.0
        %v3026 = vpack.c.bf16 %v3025, %v3025
        %v3027 = vld [vmem:[%s1342] sm:$0xf]
        %v3028 = vld [vmem:[%s1342 + $0x4] sm:$0xf]
        %v3029 = vld [vmem:[%s1342 + $0x8] sm:$0xf]
        %v3030 = vld [vmem:[%s1342 + $0xc] sm:$0xf]
        %v3031 = vld [vmem:[%s1342 + $0x10] sm:$0xf]
        %v3032 = vld [vmem:[%s1342 + $0x14] sm:$0xf]
        %v3033 = vld [vmem:[%s1342 + $0x18] sm:$0xf]
        %v3034 = vld [vmem:[%s1342 + $0x1c] sm:$0xf]
        %v3035 = vld [vmem:[%s1342 + $0x20] sm:$0xf]
        %v3036 = vld [vmem:[%s1342 + $0x24] sm:$0xf]
        %v3037 = vld [vmem:[%s1342 + $0x28] sm:$0xf]
        %v3038 = vld [vmem:[%s1342 + $0x2c] sm:$0xf]
        %v3039 = vld [vmem:[%s1342 + $0x30] sm:$0xf]
        %v3040 = vld [vmem:[%s1342 + $0x34] sm:$0xf]
        %v3041 = vld [vmem:[%s1342 + $0x38] sm:$0xf]
        %v3042 = vld [vmem:[%s1342 + $0x3c] sm:$0xf]
        %v3043 = vld [vmem:[%s1345] sm:$0x1]
        %v3045 = vlaneseq
        %v3046 = vshrl.u32 %v3045, 7
        %v3047 = vsub.s32 0, %v3046
        %v3048 = vrot.slane %v3043, %v3047
        %v3066 = vunpack.c.l.b16 %v3027
        %v3067 = vunpack.c.l.b16 %v3028
        %v3068 = vunpack.c.l.b16 %v3029
        %v3069 = vunpack.c.l.b16 %v3030
        %v3070 = vunpack.c.l.b16 %v3031
        %v3071 = vunpack.c.l.b16 %v3032
        %v3072 = vunpack.c.l.b16 %v3033
        %v3073 = vunpack.c.l.b16 %v3034
        %v3074 = vunpack.c.l.b16 %v3035
        %v3075 = vunpack.c.l.b16 %v3036
        %v3076 = vunpack.c.l.b16 %v3037
        %v3077 = vunpack.c.l.b16 %v3038
        %v3078 = vunpack.c.l.b16 %v3039
        %v3079 = vunpack.c.l.b16 %v3040
        %v3080 = vunpack.c.l.b16 %v3041
        %v3081 = vunpack.c.l.b16 %v3042
        %v3082 = vpack.c.b16 %v3067, %v3066
        %v3083 = vpack.c.b16 %v3069, %v3068
        %v3084 = vpack.c.b16 %v3071, %v3070
        %v3085 = vpack.c.b16 %v3073, %v3072
        %v3086 = vpack.c.b16 %v3075, %v3074
        %v3087 = vpack.c.b16 %v3077, %v3076
        %v3088 = vpack.c.b16 %v3079, %v3078
        %v3089 = vpack.c.b16 %v3081, %v3080
        %3098 = vmatprep.subr.bf16.mxu0 0
        %3099 = vmatpush1.bf16.msra.mxu0 %v3089
        %3100 = vmatprep.subr.bf16.mxu0 0
        %3101 = vmatpush1.bf16.msra.mxu0 %v3088
        %3102 = vmatprep.subr.bf16.mxu0 0
        %3103 = vmatpush1.bf16.msra.mxu0 %v3087
        %3104 = vmatprep.subr.bf16.mxu0 0
        %3105 = vmatpush1.bf16.msra.mxu0 %v3086
        %3106 = vmatprep.subr.bf16.mxu0 0
        %3107 = vmatpush1.bf16.msra.mxu0 %v3085
        %3108 = vmatprep.subr.bf16.mxu0 0
        %3109 = vmatpush1.bf16.msra.mxu0 %v3084
        %3110 = vmatprep.subr.bf16.mxu0 0
        %3111 = vmatpush1.bf16.msra.mxu0 %v3083
        %3112 = vmatprep.subr.bf16.mxu0 0
        %3113 = vmatpush1.bf16.msra.mxu0 %v3082
        %3114 = vmatprep.subr.bf16.mxu0 0
        %3115 = vmatpush2.bf16.msra.mxu0 0
        %3116 = vmatprep.subr.bf16.mxu0 0
        %3117 = vmatpush2.bf16.msra.mxu0 0
        %3118 = vmatprep.subr.bf16.mxu0 0
        %3119 = vmatpush2.bf16.msra.mxu0 0
        %3120 = vmatprep.subr.bf16.mxu0 0
        %3121 = vmatpush2.bf16.msra.mxu0 0
        %3122 = vmatprep.subr.bf16.mxu0 0
        %3123 = vmatpush2.bf16.msra.mxu0 0
        %3124 = vmatprep.subr.bf16.mxu0 0
        %3125 = vmatpush2.bf16.msra.mxu0 0
        %3126 = vmatprep.subr.bf16.mxu0 0
        %3127 = vmatpush2.bf16.msra.mxu0 0
        %3128 = vmatprep.subr.bf16.mxu0 0
        %3129 = vmatpush2.bf16.msra.mxu0 0
        %3130 = vmatprep.mubr.bf16.mxu0 0
        %3131 = vmatmul.mubr.bf16.gmra.mxu0 %v3026
        %v3132 = vpop.f32.mrf.mxu0
        %v3133 = vadd.f32 %v3048, %v3132
        %v3134 = vpop.f32.mrf.mxu0
        %v3135 = vpop.f32.mrf.mxu0
        %v3136 = vpop.f32.mrf.mxu0
        %3137 = vdwg.mxu0
        %v3138 = vadd.f32 %v2957, %v3133
        %v3139 = vld [vmem:[%s1136] sm:$0x1]
        %v3140 = vld [vmem:[%s1144] sm:$0x1]
        %v3141 = vsel %vm1380, %v3138, 0.0
        %3142 = vadd.xlane.f32.xlu0 %v3141
        %v3143 = vpop.xlane.xlu0 %3142
        %v3144 = vmul.f32 %v3143, %v2102
        %v3145 = vsub.f32 %v3138, %v3144
        %v3146 = vmul.f32 %v3145, %v3145
        %v3147 = vsel %vm1380, %v3146, 0.0
        %3148 = vadd.xlane.f32.xlu0 %v3147
        %v3149 = vpop.xlane.xlu0 %3148
        %v3150 = vmul.f32 %v3149, %v2102
        %v3151 = vadd.f32 %v3150, 1e-05
        %v3152 = vrsqrt.pop %v3151
        %v3153 = vmul.f32 %v3145, %v3152
        %v3155 = vlaneseq
        %v3156 = vshrl.u32 %v3155, 7
        %v3157 = vsub.s32 0, %v3156
        %v3158 = vrot.slane %v3139, %v3157
        %v3160 = vmul.f32 %v3153, %v3158
        %v3162 = vlaneseq
        %v3163 = vshrl.u32 %v3162, 7
        %v3164 = vsub.s32 0, %v3163
        %v3165 = vrot.slane %v3140, %v3164
        %v3167 = vadd.f32 %v3160, %v3165
        %3168 = vst.msk [vmem:[#allocation2] sm:$0xff] %vm1380, %v3167
        %p3169 = scmp.eq.s32.totalorder %s67, 1
        // Predicated region
        $region177: #{tpu_custom_call.1} parent=115 // pred_check
          %p3170 = pneg %p3169
        $region178: #{tpu_custom_call.1} parent=115 // pred_check_branch
          %3172 = sbr.rel (%p3170) target = $region180
        $region179: #{tpu_custom_call.1} parent=115 // pred_region
          %v3173 = vld [vmem:[%s22] sm:$0x1]
          %v3174 = vld [vmem:[%s23] sm:$0x1]
          %v3175 = vsel %vm1380, %v3167, 0.0
          %3176 = vadd.xlane.f32.xlu0 %v3175
          %v3177 = vpop.xlane.xlu0 %3176
          %v3178 = vmul.f32 %v3177, %v2102
          %v3179 = vsub.f32 %v3167, %v3178
          %v3180 = vmul.f32 %v3179, %v3179
          %v3181 = vsel %vm1380, %v3180, 0.0
          %3182 = vadd.xlane.f32.xlu0 %v3181
          %v3183 = vpop.xlane.xlu0 %3182
          %v3184 = vmul.f32 %v3183, %v2102
          %v3185 = vadd.f32 %v3184, 1e-05
          %v3186 = vrsqrt.pop %v3185
          %v3187 = vmul.f32 %v3179, %v3186
          %v3189 = vlaneseq
          %v3190 = vshrl.u32 %v3189, 7
          %v3191 = vsub.s32 0, %v3190
          %v3192 = vrot.slane %v3173, %v3191
          %v3194 = vmul.f32 %v3187, %v3192
          %v3196 = vlaneseq
          %v3197 = vshrl.u32 %v3196, 7
          %v3198 = vsub.s32 0, %v3197
          %v3199 = vrot.slane %v3174, %v3198
          %v3201 = vadd.f32 %v3194, %v3199
          %3202 = vst.msk [vmem:[%s1307] sm:$0xff] %vm1380, %v3201
        $region180: #{tpu_custom_call.1} parent=115 // pred_fallthru
          _
        %s3203 = sand.u32 %s696, 1
        %s3204 = scalar_lea.sflag [#allocation5], %s3203
        %s3205 = sand.u32 %s696, 1
        %s3206 = smul.addr %s3205, 8
        %s3207 = scalar_lea.vmem [#allocation26], %s3206
        // Predicated region
        $region181: #{tpu_custom_call.1} parent=115 // pred_check
          %p3208 = pneg %p706
        $region182: #{tpu_custom_call.1} parent=115 // pred_check_branch
          %3210 = sbr.rel (%p3208) target = $region184
        $region183: #{tpu_custom_call.1} parent=115 // pred_region
          %s3212 = ssub.s32 128, 128
          %3213 = vsyncadd %s3204, %s3212
          %s3214 = smul.addr %s66, 128
          %s3215 = scalar_lea.hbm %s24, %s3214
          %s3217 = sshll.u32 %s3207, 4
          %s3218 = int_to_ptr.vmem [resolvable:$true] %s3217
          %3220 = dma.vmem_to_hbm [thread:$0]  %s3218, 128, %s3215, %s3204
        $region184: #{tpu_custom_call.1} parent=115 // pred_fallthru
          _
      $region116: #{tpu_custom_call.1} parent=5 // pred_fallthru
        _
      %p3221 = scmp.le.s32.totalorder 2, %s57
      // Predicated region
      $region185: #{tpu_custom_call.1} parent=5 // pred_check
        %p3222 = pneg %p3221
      $region186: #{tpu_custom_call.1} parent=5 // pred_check_branch
        %3224 = sbr.rel (%p3222) target = $region188
      $region187: #{tpu_custom_call.1} parent=5 // pred_region
        %s3225 = ssub.s32 %s57, 2
        // Predicated region
        $region189: #{tpu_custom_call.1} parent=187 // pred_check
          %p3226 = pneg %p712
        $region190: #{tpu_custom_call.1} parent=187 // pred_check_branch
          %3228 = sbr.rel (%p3226) target = $region192
        $region191: #{tpu_custom_call.1} parent=187 // pred_region
          %s3229 = sand.u32 %s697, 1
          %s3230 = scalar_lea.sflag [#allocation5], %s3229
          %s3231 = sand.u32 %s697, 1
          %s3232 = smul.addr %s3231, 8
          %s3233 = scalar_lea.vmem [#allocation26], %s3232
          %3234 = dma.done %s3230, 128
        $region192: #{tpu_custom_call.1} parent=187 // pred_fallthru
          _
      $region188: #{tpu_custom_call.1} parent=5 // pred_fallthru
        _
    $region6: #{tpu_custom_call.1} parent=1 // loop_footer
      %s61 = sadd.s32 1, %s57
    $region7: #{tpu_custom_call.1} parent=1 // loop_footer_branch
      %56 = sbr.rel target = $region3
    $region8: #{tpu_custom_call.1} parent=1 // loop_exit
      _
    %3235 = vsyncpa [#allocation4], 1
    %s3236 = scalar_lea.sflag [#allocation4], 1
    %3237 = vsyncpa %s3236, 1
    %3238 = vsyncpa [#allocation7], 1
    %s3239 = scalar_lea.sflag [#allocation7], 1
    %3240 = vsyncpa %s3239, 1
    %3241 = vsyncpa [#allocation10], 1
    %s3242 = scalar_lea.sflag [#allocation10], 1
    %3243 = vsyncpa %s3242, 1
    %3244 = vsyncpa [#allocation13], 1
    %s3245 = scalar_lea.sflag [#allocation13], 1
    %3246 = vsyncpa %s3245, 1
    %3247 = vsyncpa [#allocation16], 1
    %s3248 = scalar_lea.sflag [#allocation16], 1
    %3249 = vsyncpa %s3248, 1
    %3250 = vsyncpa [#allocation19], 1
    %s3251 = scalar_lea.sflag [#allocation19], 1
    %3252 = vsyncpa %s3251, 1
    %3253 = vsyncpa [#allocation22], 1
    %s3254 = scalar_lea.sflag [#allocation22], 1
    %3255 = vsyncpa %s3254, 1
    %3256 = vsyncpa [#allocation25], 1
    %s3257 = scalar_lea.sflag [#allocation25], 1
    %3258 = vsyncpa %s3257, 1
    %3259 = vsyncpa [#allocation5], 1
    %s3260 = scalar_lea.sflag [#allocation5], 1
    %3261 = vsyncpa %s3260, 1

</llo_original>
